<compile_context>
chip_gen: v7x
topology: tpu7x:2x2x1
jax: 0.10.0
libtpu: 0.0.40
codegen_flags: <defaults>
</compile_context>

<pallas_src>
import math
from functools import partial

import jax
import jax.numpy as jnp
from jax import lax
from jax.experimental import pallas as pl
from jax.experimental.pallas import tpu as pltpu

# ----------------------------- config ---------------------------------------
D_MODEL = 32
N_LAYER = 2
VOCAB = 48                        # already a multiple of pad_vocab_size_multiple=8
D_STATE = 16
D_CONV = 4
EXPAND = 2
D_INNER = EXPAND * D_MODEL        # 64
DT_RANK = math.ceil(D_MODEL / 16) # 2
EPS = 1e-5
BATCH = 2
SEQLEN = 8
LANE = 128                        # padded lane width (2*D_INNER == BATCH*D_INNER == 128)


# ------------------------------- fused kernel --------------------------------
def _fused_forward_kernel(ids_ref,                      # (B*L, 1) int32 token ids (VMEM)
                          emb_ref,                      # (VOCAB, 128) padded embedding
                          lmhead_ref,                   # (128, 128) padded tied lm_head (= emb.T)
                          fvecs_ref,                    # (8, 128): row0 norm_f_w, row1 norm_f_b
                          lvecs_ref,                    # (N_LAYER, 32, 128) packed per-layer vectors
                          inproj_ref,                   # (N_LAYER, 128, 128) padded in_proj
                          proj2_ref,                    # (2*N_LAYER, 64, 128): [2i]=w_all, [2i+1]=out_proj
                          expand_ref,                   # (B*L, L*128) 0/1 token->lane expander
                          o_ref,                        # out: (B*L, 128) padded logits
                          bc_ref,                       # scratch (2*D_STATE, L*128): B/C lane-broadcast
                          dec_ref,                      # scratch (D_STATE, L*128): exp(dt*A)
                          y_ref,                        # scratch (L, 128): scan outputs
                          *, n_layer, n_tok, Bb, L):
    F = jnp.float32

    def sigmoid(x):                       # exact, EUP tanh
        return 0.5 * (jnp.tanh(0.5 * x) + 1.0)

    def softplus(x):
        return jnp.where(x > 20.0, x, jnp.log1p(jnp.exp(jnp.minimum(x, 20.0))))

    def layer_norm(res, w, b):
        # Pad lanes (>= D_MODEL) of `res` are exactly zero by construction, so sums over
        # all 128 lanes divided by D_MODEL give the true mean / second moment.
        mean = jnp.sum(res, axis=-1, keepdims=True) * (1.0 / D_MODEL)
        ex2 = jnp.sum(res * res, axis=-1, keepdims=True) * (1.0 / D_MODEL)
        var = ex2 - mean * mean
        return (res - mean) * lax.rsqrt(var + EPS) * w + b   # zero-padded w re-zeros pad lanes

    def tok_to_scan(a):      # (B*L, C) token-major -> (L, Bb*C) time-major, batch on lanes
        return jnp.concatenate([a[b * L:(b + 1) * L, :] for b in range(Bb)], axis=1)

    def scan_to_tok(a, C):   # (L, Bb*C) -> (B*L, C)
        return jnp.concatenate([a[:, b * C:(b + 1) * C] for b in range(Bb)], axis=0)

    # ---- embedding lookup as a one-hot matmul (MXU is idle here; OOB-safe) --------
    ids = ids_ref[...]                                               # (n_tok, 1) int32
    vocab_iota = lax.broadcasted_iota(jnp.int32, (n_tok, VOCAB), 1)
    onehot = (ids == vocab_iota).astype(F)                           # (n_tok, VOCAB)
    hid = jnp.dot(onehot, emb_ref[...], preferred_element_type=F)    # (n_tok, 128), pad lanes 0
    res = jnp.zeros_like(hid)                                        # residual = None at layer 0

    for li in range(n_layer):
        lv = lvecs_ref[li]                                           # (32, 128) packed vectors

        # ---- Block: residual add + LayerNorm (prenorm, unfused path) -------------
        res = hid + res
        normed = layer_norm(res, lv[0:1, :], lv[1:2, :])

        # ---- in_proj -> xz, split x / z, move to scan layout ----------------------
        xz = jnp.dot(normed, inproj_ref[li], preferred_element_type=F)   # (n_tok, 128)
        x_sc = tok_to_scan(xz[:, :D_INNER])                  # (L, 128)
        z_sc = tok_to_scan(xz[:, D_INNER:])

        # ---- causal depthwise conv1d + SiLU: one front zero-pad, static tap slices -
        x_pad = jnp.concatenate(
            [jnp.zeros((D_CONV - 1, Bb * D_INNER), F), x_sc], axis=0)    # (L+K-1, 128)
        acc = lv[2:3, :]                                      # conv bias (batch-tiled)
        for k in range(D_CONV):
            acc = acc + x_pad[k:k + L, :] * lv[8 + k:9 + k, :]
        u_sc = acc * sigmoid(acc)                             # SiLU, (L, 128)

        # ---- merged x_proj: folded dt_proj + B/C rows in one MXU pass --------------
        u_tok = scan_to_tok(u_sc, D_INNER)                    # (n_tok, 64)
        proj = jnp.dot(u_tok, proj2_ref[2 * li], preferred_element_type=F)  # (n_tok, 128)
        dt_sc = softplus(tok_to_scan(proj[:, :D_INNER]) + lv[3:4, :])       # (L, 128)
        bc_tok = proj[:, D_INNER:D_INNER + 2 * D_STATE]       # (n_tok, 2*d_state)

        # Lane-broadcast B/C for ALL timesteps with one MXU pass (no per-step XLU):
        # bc_ref[s, l*128 + b*64 + c] = bc_tok[b*L + l, s]
        bc_ref[...] = lax.dot_general(
            bc_tok, expand_ref[...],
            dimension_numbers=(((0,), (0,)), ((), ())),
            preferred_element_type=F)                         # (2*d_state, L*128)

        dtu = dt_sc * u_sc                                    # (L, 128)
        a_bc = lv[16:32, :]                                   # (d_state, 128) = A (negative), tiled
        # Hoisted per-step decay (EUP exp off the recurrence chain), stored in VMEM.
        for l in range(L):
            dec_ref[:, pl.ds(l * LANE, LANE)] = jnp.exp(dt_sc[l:l + 1, :] * a_bc)

        # ---- selective scan: state (d_state, Bb*d_inner) = (16, 128), unrolled ------
        h = jnp.zeros((D_STATE, Bb * D_INNER), F)
        for l in range(L):
            off = l * LANE
            b_l = bc_ref[pl.ds(0, D_STATE), pl.ds(off, LANE)]
            c_l = bc_ref[pl.ds(D_STATE, D_STATE), pl.ds(off, LANE)]
            h = dec_ref[:, pl.ds(off, LANE)] * h + dtu[l:l + 1, :] * b_l
            y_ref[pl.ds(l, 1), :] = jnp.sum(h * c_l, axis=0, keepdims=True)

        y_sc = (y_ref[...] + u_sc * lv[4:5, :]) * (z_sc * sigmoid(z_sc))  # skip D + SiLU gate

        # ---- out_proj back to (padded) d_model lanes --------------------------------
        y_tok = scan_to_tok(y_sc, D_INNER)                    # (n_tok, 64)
        hid = jnp.dot(y_tok, proj2_ref[2 * li + 1], preferred_element_type=F)  # (n_tok, 128)

    # ---- final add + LayerNorm + tied lm_head; single full-width lane-dense store ---
    res = hid + res
    fv = fvecs_ref[...]
    normed = layer_norm(res, fv[0:1, :], fv[1:2, :])
    o_ref[...] = jnp.dot(normed, lmhead_ref[...], preferred_element_type=F)


# ------------------------------- wrapper --------------------------------------
def forward(params, input_ids):
    """MambaLMHeadModel.forward -> logits (B, L, vocab)."""
    Bb, L = input_ids.shape
    assert Bb == BATCH and L == SEQLEN, "expander matrix sized for (BATCH, SEQLEN)"
    assert Bb * D_INNER == LANE and 2 * D_INNER == LANE
    n_tok = Bb * L
    ids = input_ids.reshape(n_tok, 1).astype(jnp.int32)       # token-major (b*L + l)
    vmem = pl.BlockSpec(memory_space=pltpu.MemorySpace.VMEM)
    # TODO(synk): v7x second-TensorCore grid axis / lm_head tiling only needed if the
    # config is scaled up; at B=2, L=8 the grid-less form is fastest.
    out = pl.pallas_call(
        partial(_fused_forward_kernel, n_layer=N_LAYER, n_tok=n_tok, Bb=Bb, L=L),
        out_shape=jax.ShapeDtypeStruct((n_tok, LANE), jnp.float32),
        in_specs=[vmem] * 8,
        out_specs=vmem,
        scratch_shapes=[
            pltpu.VMEM((2 * D_STATE, L * LANE), jnp.float32),   # B/C lane-broadcast
            pltpu.VMEM((D_STATE, L * LANE), jnp.float32),       # exp(dt*A)
            pltpu.VMEM((L, LANE), jnp.float32),                 # scan outputs y
        ],
    )(ids, params["emb"], params["lm_head"], params["fvecs"], params["lvecs"],
      params["in_proj"], params["proj2"], params["expand"])
    return out[:, :VOCAB].reshape(Bb, L, VOCAB)


# --------------------------- deterministic init --------------------------------
def init_params(key):
    """Return (kernel-layout packed params, logical params for the pure-JAX reference)."""
    HI = lax.Precision.HIGHEST
    keys = jax.random.split(key, 1 + 6 * N_LAYER)
    kit = iter(keys)
    nrm = lambda k, shape, std: jax.random.normal(k, shape, jnp.float32) * std

    embedding = nrm(next(kit), (VOCAB, D_MODEL), 0.3)          # tied with lm_head

    logical = {
        "embedding": embedding,
        "norm_f_w": jnp.ones((D_MODEL,), jnp.float32),
        "norm_f_b": jnp.zeros((D_MODEL,), jnp.float32),
        "layers": [],
    }
    for _ in range(N_LAYER):
        logical["layers"].append({
            "norm_w": jnp.ones((D_MODEL,), jnp.float32),
            "norm_b": jnp.zeros((D_MODEL,), jnp.float32),
            "in_proj_wT": nrm(next(kit), (D_MODEL, 2 * D_INNER), 0.2),
            "conv_w": nrm(next(kit), (D_CONV, D_INNER), 0.3),
            "conv_b": nrm(next(kit), (D_INNER,), 0.3),
            "x_proj_wT": nrm(next(kit), (D_INNER, DT_RANK + 2 * D_STATE), 0.3),
            "dt_proj_wT": nrm(next(kit), (DT_RANK, D_INNER), DT_RANK ** -0.5),
            "dt_proj_b": jnp.full((D_INNER,), math.log(math.expm1(0.5)), jnp.float32),
            "A": -jnp.tile(jnp.arange(1, D_STATE + 1, dtype=jnp.float32)[None, :],
                           (D_INNER, 1)),                       # = -exp(A_log)
            "D": jnp.ones((D_INNER,), jnp.float32),
            "out_proj_wT": nrm(next(kit), (D_INNER, D_MODEL), 0.1) / math.sqrt(N_LAYER),
        })

    # ---------------- pack into the kernel layout ----------------
    tile1 = lambda v: jnp.tile(v, (BATCH,))            # (C,)   -> (BATCH*C,)
    tile2 = lambda m: jnp.tile(m, (1, BATCH))          # (R, C) -> (R, BATCH*C)

    emb2d = jnp.zeros((VOCAB, LANE), jnp.float32).at[:, :D_MODEL].set(embedding)
    lm_head = jnp.zeros((LANE, LANE), jnp.float32).at[:D_MODEL, :VOCAB].set(embedding.T)
    fvecs = (jnp.zeros((8, LANE), jnp.float32)
             .at[0, :D_MODEL].set(logical["norm_f_w"])
             .at[1, :D_MODEL].set(logical["norm_f_b"]))

    lvecs, in_proj, proj2 = [], [], []
    for lyr in logical["layers"]:
        lv = jnp.zeros((32, LANE), jnp.float32)
        lv = lv.at[0, :D_MODEL].set(lyr["norm_w"])
        lv = lv.at[1, :D_MODEL].set(lyr["norm_b"])
        lv = lv.at[2, :].set(tile1(lyr["conv_b"]))
        lv = lv.at[3, :].set(tile1(lyr["dt_proj_b"]))
        lv = lv.at[4, :].set(tile1(lyr["D"]))
        for k in range(D_CONV):
            lv = lv.at[8 + k, :].set(tile1(lyr["conv_w"][k]))
        lv = lv.at[16:32, :].set(tile2(lyr["A"].T))            # (d_state, 128)
        lvecs.append(lv)

        in_proj.append(jnp.zeros((LANE, LANE), jnp.float32)
                       .at[:D_MODEL, :].set(lyr["in_proj_wT"]))

        w_dt = jnp.einsum("dr,re->de", lyr["x_proj_wT"][:, :DT_RANK],
                          lyr["dt_proj_wT"], precision=HI)      # folded dt_proj
        w_all = (jnp.zeros((D_INNER, LANE), jnp.float32)
                 .at[:, :D_INNER].set(w_dt)
                 .at[:, D_INNER:D_INNER + 2 * D_STATE].set(lyr["x_proj_wT"][:, DT_RANK:]))
        w_out = jnp.zeros((D_INNER, LANE), jnp.float32).at[:, :D_MODEL].set(lyr["out_proj_wT"])
        proj2.append(w_all)
        proj2.append(w_out)

    # expander: 0/1 matrix broadcasting token (b, l) values across the 64 channel lanes
    # of lane block (l, b):  E[t, l*128 + b*64 + c] = 1  iff  t == b*SEQLEN + l
    j = jnp.arange(SEQLEN * LANE)
    tok_of_lane = ((j // D_INNER) % BATCH) * SEQLEN + (j // LANE)
    expand = (jnp.arange(BATCH * SEQLEN)[:, None] == tok_of_lane[None, :]).astype(jnp.float32)

    kernel_params = {
        "emb": emb2d,
        "lm_head": lm_head,
        "fvecs": fvecs,
        "lvecs": jnp.stack(lvecs, 0),                  # (N_LAYER, 32, 128)
        "in_proj": jnp.stack(in_proj, 0),              # (N_LAYER, 128, 128)
        "proj2": jnp.stack(proj2, 0),                  # (2*N_LAYER, 64, 128)
        "expand": expand,                              # (B*L, L*128)
    }
    return kernel_params, logical


# --------------------------- pure-JAX reference ---------------------------------
def reference_forward(lp, input_ids):
    """Faithful (unfused, unfolded) MambaLMHeadModel forward for verification."""
    HI = lax.Precision.HIGHEST

    def ln(x, w, b):
        m = jnp.mean(x, axis=-1, keepdims=True)
        v = jnp.mean((x - m) ** 2, axis=-1, keepdims=True)
        return (x - m) / jnp.sqrt(v + EPS) * w + b

    B, L = input_ids.shape
    x = lp["embedding"][input_ids]                              # (B, L, D)
    residual = None
    for lyr in lp["layers"]:
        residual = x if residual is None else x + residual
        h = ln(residual, lyr["norm_w"], lyr["norm_b"])
        xz = jnp.einsum("bld,de->ble", h, lyr["in_proj_wT"], precision=HI)
        xi, z = xz[..., :D_INNER], xz[..., D_INNER:]
        xpad = jnp.pad(xi, ((0, 0), (D_CONV - 1, 0), (0, 0)))
        u = lyr["conv_b"][None, None, :]
        for k in range(D_CONV):
            u = u + xpad[:, k:k + L, :] * lyr["conv_w"][k][None, None, :]
        u = u * jax.nn.sigmoid(u)                               # SiLU
        x_dbl = jnp.einsum("bld,de->ble", u, lyr["x_proj_wT"], precision=HI)
        dt = jax.nn.softplus(
            jnp.einsum("blr,rd->bld", x_dbl[..., :DT_RANK], lyr["dt_proj_wT"],
                       precision=HI) + lyr["dt_proj_b"])
        Bm = x_dbl[..., DT_RANK:DT_RANK + D_STATE]
        Cm = x_dbl[..., DT_RANK + D_STATE:]
        A = lyr["A"]                                            # (d_inner, d_state)
        hstate = jnp.zeros((B, D_INNER, D_STATE), jnp.float32)
        ys = []
        for l in range(L):
            hstate = (jnp.exp(dt[:, l, :, None] * A[None]) * hstate
                      + (dt[:, l, :] * u[:, l, :])[:, :, None] * Bm[:, l, None, :])
            ys.append(jnp.einsum("bdn,bn->bd", hstate, Cm[:, l], precision=HI))
        y = jnp.stack(ys, axis=1) + u * lyr["D"][None, None, :]
        y = y * (z * jax.nn.sigmoid(z))
        x = jnp.einsum("ble,ed->bld", y, lyr["out_proj_wT"], precision=HI)
    residual = x + residual
    hf = ln(residual, lp["norm_f_w"], lp["norm_f_b"])
    return jnp.einsum("bld,vd->blv", hf, lp["embedding"], precision=HI)  # tied lm_head


# ------------------------------------ main -------------------------------------
if __name__ == "__main__":
    key = jax.random.PRNGKey(0)
    kp, kx = jax.random.split(key)
    params, logical = init_params(kp)
    input_ids = jax.random.randint(kx, (BATCH, SEQLEN), 0, VOCAB, dtype=jnp.int32)

    logits = jax.jit(forward)(params, input_ids)
    logits = jax.block_until_ready(logits)

    assert logits.shape == (BATCH, SEQLEN, VOCAB)
    assert bool(jnp.all(jnp.isfinite(logits)))

    ref = jax.jit(reference_forward)(logical, input_ids)
    ref = jax.block_until_ready(ref)
    max_err = float(jnp.max(jnp.abs(logits - ref)))
    assert max_err < 2e-2, f"kernel/reference mismatch: max abs err = {max_err}"

    # TODO(synk): inference_params / generation-cache decode path not implemented (forward only).
    print("KERNEL_OK")
</pallas_src>

<mosaic_0001>
module attributes {stable_mosaic.version = 11 : i64} {
  func.func @_fused_forward_kernel(%arg0: memref<16x1xi32, #tpu.memory_space<vmem>>, %arg1: memref<48x128xf32, #tpu.memory_space<vmem>>, %arg2: memref<128x128xf32, #tpu.memory_space<vmem>>, %arg3: memref<8x128xf32, #tpu.memory_space<vmem>>, %arg4: memref<2x32x128xf32, #tpu.memory_space<vmem>>, %arg5: memref<2x128x128xf32, #tpu.memory_space<vmem>>, %arg6: memref<4x64x128xf32, #tpu.memory_space<vmem>>, %arg7: memref<16x1024xf32, #tpu.memory_space<vmem>>, %arg8: memref<16x128xf32, #tpu.memory_space<vmem>>, %arg9: memref<32x1024xf32, #tpu.memory_space<vmem>>, %arg10: memref<16x1024xf32, #tpu.memory_space<vmem>>, %arg11: memref<8x128xf32, #tpu.memory_space<vmem>>) attributes {dimension_semantics = [], scalar_prefetch = 0 : i64, scratch_operands = 3 : i64, tpu.core_type = #tpu.core_type<tc>} {
    %c0 = arith.constant 0 : index
    %c0_0 = arith.constant 0 : index
    %0 = vector.load %arg0[%c0, %c0_0] : memref<16x1xi32, #tpu.memory_space<vmem>>, vector<16x1xi32>
    %1 = tpu.iota {dimensions = array<i32: 1>} : vector<16x48xi32>
    %2 = vector.broadcast %0 : vector<16x1xi32> to vector<16x48xi32>
    %3 = arith.cmpi eq, %2, %1 : vector<16x48xi32>
    %4 = arith.extui %3 : vector<16x48xi1> to vector<16x48xi32>
    %5 = arith.sitofp %4 : vector<16x48xi32> to vector<16x48xf32>
    %c0_1 = arith.constant 0 : index
    %c0_2 = arith.constant 0 : index
    %6 = vector.load %arg1[%c0_1, %c0_2] : memref<48x128xf32, #tpu.memory_space<vmem>>, vector<48x128xf32>
    %cst = arith.constant dense<0.000000e+00> : vector<16x128xf32>
    %7 = tpu.matmul %5, %6, %cst {dimension_numbers = #tpu.dot_dimension_numbers<[1], [0], [0], [1], [0, 0, 1, 1], [], []>} : vector<16x48xf32>, vector<48x128xf32>, vector<16x128xf32> -> vector<16x128xf32>
    %cst_3 = arith.constant 0.000000e+00 : f32
    %8 = vector.broadcast %cst_3 : f32 to vector<16x128xf32>
    %c0_4 = arith.constant 0 : index
    %c0_5 = arith.constant 0 : index
    %c0_6 = arith.constant 0 : index
    %9 = vector.load %arg4[%c0_4, %c0_5, %c0_6] : memref<2x32x128xf32, #tpu.memory_space<vmem>>, vector<1x32x128xf32>
    %10 = vector.shape_cast %9 : vector<1x32x128xf32> to vector<32x128xf32>
    %11 = arith.addf %7, %8 : vector<16x128xf32>
    %12 = vector.extract_strided_slice %10 {offsets = [0, 0], sizes = [1, 128], strides = [1, 1]} : vector<32x128xf32> to vector<1x128xf32>
    %13 = vector.extract_strided_slice %10 {offsets = [1, 0], sizes = [1, 128], strides = [1, 1]} : vector<32x128xf32> to vector<1x128xf32>
    %cst_7 = arith.constant dense<0.000000e+00> : vector<16xf32>
    %14 = vector.multi_reduction <add>, %11, %cst_7 [1] : vector<16x128xf32> to vector<16xf32>
    %15 = vector.shape_cast %14 : vector<16xf32> to vector<16x1xf32>
    %cst_8 = arith.constant 3.125000e-02 : f32
    %16 = vector.broadcast %cst_8 : f32 to vector<16x1xf32>
    %17 = arith.mulf %15, %16 : vector<16x1xf32>
    %18 = arith.mulf %11, %11 : vector<16x128xf32>
    %cst_9 = arith.constant dense<0.000000e+00> : vector<16xf32>
    %19 = vector.multi_reduction <add>, %18, %cst_9 [1] : vector<16x128xf32> to vector<16xf32>
    %20 = vector.shape_cast %19 : vector<16xf32> to vector<16x1xf32>
    %cst_10 = arith.constant 3.125000e-02 : f32
    %21 = vector.broadcast %cst_10 : f32 to vector<16x1xf32>
    %22 = arith.mulf %20, %21 : vector<16x1xf32>
    %23 = arith.mulf %17, %17 : vector<16x1xf32>
    %24 = arith.subf %22, %23 : vector<16x1xf32>
    %25 = vector.broadcast %17 : vector<16x1xf32> to vector<16x128xf32>
    %26 = arith.subf %11, %25 : vector<16x128xf32>
    %cst_11 = arith.constant 9.99999974E-6 : f32
    %27 = vector.broadcast %cst_11 : f32 to vector<16x1xf32>
    %28 = arith.addf %24, %27 : vector<16x1xf32>
    %29 = math.rsqrt %28 : vector<16x1xf32>
    %30 = vector.broadcast %29 : vector<16x1xf32> to vector<16x128xf32>
    %31 = arith.mulf %26, %30 : vector<16x128xf32>
    %32 = vector.broadcast %12 : vector<1x128xf32> to vector<16x128xf32>
    %33 = arith.mulf %31, %32 : vector<16x128xf32>
    %34 = vector.broadcast %13 : vector<1x128xf32> to vector<16x128xf32>
    %35 = arith.addf %33, %34 : vector<16x128xf32>
    %c0_12 = arith.constant 0 : index
    %c0_13 = arith.constant 0 : index
    %c0_14 = arith.constant 0 : index
    %36 = vector.load %arg5[%c0_12, %c0_13, %c0_14] : memref<2x128x128xf32, #tpu.memory_space<vmem>>, vector<1x128x128xf32>
    %37 = vector.shape_cast %36 : vector<1x128x128xf32> to vector<128x128xf32>
    %cst_15 = arith.constant dense<0.000000e+00> : vector<16x128xf32>
    %38 = tpu.matmul %35, %37, %cst_15 {dimension_numbers = #tpu.dot_dimension_numbers<[1], [0], [0], [1], [0, 0, 1, 1], [], []>} : vector<16x128xf32>, vector<128x128xf32>, vector<16x128xf32> -> vector<16x128xf32>
    %39 = vector.extract_strided_slice %38 {offsets = [0, 0], sizes = [16, 64], strides = [1, 1]} : vector<16x128xf32> to vector<16x64xf32>
    %40 = vector.extract_strided_slice %39 {offsets = [0, 0], sizes = [8, 64], strides = [1, 1]} : vector<16x64xf32> to vector<8x64xf32>
    %41 = vector.extract_strided_slice %39 {offsets = [8, 0], sizes = [8, 64], strides = [1, 1]} : vector<16x64xf32> to vector<8x64xf32>
    %42 = tpu.concatenate %40, %41 in 1 : vector<8x64xf32>, vector<8x64xf32> -> vector<8x128xf32>
    %43 = vector.extract_strided_slice %38 {offsets = [0, 64], sizes = [16, 64], strides = [1, 1]} : vector<16x128xf32> to vector<16x64xf32>
    %44 = vector.extract_strided_slice %43 {offsets = [0, 0], sizes = [8, 64], strides = [1, 1]} : vector<16x64xf32> to vector<8x64xf32>
    %45 = vector.extract_strided_slice %43 {offsets = [8, 0], sizes = [8, 64], strides = [1, 1]} : vector<16x64xf32> to vector<8x64xf32>
    %46 = tpu.concatenate %44, %45 in 1 : vector<8x64xf32>, vector<8x64xf32> -> vector<8x128xf32>
    %cst_16 = arith.constant 0.000000e+00 : f32
    %47 = vector.broadcast %cst_16 : f32 to vector<3x128xf32>
    %48 = tpu.concatenate %47, %42 in 0 : vector<3x128xf32>, vector<8x128xf32> -> vector<11x128xf32>
    %49 = vector.extract_strided_slice %10 {offsets = [2, 0], sizes = [1, 128], strides = [1, 1]} : vector<32x128xf32> to vector<1x128xf32>
    %50 = vector.extract_strided_slice %48 {offsets = [0, 0], sizes = [8, 128], strides = [1, 1]} : vector<11x128xf32> to vector<8x128xf32>
    %51 = vector.extract_strided_slice %10 {offsets = [8, 0], sizes = [1, 128], strides = [1, 1]} : vector<32x128xf32> to vector<1x128xf32>
    %52 = vector.broadcast %51 : vector<1x128xf32> to vector<8x128xf32>
    %53 = arith.mulf %50, %52 : vector<8x128xf32>
    %54 = vector.broadcast %49 : vector<1x128xf32> to vector<8x128xf32>
    %55 = arith.addf %54, %53 : vector<8x128xf32>
    %56 = vector.extract_strided_slice %48 {offsets = [1, 0], sizes = [8, 128], strides = [1, 1]} : vector<11x128xf32> to vector<8x128xf32>
    %57 = vector.extract_strided_slice %10 {offsets = [9, 0], sizes = [1, 128], strides = [1, 1]} : vector<32x128xf32> to vector<1x128xf32>
    %58 = vector.broadcast %57 : vector<1x128xf32> to vector<8x128xf32>
    %59 = arith.mulf %56, %58 : vector<8x128xf32>
    %60 = arith.addf %55, %59 : vector<8x128xf32>
    %61 = vector.extract_strided_slice %48 {offsets = [2, 0], sizes = [8, 128], strides = [1, 1]} : vector<11x128xf32> to vector<8x128xf32>
    %62 = vector.extract_strided_slice %10 {offsets = [10, 0], sizes = [1, 128], strides = [1, 1]} : vector<32x128xf32> to vector<1x128xf32>
    %63 = vector.broadcast %62 : vector<1x128xf32> to vector<8x128xf32>
    %64 = arith.mulf %61, %63 : vector<8x128xf32>
    %65 = arith.addf %60, %64 : vector<8x128xf32>
    %66 = vector.extract_strided_slice %48 {offsets = [3, 0], sizes = [8, 128], strides = [1, 1]} : vector<11x128xf32> to vector<8x128xf32>
    %67 = vector.extract_strided_slice %10 {offsets = [11, 0], sizes = [1, 128], strides = [1, 1]} : vector<32x128xf32> to vector<1x128xf32>
    %68 = vector.broadcast %67 : vector<1x128xf32> to vector<8x128xf32>
    %69 = arith.mulf %66, %68 : vector<8x128xf32>
    %70 = arith.addf %65, %69 : vector<8x128xf32>
    %cst_17 = arith.constant 5.000000e-01 : f32
    %71 = vector.broadcast %cst_17 : f32 to vector<8x128xf32>
    %72 = arith.mulf %71, %70 : vector<8x128xf32>
    %73 = math.tanh %72 : vector<8x128xf32>
    %cst_18 = arith.constant 1.000000e+00 : f32
    %74 = vector.broadcast %cst_18 : f32 to vector<8x128xf32>
    %75 = arith.addf %73, %74 : vector<8x128xf32>
    %cst_19 = arith.constant 5.000000e-01 : f32
    %76 = vector.broadcast %cst_19 : f32 to vector<8x128xf32>
    %77 = arith.mulf %76, %75 : vector<8x128xf32>
    %78 = arith.mulf %70, %77 : vector<8x128xf32>
    %79 = vector.extract_strided_slice %78 {offsets = [0, 0], sizes = [8, 64], strides = [1, 1]} : vector<8x128xf32> to vector<8x64xf32>
    %80 = vector.extract_strided_slice %78 {offsets = [0, 64], sizes = [8, 64], strides = [1, 1]} : vector<8x128xf32> to vector<8x64xf32>
    %81 = tpu.concatenate %79, %80 in 0 : vector<8x64xf32>, vector<8x64xf32> -> vector<16x64xf32>
    %c0_20 = arith.constant 0 : index
    %c0_21 = arith.constant 0 : index
    %c0_22 = arith.constant 0 : index
    %82 = vector.load %arg6[%c0_20, %c0_21, %c0_22] : memref<4x64x128xf32, #tpu.memory_space<vmem>>, vector<1x64x128xf32>
    %83 = vector.shape_cast %82 : vector<1x64x128xf32> to vector<64x128xf32>
    %cst_23 = arith.constant dense<0.000000e+00> : vector<16x128xf32>
    %84 = tpu.matmul %81, %83, %cst_23 {dimension_numbers = #tpu.dot_dimension_numbers<[1], [0], [0], [1], [0, 0, 1, 1], [], []>} : vector<16x64xf32>, vector<64x128xf32>, vector<16x128xf32> -> vector<16x128xf32>
    %85 = vector.extract_strided_slice %84 {offsets = [0, 0], sizes = [16, 64], strides = [1, 1]} : vector<16x128xf32> to vector<16x64xf32>
    %86 = vector.extract_strided_slice %85 {offsets = [0, 0], sizes = [8, 64], strides = [1, 1]} : vector<16x64xf32> to vector<8x64xf32>
    %87 = vector.extract_strided_slice %85 {offsets = [8, 0], sizes = [8, 64], strides = [1, 1]} : vector<16x64xf32> to vector<8x64xf32>
    %88 = tpu.concatenate %86, %87 in 1 : vector<8x64xf32>, vector<8x64xf32> -> vector<8x128xf32>
    %89 = vector.extract_strided_slice %10 {offsets = [3, 0], sizes = [1, 128], strides = [1, 1]} : vector<32x128xf32> to vector<1x128xf32>
    %90 = vector.broadcast %89 : vector<1x128xf32> to vector<8x128xf32>
    %91 = arith.addf %88, %90 : vector<8x128xf32>
    %cst_24 = arith.constant 2.000000e+01 : f32
    %92 = vector.broadcast %cst_24 : f32 to vector<8x128xf32>
    %93 = arith.cmpf ogt, %91, %92 : vector<8x128xf32>
    %cst_25 = arith.constant 2.000000e+01 : f32
    %94 = vector.broadcast %cst_25 : f32 to vector<8x128xf32>
    %95 = arith.minimumf %91, %94 : vector<8x128xf32>
    %96 = math.exp %95 : vector<8x128xf32>
    %97 = math.log1p %96 : vector<8x128xf32>
    %98 = arith.select %93, %91, %97 : vector<8x128xi1>, vector<8x128xf32>
    %99 = vector.extract_strided_slice %84 {offsets = [0, 64], sizes = [16, 32], strides = [1, 1]} : vector<16x128xf32> to vector<16x32xf32>
    %c0_26 = arith.constant 0 : index
    %c0_27 = arith.constant 0 : index
    %100 = vector.load %arg7[%c0_26, %c0_27] : memref<16x1024xf32, #tpu.memory_space<vmem>>, vector<16x1024xf32>
    %cst_28 = arith.constant dense<0.000000e+00> : vector<32x1024xf32>
    %101 = tpu.matmul %99, %100, %cst_28 {dimension_numbers = #tpu.dot_dimension_numbers<[0], [0], [1], [1], [0, 1, 1, 1], [], []>} : vector<16x32xf32>, vector<16x1024xf32>, vector<32x1024xf32> -> vector<32x1024xf32>
    %c0_29 = arith.constant 0 : index
    %c0_30 = arith.constant 0 : index
    %102 = vector.load %arg9[%c0_29, %c0_30] : memref<32x1024xf32, #tpu.memory_space<vmem>>, vector<32x1024xf32>
    tpu.vector_store %arg9[%c0_29, %c0_30], %101 {strides = array<i32>} : memref<32x1024xf32, #tpu.memory_space<vmem>>, vector<32x1024xf32>,
    %103 = arith.mulf %98, %78 : vector<8x128xf32>
    %104 = vector.extract_strided_slice %10 {offsets = [16, 0], sizes = [16, 128], strides = [1, 1]} : vector<32x128xf32> to vector<16x128xf32>
    %105 = vector.extract_strided_slice %98 {offsets = [0, 0], sizes = [1, 128], strides = [1, 1]} : vector<8x128xf32> to vector<1x128xf32>
    %106 = vector.broadcast %105 : vector<1x128xf32> to vector<16x128xf32>
    %107 = arith.mulf %106, %104 : vector<16x128xf32>
    %108 = math.exp %107 : vector<16x128xf32>
    %c0_31 = arith.constant 0 : index
    %c0_32 = arith.constant 0 : index
    %109 = vector.load %arg10[%c0_31, %c0_32] : memref<16x1024xf32, #tpu.memory_space<vmem>>, vector<16x128xf32>
    tpu.vector_store %arg10[%c0_31, %c0_32], %108 {strides = array<i32>} : memref<16x1024xf32, #tpu.memory_space<vmem>>, vector<16x128xf32>,
    %110 = vector.extract_strided_slice %98 {offsets = [1, 0], sizes = [1, 128], strides = [1, 1]} : vector<8x128xf32> to vector<1x128xf32>
    %111 = vector.broadcast %110 : vector<1x128xf32> to vector<16x128xf32>
    %112 = arith.mulf %111, %104 : vector<16x128xf32>
    %113 = math.exp %112 : vector<16x128xf32>
    %c0_33 = arith.constant 0 : index
    %c128 = arith.constant 128 : index
    %114 = vector.load %arg10[%c0_33, %c128] : memref<16x1024xf32, #tpu.memory_space<vmem>>, vector<16x128xf32>
    tpu.vector_store %arg10[%c0_33, %c128], %113 {strides = array<i32>} : memref<16x1024xf32, #tpu.memory_space<vmem>>, vector<16x128xf32>,
    %115 = vector.extract_strided_slice %98 {offsets = [2, 0], sizes = [1, 128], strides = [1, 1]} : vector<8x128xf32> to vector<1x128xf32>
    %116 = vector.broadcast %115 : vector<1x128xf32> to vector<16x128xf32>
    %117 = arith.mulf %116, %104 : vector<16x128xf32>
    %118 = math.exp %117 : vector<16x128xf32>
    %c0_34 = arith.constant 0 : index
    %c256 = arith.constant 256 : index
    %119 = vector.load %arg10[%c0_34, %c256] : memref<16x1024xf32, #tpu.memory_space<vmem>>, vector<16x128xf32>
    tpu.vector_store %arg10[%c0_34, %c256], %118 {strides = array<i32>} : memref<16x1024xf32, #tpu.memory_space<vmem>>, vector<16x128xf32>,
    %120 = vector.extract_strided_slice %98 {offsets = [3, 0], sizes = [1, 128], strides = [1, 1]} : vector<8x128xf32> to vector<1x128xf32>
    %121 = vector.broadcast %120 : vector<1x128xf32> to vector<16x128xf32>
    %122 = arith.mulf %121, %104 : vector<16x128xf32>
    %123 = math.exp %122 : vector<16x128xf32>
    %c0_35 = arith.constant 0 : index
    %c384 = arith.constant 384 : index
    %124 = vector.load %arg10[%c0_35, %c384] : memref<16x1024xf32, #tpu.memory_space<vmem>>, vector<16x128xf32>
    tpu.vector_store %arg10[%c0_35, %c384], %123 {strides = array<i32>} : memref<16x1024xf32, #tpu.memory_space<vmem>>, vector<16x128xf32>,
    %125 = vector.extract_strided_slice %98 {offsets = [4, 0], sizes = [1, 128], strides = [1, 1]} : vector<8x128xf32> to vector<1x128xf32>
    %126 = vector.broadcast %125 : vector<1x128xf32> to vector<16x128xf32>
    %127 = arith.mulf %126, %104 : vector<16x128xf32>
    %128 = math.exp %127 : vector<16x128xf32>
    %c0_36 = arith.constant 0 : index
    %c512 = arith.constant 512 : index
    %129 = vector.load %arg10[%c0_36, %c512] : memref<16x1024xf32, #tpu.memory_space<vmem>>, vector<16x128xf32>
    tpu.vector_store %arg10[%c0_36, %c512], %128 {strides = array<i32>} : memref<16x1024xf32, #tpu.memory_space<vmem>>, vector<16x128xf32>,
    %130 = vector.extract_strided_slice %98 {offsets = [5, 0], sizes = [1, 128], strides = [1, 1]} : vector<8x128xf32> to vector<1x128xf32>
    %131 = vector.broadcast %130 : vector<1x128xf32> to vector<16x128xf32>
    %132 = arith.mulf %131, %104 : vector<16x128xf32>
    %133 = math.exp %132 : vector<16x128xf32>
    %c0_37 = arith.constant 0 : index
    %c640 = arith.constant 640 : index
    %134 = vector.load %arg10[%c0_37, %c640] : memref<16x1024xf32, #tpu.memory_space<vmem>>, vector<16x128xf32>
    tpu.vector_store %arg10[%c0_37, %c640], %133 {strides = array<i32>} : memref<16x1024xf32, #tpu.memory_space<vmem>>, vector<16x128xf32>,
    %135 = vector.extract_strided_slice %98 {offsets = [6, 0], sizes = [1, 128], strides = [1, 1]} : vector<8x128xf32> to vector<1x128xf32>
    %136 = vector.broadcast %135 : vector<1x128xf32> to vector<16x128xf32>
    %137 = arith.mulf %136, %104 : vector<16x128xf32>
    %138 = math.exp %137 : vector<16x128xf32>
    %c0_38 = arith.constant 0 : index
    %c768 = arith.constant 768 : index
    %139 = vector.load %arg10[%c0_38, %c768] : memref<16x1024xf32, #tpu.memory_space<vmem>>, vector<16x128xf32>
    tpu.vector_store %arg10[%c0_38, %c768], %138 {strides = array<i32>} : memref<16x1024xf32, #tpu.memory_space<vmem>>, vector<16x128xf32>,
    %140 = vector.extract_strided_slice %98 {offsets = [7, 0], sizes = [1, 128], strides = [1, 1]} : vector<8x128xf32> to vector<1x128xf32>
    %141 = vector.broadcast %140 : vector<1x128xf32> to vector<16x128xf32>
    %142 = arith.mulf %141, %104 : vector<16x128xf32>
    %143 = math.exp %142 : vector<16x128xf32>
    %c0_39 = arith.constant 0 : index
    %c896 = arith.constant 896 : index
    %144 = vector.load %arg10[%c0_39, %c896] : memref<16x1024xf32, #tpu.memory_space<vmem>>, vector<16x128xf32>
    tpu.vector_store %arg10[%c0_39, %c896], %143 {strides = array<i32>} : memref<16x1024xf32, #tpu.memory_space<vmem>>, vector<16x128xf32>,
    %cst_40 = arith.constant 0.000000e+00 : f32
    %145 = vector.broadcast %cst_40 : f32 to vector<16x128xf32>
    %c0_41 = arith.constant 0 : index
    %c0_42 = arith.constant 0 : index
    %146 = vector.load %arg9[%c0_41, %c0_42] : memref<32x1024xf32, #tpu.memory_space<vmem>>, vector<16x128xf32>
    %c16 = arith.constant 16 : index
    %c0_43 = arith.constant 0 : index
    %147 = vector.load %arg9[%c16, %c0_43] : memref<32x1024xf32, #tpu.memory_space<vmem>>, vector<16x128xf32>
    %c0_44 = arith.constant 0 : index
    %c0_45 = arith.constant 0 : index
    %148 = vector.load %arg10[%c0_44, %c0_45] : memref<16x1024xf32, #tpu.memory_space<vmem>>, vector<16x128xf32>
    %149 = arith.mulf %148, %145 : vector<16x128xf32>
    %150 = vector.extract_strided_slice %103 {offsets = [0, 0], sizes = [1, 128], strides = [1, 1]} : vector<8x128xf32> to vector<1x128xf32>
    %151 = vector.broadcast %150 : vector<1x128xf32> to vector<16x128xf32>
    %152 = arith.mulf %151, %146 : vector<16x128xf32>
    %153 = arith.addf %149, %152 : vector<16x128xf32>
    %154 = arith.mulf %153, %147 : vector<16x128xf32>
    %cst_46 = arith.constant dense<0.000000e+00> : vector<128xf32>
    %155 = vector.multi_reduction <add>, %154, %cst_46 [0] : vector<16x128xf32> to vector<128xf32>
    %156 = vector.shape_cast %155 : vector<128xf32> to vector<1x128xf32>
    %c0_47 = arith.constant 0 : index
    %c0_48 = arith.constant 0 : index
    %157 = vector.load %arg11[%c0_47, %c0_48] : memref<8x128xf32, #tpu.memory_space<vmem>>, vector<1x128xf32>
    tpu.vector_store %arg11[%c0_47, %c0_48], %156 {strides = array<i32>} : memref<8x128xf32, #tpu.memory_space<vmem>>, vector<1x128xf32>,
    %c0_49 = arith.constant 0 : index
    %c128_50 = arith.constant 128 : index
    %158 = vector.load %arg9[%c0_49, %c128_50] : memref<32x1024xf32, #tpu.memory_space<vmem>>, vector<16x128xf32>
    %c16_51 = arith.constant 16 : index
    %c128_52 = arith.constant 128 : index
    %159 = vector.load %arg9[%c16_51, %c128_52] : memref<32x1024xf32, #tpu.memory_space<vmem>>, vector<16x128xf32>
    %c0_53 = arith.constant 0 : index
    %c128_54 = arith.constant 128 : index
    %160 = vector.load %arg10[%c0_53, %c128_54] : memref<16x1024xf32, #tpu.memory_space<vmem>>, vector<16x128xf32>
    %161 = arith.mulf %160, %153 : vector<16x128xf32>
    %162 = vector.extract_strided_slice %103 {offsets = [1, 0], sizes = [1, 128], strides = [1, 1]} : vector<8x128xf32> to vector<1x128xf32>
    %163 = vector.broadcast %162 : vector<1x128xf32> to vector<16x128xf32>
    %164 = arith.mulf %163, %158 : vector<16x128xf32>
    %165 = arith.addf %161, %164 : vector<16x128xf32>
    %166 = arith.mulf %165, %159 : vector<16x128xf32>
    %cst_55 = arith.constant dense<0.000000e+00> : vector<128xf32>
    %167 = vector.multi_reduction <add>, %166, %cst_55 [0] : vector<16x128xf32> to vector<128xf32>
    %168 = vector.shape_cast %167 : vector<128xf32> to vector<1x128xf32>
    %c1 = arith.constant 1 : index
    %c0_56 = arith.constant 0 : index
    %169 = vector.load %arg11[%c1, %c0_56] : memref<8x128xf32, #tpu.memory_space<vmem>>, vector<1x128xf32>
    tpu.vector_store %arg11[%c1, %c0_56], %168 {strides = array<i32>} : memref<8x128xf32, #tpu.memory_space<vmem>>, vector<1x128xf32>,
    %c0_57 = arith.constant 0 : index
    %c256_58 = arith.constant 256 : index
    %170 = vector.load %arg9[%c0_57, %c256_58] : memref<32x1024xf32, #tpu.memory_space<vmem>>, vector<16x128xf32>
    %c16_59 = arith.constant 16 : index
    %c256_60 = arith.constant 256 : index
    %171 = vector.load %arg9[%c16_59, %c256_60] : memref<32x1024xf32, #tpu.memory_space<vmem>>, vector<16x128xf32>
    %c0_61 = arith.constant 0 : index
    %c256_62 = arith.constant 256 : index
    %172 = vector.load %arg10[%c0_61, %c256_62] : memref<16x1024xf32, #tpu.memory_space<vmem>>, vector<16x128xf32>
    %173 = arith.mulf %172, %165 : vector<16x128xf32>
    %174 = vector.extract_strided_slice %103 {offsets = [2, 0], sizes = [1, 128], strides = [1, 1]} : vector<8x128xf32> to vector<1x128xf32>
    %175 = vector.broadcast %174 : vector<1x128xf32> to vector<16x128xf32>
    %176 = arith.mulf %175, %170 : vector<16x128xf32>
    %177 = arith.addf %173, %176 : vector<16x128xf32>
    %178 = arith.mulf %177, %171 : vector<16x128xf32>
    %cst_63 = arith.constant dense<0.000000e+00> : vector<128xf32>
    %179 = vector.multi_reduction <add>, %178, %cst_63 [0] : vector<16x128xf32> to vector<128xf32>
    %180 = vector.shape_cast %179 : vector<128xf32> to vector<1x128xf32>
    %c2 = arith.constant 2 : index
    %c0_64 = arith.constant 0 : index
    %181 = vector.load %arg11[%c2, %c0_64] : memref<8x128xf32, #tpu.memory_space<vmem>>, vector<1x128xf32>
    tpu.vector_store %arg11[%c2, %c0_64], %180 {strides = array<i32>} : memref<8x128xf32, #tpu.memory_space<vmem>>, vector<1x128xf32>,
    %c0_65 = arith.constant 0 : index
    %c384_66 = arith.constant 384 : index
    %182 = vector.load %arg9[%c0_65, %c384_66] : memref<32x1024xf32, #tpu.memory_space<vmem>>, vector<16x128xf32>
    %c16_67 = arith.constant 16 : index
    %c384_68 = arith.constant 384 : index
    %183 = vector.load %arg9[%c16_67, %c384_68] : memref<32x1024xf32, #tpu.memory_space<vmem>>, vector<16x128xf32>
    %c0_69 = arith.constant 0 : index
    %c384_70 = arith.constant 384 : index
    %184 = vector.load %arg10[%c0_69, %c384_70] : memref<16x1024xf32, #tpu.memory_space<vmem>>, vector<16x128xf32>
    %185 = arith.mulf %184, %177 : vector<16x128xf32>
    %186 = vector.extract_strided_slice %103 {offsets = [3, 0], sizes = [1, 128], strides = [1, 1]} : vector<8x128xf32> to vector<1x128xf32>
    %187 = vector.broadcast %186 : vector<1x128xf32> to vector<16x128xf32>
    %188 = arith.mulf %187, %182 : vector<16x128xf32>
    %189 = arith.addf %185, %188 : vector<16x128xf32>
    %190 = arith.mulf %189, %183 : vector<16x128xf32>
    %cst_71 = arith.constant dense<0.000000e+00> : vector<128xf32>
    %191 = vector.multi_reduction <add>, %190, %cst_71 [0] : vector<16x128xf32> to vector<128xf32>
    %192 = vector.shape_cast %191 : vector<128xf32> to vector<1x128xf32>
    %c3 = arith.constant 3 : index
    %c0_72 = arith.constant 0 : index
    %193 = vector.load %arg11[%c3, %c0_72] : memref<8x128xf32, #tpu.memory_space<vmem>>, vector<1x128xf32>
    tpu.vector_store %arg11[%c3, %c0_72], %192 {strides = array<i32>} : memref<8x128xf32, #tpu.memory_space<vmem>>, vector<1x128xf32>,
    %c0_73 = arith.constant 0 : index
    %c512_74 = arith.constant 512 : index
    %194 = vector.load %arg9[%c0_73, %c512_74] : memref<32x1024xf32, #tpu.memory_space<vmem>>, vector<16x128xf32>
    %c16_75 = arith.constant 16 : index
    %c512_76 = arith.constant 512 : index
    %195 = vector.load %arg9[%c16_75, %c512_76] : memref<32x1024xf32, #tpu.memory_space<vmem>>, vector<16x128xf32>
    %c0_77 = arith.constant 0 : index
    %c512_78 = arith.constant 512 : index
    %196 = vector.load %arg10[%c0_77, %c512_78] : memref<16x1024xf32, #tpu.memory_space<vmem>>, vector<16x128xf32>
    %197 = arith.mulf %196, %189 : vector<16x128xf32>
    %198 = vector.extract_strided_slice %103 {offsets = [4, 0], sizes = [1, 128], strides = [1, 1]} : vector<8x128xf32> to vector<1x128xf32>
    %199 = vector.broadcast %198 : vector<1x128xf32> to vector<16x128xf32>
    %200 = arith.mulf %199, %194 : vector<16x128xf32>
    %201 = arith.addf %197, %200 : vector<16x128xf32>
    %202 = arith.mulf %201, %195 : vector<16x128xf32>
    %cst_79 = arith.constant dense<0.000000e+00> : vector<128xf32>
    %203 = vector.multi_reduction <add>, %202, %cst_79 [0] : vector<16x128xf32> to vector<128xf32>
    %204 = vector.shape_cast %203 : vector<128xf32> to vector<1x128xf32>
    %c4 = arith.constant 4 : index
    %c0_80 = arith.constant 0 : index
    %205 = vector.load %arg11[%c4, %c0_80] : memref<8x128xf32, #tpu.memory_space<vmem>>, vector<1x128xf32>
    tpu.vector_store %arg11[%c4, %c0_80], %204 {strides = array<i32>} : memref<8x128xf32, #tpu.memory_space<vmem>>, vector<1x128xf32>,
    %c0_81 = arith.constant 0 : index
    %c640_82 = arith.constant 640 : index
    %206 = vector.load %arg9[%c0_81, %c640_82] : memref<32x1024xf32, #tpu.memory_space<vmem>>, vector<16x128xf32>
    %c16_83 = arith.constant 16 : index
    %c640_84 = arith.constant 640 : index
    %207 = vector.load %arg9[%c16_83, %c640_84] : memref<32x1024xf32, #tpu.memory_space<vmem>>, vector<16x128xf32>
    %c0_85 = arith.constant 0 : index
    %c640_86 = arith.constant 640 : index
    %208 = vector.load %arg10[%c0_85, %c640_86] : memref<16x1024xf32, #tpu.memory_space<vmem>>, vector<16x128xf32>
    %209 = arith.mulf %208, %201 : vector<16x128xf32>
    %210 = vector.extract_strided_slice %103 {offsets = [5, 0], sizes = [1, 128], strides = [1, 1]} : vector<8x128xf32> to vector<1x128xf32>
    %211 = vector.broadcast %210 : vector<1x128xf32> to vector<16x128xf32>
    %212 = arith.mulf %211, %206 : vector<16x128xf32>
    %213 = arith.addf %209, %212 : vector<16x128xf32>
    %214 = arith.mulf %213, %207 : vector<16x128xf32>
    %cst_87 = arith.constant dense<0.000000e+00> : vector<128xf32>
    %215 = vector.multi_reduction <add>, %214, %cst_87 [0] : vector<16x128xf32> to vector<128xf32>
    %216 = vector.shape_cast %215 : vector<128xf32> to vector<1x128xf32>
    %c5 = arith.constant 5 : index
    %c0_88 = arith.constant 0 : index
    %217 = vector.load %arg11[%c5, %c0_88] : memref<8x128xf32, #tpu.memory_space<vmem>>, vector<1x128xf32>
    tpu.vector_store %arg11[%c5, %c0_88], %216 {strides = array<i32>} : memref<8x128xf32, #tpu.memory_space<vmem>>, vector<1x128xf32>,
    %c0_89 = arith.constant 0 : index
    %c768_90 = arith.constant 768 : index
    %218 = vector.load %arg9[%c0_89, %c768_90] : memref<32x1024xf32, #tpu.memory_space<vmem>>, vector<16x128xf32>
    %c16_91 = arith.constant 16 : index
    %c768_92 = arith.constant 768 : index
    %219 = vector.load %arg9[%c16_91, %c768_92] : memref<32x1024xf32, #tpu.memory_space<vmem>>, vector<16x128xf32>
    %c0_93 = arith.constant 0 : index
    %c768_94 = arith.constant 768 : index
    %220 = vector.load %arg10[%c0_93, %c768_94] : memref<16x1024xf32, #tpu.memory_space<vmem>>, vector<16x128xf32>
    %221 = arith.mulf %220, %213 : vector<16x128xf32>
    %222 = vector.extract_strided_slice %103 {offsets = [6, 0], sizes = [1, 128], strides = [1, 1]} : vector<8x128xf32> to vector<1x128xf32>
    %223 = vector.broadcast %222 : vector<1x128xf32> to vector<16x128xf32>
    %224 = arith.mulf %223, %218 : vector<16x128xf32>
    %225 = arith.addf %221, %224 : vector<16x128xf32>
    %226 = arith.mulf %225, %219 : vector<16x128xf32>
    %cst_95 = arith.constant dense<0.000000e+00> : vector<128xf32>
    %227 = vector.multi_reduction <add>, %226, %cst_95 [0] : vector<16x128xf32> to vector<128xf32>
    %228 = vector.shape_cast %227 : vector<128xf32> to vector<1x128xf32>
    %c6 = arith.constant 6 : index
    %c0_96 = arith.constant 0 : index
    %229 = vector.load %arg11[%c6, %c0_96] : memref<8x128xf32, #tpu.memory_space<vmem>>, vector<1x128xf32>
    tpu.vector_store %arg11[%c6, %c0_96], %228 {strides = array<i32>} : memref<8x128xf32, #tpu.memory_space<vmem>>, vector<1x128xf32>,
    %c0_97 = arith.constant 0 : index
    %c896_98 = arith.constant 896 : index
    %230 = vector.load %arg9[%c0_97, %c896_98] : memref<32x1024xf32, #tpu.memory_space<vmem>>, vector<16x128xf32>
    %c16_99 = arith.constant 16 : index
    %c896_100 = arith.constant 896 : index
    %231 = vector.load %arg9[%c16_99, %c896_100] : memref<32x1024xf32, #tpu.memory_space<vmem>>, vector<16x128xf32>
    %c0_101 = arith.constant 0 : index
    %c896_102 = arith.constant 896 : index
    %232 = vector.load %arg10[%c0_101, %c896_102] : memref<16x1024xf32, #tpu.memory_space<vmem>>, vector<16x128xf32>
    %233 = arith.mulf %232, %225 : vector<16x128xf32>
    %234 = vector.extract_strided_slice %103 {offsets = [7, 0], sizes = [1, 128], strides = [1, 1]} : vector<8x128xf32> to vector<1x128xf32>
    %235 = vector.broadcast %234 : vector<1x128xf32> to vector<16x128xf32>
    %236 = arith.mulf %235, %230 : vector<16x128xf32>
    %237 = arith.addf %233, %236 : vector<16x128xf32>
    %238 = arith.mulf %237, %231 : vector<16x128xf32>
    %cst_103 = arith.constant dense<0.000000e+00> : vector<128xf32>
    %239 = vector.multi_reduction <add>, %238, %cst_103 [0] : vector<16x128xf32> to vector<128xf32>
    %240 = vector.shape_cast %239 : vector<128xf32> to vector<1x128xf32>
    %c7 = arith.constant 7 : index
    %c0_104 = arith.constant 0 : index
    %241 = vector.load %arg11[%c7, %c0_104] : memref<8x128xf32, #tpu.memory_space<vmem>>, vector<1x128xf32>
    tpu.vector_store %arg11[%c7, %c0_104], %240 {strides = array<i32>} : memref<8x128xf32, #tpu.memory_space<vmem>>, vector<1x128xf32>,
    %c0_105 = arith.constant 0 : index
    %c0_106 = arith.constant 0 : index
    %242 = vector.load %arg11[%c0_105, %c0_106] : memref<8x128xf32, #tpu.memory_space<vmem>>, vector<8x128xf32>
    %243 = vector.extract_strided_slice %10 {offsets = [4, 0], sizes = [1, 128], strides = [1, 1]} : vector<32x128xf32> to vector<1x128xf32>
    %244 = vector.broadcast %243 : vector<1x128xf32> to vector<8x128xf32>
    %245 = arith.mulf %78, %244 : vector<8x128xf32>
    %246 = arith.addf %242, %245 : vector<8x128xf32>
    %cst_107 = arith.constant 5.000000e-01 : f32
    %247 = vector.broadcast %cst_107 : f32 to vector<8x128xf32>
    %248 = arith.mulf %247, %46 : vector<8x128xf32>
    %249 = math.tanh %248 : vector<8x128xf32>
    %cst_108 = arith.constant 1.000000e+00 : f32
    %250 = vector.broadcast %cst_108 : f32 to vector<8x128xf32>
    %251 = arith.addf %249, %250 : vector<8x128xf32>
    %cst_109 = arith.constant 5.000000e-01 : f32
    %252 = vector.broadcast %cst_109 : f32 to vector<8x128xf32>
    %253 = arith.mulf %252, %251 : vector<8x128xf32>
    %254 = arith.mulf %46, %253 : vector<8x128xf32>
    %255 = arith.mulf %246, %254 : vector<8x128xf32>
    %256 = vector.extract_strided_slice %255 {offsets = [0, 0], sizes = [8, 64], strides = [1, 1]} : vector<8x128xf32> to vector<8x64xf32>
    %257 = vector.extract_strided_slice %255 {offsets = [0, 64], sizes = [8, 64], strides = [1, 1]} : vector<8x128xf32> to vector<8x64xf32>
    %258 = tpu.concatenate %256, %257 in 0 : vector<8x64xf32>, vector<8x64xf32> -> vector<16x64xf32>
    %c1_110 = arith.constant 1 : index
    %c0_111 = arith.constant 0 : index
    %c0_112 = arith.constant 0 : index
    %259 = vector.load %arg6[%c1_110, %c0_111, %c0_112] : memref<4x64x128xf32, #tpu.memory_space<vmem>>, vector<1x64x128xf32>
    %260 = vector.shape_cast %259 : vector<1x64x128xf32> to vector<64x128xf32>
    %cst_113 = arith.constant dense<0.000000e+00> : vector<16x128xf32>
    %261 = tpu.matmul %258, %260, %cst_113 {dimension_numbers = #tpu.dot_dimension_numbers<[1], [0], [0], [1], [0, 0, 1, 1], [], []>} : vector<16x64xf32>, vector<64x128xf32>, vector<16x128xf32> -> vector<16x128xf32>
    %c1_114 = arith.constant 1 : index
    %c0_115 = arith.constant 0 : index
    %c0_116 = arith.constant 0 : index
    %262 = vector.load %arg4[%c1_114, %c0_115, %c0_116] : memref<2x32x128xf32, #tpu.memory_space<vmem>>, vector<1x32x128xf32>
    %263 = vector.shape_cast %262 : vector<1x32x128xf32> to vector<32x128xf32>
    %264 = arith.addf %261, %11 : vector<16x128xf32>
    %265 = vector.extract_strided_slice %263 {offsets = [0, 0], sizes = [1, 128], strides = [1, 1]} : vector<32x128xf32> to vector<1x128xf32>
    %266 = vector.extract_strided_slice %263 {offsets = [1, 0], sizes = [1, 128], strides = [1, 1]} : vector<32x128xf32> to vector<1x128xf32>
    %cst_117 = arith.constant dense<0.000000e+00> : vector<16xf32>
    %267 = vector.multi_reduction <add>, %264, %cst_117 [1] : vector<16x128xf32> to vector<16xf32>
    %268 = vector.shape_cast %267 : vector<16xf32> to vector<16x1xf32>
    %cst_118 = arith.constant 3.125000e-02 : f32
    %269 = vector.broadcast %cst_118 : f32 to vector<16x1xf32>
    %270 = arith.mulf %268, %269 : vector<16x1xf32>
    %271 = arith.mulf %264, %264 : vector<16x128xf32>
    %cst_119 = arith.constant dense<0.000000e+00> : vector<16xf32>
    %272 = vector.multi_reduction <add>, %271, %cst_119 [1] : vector<16x128xf32> to vector<16xf32>
    %273 = vector.shape_cast %272 : vector<16xf32> to vector<16x1xf32>
    %cst_120 = arith.constant 3.125000e-02 : f32
    %274 = vector.broadcast %cst_120 : f32 to vector<16x1xf32>
    %275 = arith.mulf %273, %274 : vector<16x1xf32>
    %276 = arith.mulf %270, %270 : vector<16x1xf32>
    %277 = arith.subf %275, %276 : vector<16x1xf32>
    %278 = vector.broadcast %270 : vector<16x1xf32> to vector<16x128xf32>
    %279 = arith.subf %264, %278 : vector<16x128xf32>
    %cst_121 = arith.constant 9.99999974E-6 : f32
    %280 = vector.broadcast %cst_121 : f32 to vector<16x1xf32>
    %281 = arith.addf %277, %280 : vector<16x1xf32>
    %282 = math.rsqrt %281 : vector<16x1xf32>
    %283 = vector.broadcast %282 : vector<16x1xf32> to vector<16x128xf32>
    %284 = arith.mulf %279, %283 : vector<16x128xf32>
    %285 = vector.broadcast %265 : vector<1x128xf32> to vector<16x128xf32>
    %286 = arith.mulf %284, %285 : vector<16x128xf32>
    %287 = vector.broadcast %266 : vector<1x128xf32> to vector<16x128xf32>
    %288 = arith.addf %286, %287 : vector<16x128xf32>
    %c1_122 = arith.constant 1 : index
    %c0_123 = arith.constant 0 : index
    %c0_124 = arith.constant 0 : index
    %289 = vector.load %arg5[%c1_122, %c0_123, %c0_124] : memref<2x128x128xf32, #tpu.memory_space<vmem>>, vector<1x128x128xf32>
    %290 = vector.shape_cast %289 : vector<1x128x128xf32> to vector<128x128xf32>
    %cst_125 = arith.constant dense<0.000000e+00> : vector<16x128xf32>
    %291 = tpu.matmul %288, %290, %cst_125 {dimension_numbers = #tpu.dot_dimension_numbers<[1], [0], [0], [1], [0, 0, 1, 1], [], []>} : vector<16x128xf32>, vector<128x128xf32>, vector<16x128xf32> -> vector<16x128xf32>
    %292 = vector.extract_strided_slice %291 {offsets = [0, 0], sizes = [16, 64], strides = [1, 1]} : vector<16x128xf32> to vector<16x64xf32>
    %293 = vector.extract_strided_slice %292 {offsets = [0, 0], sizes = [8, 64], strides = [1, 1]} : vector<16x64xf32> to vector<8x64xf32>
    %294 = vector.extract_strided_slice %292 {offsets = [8, 0], sizes = [8, 64], strides = [1, 1]} : vector<16x64xf32> to vector<8x64xf32>
    %295 = tpu.concatenate %293, %294 in 1 : vector<8x64xf32>, vector<8x64xf32> -> vector<8x128xf32>
    %296 = vector.extract_strided_slice %291 {offsets = [0, 64], sizes = [16, 64], strides = [1, 1]} : vector<16x128xf32> to vector<16x64xf32>
    %297 = vector.extract_strided_slice %296 {offsets = [0, 0], sizes = [8, 64], strides = [1, 1]} : vector<16x64xf32> to vector<8x64xf32>
    %298 = vector.extract_strided_slice %296 {offsets = [8, 0], sizes = [8, 64], strides = [1, 1]} : vector<16x64xf32> to vector<8x64xf32>
    %299 = tpu.concatenate %297, %298 in 1 : vector<8x64xf32>, vector<8x64xf32> -> vector<8x128xf32>
    %cst_126 = arith.constant 0.000000e+00 : f32
    %300 = vector.broadcast %cst_126 : f32 to vector<3x128xf32>
    %301 = tpu.concatenate %300, %295 in 0 : vector<3x128xf32>, vector<8x128xf32> -> vector<11x128xf32>
    %302 = vector.extract_strided_slice %263 {offsets = [2, 0], sizes = [1, 128], strides = [1, 1]} : vector<32x128xf32> to vector<1x128xf32>
    %303 = vector.extract_strided_slice %301 {offsets = [0, 0], sizes = [8, 128], strides = [1, 1]} : vector<11x128xf32> to vector<8x128xf32>
    %304 = vector.extract_strided_slice %263 {offsets = [8, 0], sizes = [1, 128], strides = [1, 1]} : vector<32x128xf32> to vector<1x128xf32>
    %305 = vector.broadcast %304 : vector<1x128xf32> to vector<8x128xf32>
    %306 = arith.mulf %303, %305 : vector<8x128xf32>
    %307 = vector.broadcast %302 : vector<1x128xf32> to vector<8x128xf32>
    %308 = arith.addf %307, %306 : vector<8x128xf32>
    %309 = vector.extract_strided_slice %301 {offsets = [1, 0], sizes = [8, 128], strides = [1, 1]} : vector<11x128xf32> to vector<8x128xf32>
    %310 = vector.extract_strided_slice %263 {offsets = [9, 0], sizes = [1, 128], strides = [1, 1]} : vector<32x128xf32> to vector<1x128xf32>
    %311 = vector.broadcast %310 : vector<1x128xf32> to vector<8x128xf32>
    %312 = arith.mulf %309, %311 : vector<8x128xf32>
    %313 = arith.addf %308, %312 : vector<8x128xf32>
    %314 = vector.extract_strided_slice %301 {offsets = [2, 0], sizes = [8, 128], strides = [1, 1]} : vector<11x128xf32> to vector<8x128xf32>
    %315 = vector.extract_strided_slice %263 {offsets = [10, 0], sizes = [1, 128], strides = [1, 1]} : vector<32x128xf32> to vector<1x128xf32>
    %316 = vector.broadcast %315 : vector<1x128xf32> to vector<8x128xf32>
    %317 = arith.mulf %314, %316 : vector<8x128xf32>
    %318 = arith.addf %313, %317 : vector<8x128xf32>
    %319 = vector.extract_strided_slice %301 {offsets = [3, 0], sizes = [8, 128], strides = [1, 1]} : vector<11x128xf32> to vector<8x128xf32>
    %320 = vector.extract_strided_slice %263 {offsets = [11, 0], sizes = [1, 128], strides = [1, 1]} : vector<32x128xf32> to vector<1x128xf32>
    %321 = vector.broadcast %320 : vector<1x128xf32> to vector<8x128xf32>
    %322 = arith.mulf %319, %321 : vector<8x128xf32>
    %323 = arith.addf %318, %322 : vector<8x128xf32>
    %cst_127 = arith.constant 5.000000e-01 : f32
    %324 = vector.broadcast %cst_127 : f32 to vector<8x128xf32>
    %325 = arith.mulf %324, %323 : vector<8x128xf32>
    %326 = math.tanh %325 : vector<8x128xf32>
    %cst_128 = arith.constant 1.000000e+00 : f32
    %327 = vector.broadcast %cst_128 : f32 to vector<8x128xf32>
    %328 = arith.addf %326, %327 : vector<8x128xf32>
    %cst_129 = arith.constant 5.000000e-01 : f32
    %329 = vector.broadcast %cst_129 : f32 to vector<8x128xf32>
    %330 = arith.mulf %329, %328 : vector<8x128xf32>
    %331 = arith.mulf %323, %330 : vector<8x128xf32>
    %332 = vector.extract_strided_slice %331 {offsets = [0, 0], sizes = [8, 64], strides = [1, 1]} : vector<8x128xf32> to vector<8x64xf32>
    %333 = vector.extract_strided_slice %331 {offsets = [0, 64], sizes = [8, 64], strides = [1, 1]} : vector<8x128xf32> to vector<8x64xf32>
    %334 = tpu.concatenate %332, %333 in 0 : vector<8x64xf32>, vector<8x64xf32> -> vector<16x64xf32>
    %c2_130 = arith.constant 2 : index
    %c0_131 = arith.constant 0 : index
    %c0_132 = arith.constant 0 : index
    %335 = vector.load %arg6[%c2_130, %c0_131, %c0_132] : memref<4x64x128xf32, #tpu.memory_space<vmem>>, vector<1x64x128xf32>
    %336 = vector.shape_cast %335 : vector<1x64x128xf32> to vector<64x128xf32>
    %cst_133 = arith.constant dense<0.000000e+00> : vector<16x128xf32>
    %337 = tpu.matmul %334, %336, %cst_133 {dimension_numbers = #tpu.dot_dimension_numbers<[1], [0], [0], [1], [0, 0, 1, 1], [], []>} : vector<16x64xf32>, vector<64x128xf32>, vector<16x128xf32> -> vector<16x128xf32>
    %338 = vector.extract_strided_slice %337 {offsets = [0, 0], sizes = [16, 64], strides = [1, 1]} : vector<16x128xf32> to vector<16x64xf32>
    %339 = vector.extract_strided_slice %338 {offsets = [0, 0], sizes = [8, 64], strides = [1, 1]} : vector<16x64xf32> to vector<8x64xf32>
    %340 = vector.extract_strided_slice %338 {offsets = [8, 0], sizes = [8, 64], strides = [1, 1]} : vector<16x64xf32> to vector<8x64xf32>
    %341 = tpu.concatenate %339, %340 in 1 : vector<8x64xf32>, vector<8x64xf32> -> vector<8x128xf32>
    %342 = vector.extract_strided_slice %263 {offsets = [3, 0], sizes = [1, 128], strides = [1, 1]} : vector<32x128xf32> to vector<1x128xf32>
    %343 = vector.broadcast %342 : vector<1x128xf32> to vector<8x128xf32>
    %344 = arith.addf %341, %343 : vector<8x128xf32>
    %cst_134 = arith.constant 2.000000e+01 : f32
    %345 = vector.broadcast %cst_134 : f32 to vector<8x128xf32>
    %346 = arith.cmpf ogt, %344, %345 : vector<8x128xf32>
    %cst_135 = arith.constant 2.000000e+01 : f32
    %347 = vector.broadcast %cst_135 : f32 to vector<8x128xf32>
    %348 = arith.minimumf %344, %347 : vector<8x128xf32>
    %349 = math.exp %348 : vector<8x128xf32>
    %350 = math.log1p %349 : vector<8x128xf32>
    %351 = arith.select %346, %344, %350 : vector<8x128xi1>, vector<8x128xf32>
    %352 = vector.extract_strided_slice %337 {offsets = [0, 64], sizes = [16, 32], strides = [1, 1]} : vector<16x128xf32> to vector<16x32xf32>
    %c0_136 = arith.constant 0 : index
    %c0_137 = arith.constant 0 : index
    %353 = vector.load %arg7[%c0_136, %c0_137] : memref<16x1024xf32, #tpu.memory_space<vmem>>, vector<16x1024xf32>
    %cst_138 = arith.constant dense<0.000000e+00> : vector<32x1024xf32>
    %354 = tpu.matmul %352, %353, %cst_138 {dimension_numbers = #tpu.dot_dimension_numbers<[0], [0], [1], [1], [0, 1, 1, 1], [], []>} : vector<16x32xf32>, vector<16x1024xf32>, vector<32x1024xf32> -> vector<32x1024xf32>
    %c0_139 = arith.constant 0 : index
    %c0_140 = arith.constant 0 : index
    %355 = vector.load %arg9[%c0_139, %c0_140] : memref<32x1024xf32, #tpu.memory_space<vmem>>, vector<32x1024xf32>
    tpu.vector_store %arg9[%c0_139, %c0_140], %354 {strides = array<i32>} : memref<32x1024xf32, #tpu.memory_space<vmem>>, vector<32x1024xf32>,
    %356 = arith.mulf %351, %331 : vector<8x128xf32>
    %357 = vector.extract_strided_slice %263 {offsets = [16, 0], sizes = [16, 128], strides = [1, 1]} : vector<32x128xf32> to vector<16x128xf32>
    %358 = vector.extract_strided_slice %351 {offsets = [0, 0], sizes = [1, 128], strides = [1, 1]} : vector<8x128xf32> to vector<1x128xf32>
    %359 = vector.broadcast %358 : vector<1x128xf32> to vector<16x128xf32>
    %360 = arith.mulf %359, %357 : vector<16x128xf32>
    %361 = math.exp %360 : vector<16x128xf32>
    %c0_141 = arith.constant 0 : index
    %c0_142 = arith.constant 0 : index
    %362 = vector.load %arg10[%c0_141, %c0_142] : memref<16x1024xf32, #tpu.memory_space<vmem>>, vector<16x128xf32>
    tpu.vector_store %arg10[%c0_141, %c0_142], %361 {strides = array<i32>} : memref<16x1024xf32, #tpu.memory_space<vmem>>, vector<16x128xf32>,
    %363 = vector.extract_strided_slice %351 {offsets = [1, 0], sizes = [1, 128], strides = [1, 1]} : vector<8x128xf32> to vector<1x128xf32>
    %364 = vector.broadcast %363 : vector<1x128xf32> to vector<16x128xf32>
    %365 = arith.mulf %364, %357 : vector<16x128xf32>
    %366 = math.exp %365 : vector<16x128xf32>
    %c0_143 = arith.constant 0 : index
    %c128_144 = arith.constant 128 : index
    %367 = vector.load %arg10[%c0_143, %c128_144] : memref<16x1024xf32, #tpu.memory_space<vmem>>, vector<16x128xf32>
    tpu.vector_store %arg10[%c0_143, %c128_144], %366 {strides = array<i32>} : memref<16x1024xf32, #tpu.memory_space<vmem>>, vector<16x128xf32>,
    %368 = vector.extract_strided_slice %351 {offsets = [2, 0], sizes = [1, 128], strides = [1, 1]} : vector<8x128xf32> to vector<1x128xf32>
    %369 = vector.broadcast %368 : vector<1x128xf32> to vector<16x128xf32>
    %370 = arith.mulf %369, %357 : vector<16x128xf32>
    %371 = math.exp %370 : vector<16x128xf32>
    %c0_145 = arith.constant 0 : index
    %c256_146 = arith.constant 256 : index
    %372 = vector.load %arg10[%c0_145, %c256_146] : memref<16x1024xf32, #tpu.memory_space<vmem>>, vector<16x128xf32>
    tpu.vector_store %arg10[%c0_145, %c256_146], %371 {strides = array<i32>} : memref<16x1024xf32, #tpu.memory_space<vmem>>, vector<16x128xf32>,
    %373 = vector.extract_strided_slice %351 {offsets = [3, 0], sizes = [1, 128], strides = [1, 1]} : vector<8x128xf32> to vector<1x128xf32>
    %374 = vector.broadcast %373 : vector<1x128xf32> to vector<16x128xf32>
    %375 = arith.mulf %374, %357 : vector<16x128xf32>
    %376 = math.exp %375 : vector<16x128xf32>
    %c0_147 = arith.constant 0 : index
    %c384_148 = arith.constant 384 : index
    %377 = vector.load %arg10[%c0_147, %c384_148] : memref<16x1024xf32, #tpu.memory_space<vmem>>, vector<16x128xf32>
    tpu.vector_store %arg10[%c0_147, %c384_148], %376 {strides = array<i32>} : memref<16x1024xf32, #tpu.memory_space<vmem>>, vector<16x128xf32>,
    %378 = vector.extract_strided_slice %351 {offsets = [4, 0], sizes = [1, 128], strides = [1, 1]} : vector<8x128xf32> to vector<1x128xf32>
    %379 = vector.broadcast %378 : vector<1x128xf32> to vector<16x128xf32>
    %380 = arith.mulf %379, %357 : vector<16x128xf32>
    %381 = math.exp %380 : vector<16x128xf32>
    %c0_149 = arith.constant 0 : index
    %c512_150 = arith.constant 512 : index
    %382 = vector.load %arg10[%c0_149, %c512_150] : memref<16x1024xf32, #tpu.memory_space<vmem>>, vector<16x128xf32>
    tpu.vector_store %arg10[%c0_149, %c512_150], %381 {strides = array<i32>} : memref<16x1024xf32, #tpu.memory_space<vmem>>, vector<16x128xf32>,
    %383 = vector.extract_strided_slice %351 {offsets = [5, 0], sizes = [1, 128], strides = [1, 1]} : vector<8x128xf32> to vector<1x128xf32>
    %384 = vector.broadcast %383 : vector<1x128xf32> to vector<16x128xf32>
    %385 = arith.mulf %384, %357 : vector<16x128xf32>
    %386 = math.exp %385 : vector<16x128xf32>
    %c0_151 = arith.constant 0 : index
    %c640_152 = arith.constant 640 : index
    %387 = vector.load %arg10[%c0_151, %c640_152] : memref<16x1024xf32, #tpu.memory_space<vmem>>, vector<16x128xf32>
    tpu.vector_store %arg10[%c0_151, %c640_152], %386 {strides = array<i32>} : memref<16x1024xf32, #tpu.memory_space<vmem>>, vector<16x128xf32>,
    %388 = vector.extract_strided_slice %351 {offsets = [6, 0], sizes = [1, 128], strides = [1, 1]} : vector<8x128xf32> to vector<1x128xf32>
    %389 = vector.broadcast %388 : vector<1x128xf32> to vector<16x128xf32>
    %390 = arith.mulf %389, %357 : vector<16x128xf32>
    %391 = math.exp %390 : vector<16x128xf32>
    %c0_153 = arith.constant 0 : index
    %c768_154 = arith.constant 768 : index
    %392 = vector.load %arg10[%c0_153, %c768_154] : memref<16x1024xf32, #tpu.memory_space<vmem>>, vector<16x128xf32>
    tpu.vector_store %arg10[%c0_153, %c768_154], %391 {strides = array<i32>} : memref<16x1024xf32, #tpu.memory_space<vmem>>, vector<16x128xf32>,
    %393 = vector.extract_strided_slice %351 {offsets = [7, 0], sizes = [1, 128], strides = [1, 1]} : vector<8x128xf32> to vector<1x128xf32>
    %394 = vector.broadcast %393 : vector<1x128xf32> to vector<16x128xf32>
    %395 = arith.mulf %394, %357 : vector<16x128xf32>
    %396 = math.exp %395 : vector<16x128xf32>
    %c0_155 = arith.constant 0 : index
    %c896_156 = arith.constant 896 : index
    %397 = vector.load %arg10[%c0_155, %c896_156] : memref<16x1024xf32, #tpu.memory_space<vmem>>, vector<16x128xf32>
    tpu.vector_store %arg10[%c0_155, %c896_156], %396 {strides = array<i32>} : memref<16x1024xf32, #tpu.memory_space<vmem>>, vector<16x128xf32>,
    %cst_157 = arith.constant 0.000000e+00 : f32
    %398 = vector.broadcast %cst_157 : f32 to vector<16x128xf32>
    %c0_158 = arith.constant 0 : index
    %c0_159 = arith.constant 0 : index
    %399 = vector.load %arg9[%c0_158, %c0_159] : memref<32x1024xf32, #tpu.memory_space<vmem>>, vector<16x128xf32>
    %c16_160 = arith.constant 16 : index
    %c0_161 = arith.constant 0 : index
    %400 = vector.load %arg9[%c16_160, %c0_161] : memref<32x1024xf32, #tpu.memory_space<vmem>>, vector<16x128xf32>
    %c0_162 = arith.constant 0 : index
    %c0_163 = arith.constant 0 : index
    %401 = vector.load %arg10[%c0_162, %c0_163] : memref<16x1024xf32, #tpu.memory_space<vmem>>, vector<16x128xf32>
    %402 = arith.mulf %401, %398 : vector<16x128xf32>
    %403 = vector.extract_strided_slice %356 {offsets = [0, 0], sizes = [1, 128], strides = [1, 1]} : vector<8x128xf32> to vector<1x128xf32>
    %404 = vector.broadcast %403 : vector<1x128xf32> to vector<16x128xf32>
    %405 = arith.mulf %404, %399 : vector<16x128xf32>
    %406 = arith.addf %402, %405 : vector<16x128xf32>
    %407 = arith.mulf %406, %400 : vector<16x128xf32>
    %cst_164 = arith.constant dense<0.000000e+00> : vector<128xf32>
    %408 = vector.multi_reduction <add>, %407, %cst_164 [0] : vector<16x128xf32> to vector<128xf32>
    %409 = vector.shape_cast %408 : vector<128xf32> to vector<1x128xf32>
    %c0_165 = arith.constant 0 : index
    %c0_166 = arith.constant 0 : index
    %410 = vector.load %arg11[%c0_165, %c0_166] : memref<8x128xf32, #tpu.memory_space<vmem>>, vector<1x128xf32>
    tpu.vector_store %arg11[%c0_165, %c0_166], %409 {strides = array<i32>} : memref<8x128xf32, #tpu.memory_space<vmem>>, vector<1x128xf32>,
    %c0_167 = arith.constant 0 : index
    %c128_168 = arith.constant 128 : index
    %411 = vector.load %arg9[%c0_167, %c128_168] : memref<32x1024xf32, #tpu.memory_space<vmem>>, vector<16x128xf32>
    %c16_169 = arith.constant 16 : index
    %c128_170 = arith.constant 128 : index
    %412 = vector.load %arg9[%c16_169, %c128_170] : memref<32x1024xf32, #tpu.memory_space<vmem>>, vector<16x128xf32>
    %c0_171 = arith.constant 0 : index
    %c128_172 = arith.constant 128 : index
    %413 = vector.load %arg10[%c0_171, %c128_172] : memref<16x1024xf32, #tpu.memory_space<vmem>>, vector<16x128xf32>
    %414 = arith.mulf %413, %406 : vector<16x128xf32>
    %415 = vector.extract_strided_slice %356 {offsets = [1, 0], sizes = [1, 128], strides = [1, 1]} : vector<8x128xf32> to vector<1x128xf32>
    %416 = vector.broadcast %415 : vector<1x128xf32> to vector<16x128xf32>
    %417 = arith.mulf %416, %411 : vector<16x128xf32>
    %418 = arith.addf %414, %417 : vector<16x128xf32>
    %419 = arith.mulf %418, %412 : vector<16x128xf32>
    %cst_173 = arith.constant dense<0.000000e+00> : vector<128xf32>
    %420 = vector.multi_reduction <add>, %419, %cst_173 [0] : vector<16x128xf32> to vector<128xf32>
    %421 = vector.shape_cast %420 : vector<128xf32> to vector<1x128xf32>
    %c1_174 = arith.constant 1 : index
    %c0_175 = arith.constant 0 : index
    %422 = vector.load %arg11[%c1_174, %c0_175] : memref<8x128xf32, #tpu.memory_space<vmem>>, vector<1x128xf32>
    tpu.vector_store %arg11[%c1_174, %c0_175], %421 {strides = array<i32>} : memref<8x128xf32, #tpu.memory_space<vmem>>, vector<1x128xf32>,
    %c0_176 = arith.constant 0 : index
    %c256_177 = arith.constant 256 : index
    %423 = vector.load %arg9[%c0_176, %c256_177] : memref<32x1024xf32, #tpu.memory_space<vmem>>, vector<16x128xf32>
    %c16_178 = arith.constant 16 : index
    %c256_179 = arith.constant 256 : index
    %424 = vector.load %arg9[%c16_178, %c256_179] : memref<32x1024xf32, #tpu.memory_space<vmem>>, vector<16x128xf32>
    %c0_180 = arith.constant 0 : index
    %c256_181 = arith.constant 256 : index
    %425 = vector.load %arg10[%c0_180, %c256_181] : memref<16x1024xf32, #tpu.memory_space<vmem>>, vector<16x128xf32>
    %426 = arith.mulf %425, %418 : vector<16x128xf32>
    %427 = vector.extract_strided_slice %356 {offsets = [2, 0], sizes = [1, 128], strides = [1, 1]} : vector<8x128xf32> to vector<1x128xf32>
    %428 = vector.broadcast %427 : vector<1x128xf32> to vector<16x128xf32>
    %429 = arith.mulf %428, %423 : vector<16x128xf32>
    %430 = arith.addf %426, %429 : vector<16x128xf32>
    %431 = arith.mulf %430, %424 : vector<16x128xf32>
    %cst_182 = arith.constant dense<0.000000e+00> : vector<128xf32>
    %432 = vector.multi_reduction <add>, %431, %cst_182 [0] : vector<16x128xf32> to vector<128xf32>
    %433 = vector.shape_cast %432 : vector<128xf32> to vector<1x128xf32>
    %c2_183 = arith.constant 2 : index
    %c0_184 = arith.constant 0 : index
    %434 = vector.load %arg11[%c2_183, %c0_184] : memref<8x128xf32, #tpu.memory_space<vmem>>, vector<1x128xf32>
    tpu.vector_store %arg11[%c2_183, %c0_184], %433 {strides = array<i32>} : memref<8x128xf32, #tpu.memory_space<vmem>>, vector<1x128xf32>,
    %c0_185 = arith.constant 0 : index
    %c384_186 = arith.constant 384 : index
    %435 = vector.load %arg9[%c0_185, %c384_186] : memref<32x1024xf32, #tpu.memory_space<vmem>>, vector<16x128xf32>
    %c16_187 = arith.constant 16 : index
    %c384_188 = arith.constant 384 : index
    %436 = vector.load %arg9[%c16_187, %c384_188] : memref<32x1024xf32, #tpu.memory_space<vmem>>, vector<16x128xf32>
    %c0_189 = arith.constant 0 : index
    %c384_190 = arith.constant 384 : index
    %437 = vector.load %arg10[%c0_189, %c384_190] : memref<16x1024xf32, #tpu.memory_space<vmem>>, vector<16x128xf32>
    %438 = arith.mulf %437, %430 : vector<16x128xf32>
    %439 = vector.extract_strided_slice %356 {offsets = [3, 0], sizes = [1, 128], strides = [1, 1]} : vector<8x128xf32> to vector<1x128xf32>
    %440 = vector.broadcast %439 : vector<1x128xf32> to vector<16x128xf32>
    %441 = arith.mulf %440, %435 : vector<16x128xf32>
    %442 = arith.addf %438, %441 : vector<16x128xf32>
    %443 = arith.mulf %442, %436 : vector<16x128xf32>
    %cst_191 = arith.constant dense<0.000000e+00> : vector<128xf32>
    %444 = vector.multi_reduction <add>, %443, %cst_191 [0] : vector<16x128xf32> to vector<128xf32>
    %445 = vector.shape_cast %444 : vector<128xf32> to vector<1x128xf32>
    %c3_192 = arith.constant 3 : index
    %c0_193 = arith.constant 0 : index
    %446 = vector.load %arg11[%c3_192, %c0_193] : memref<8x128xf32, #tpu.memory_space<vmem>>, vector<1x128xf32>
    tpu.vector_store %arg11[%c3_192, %c0_193], %445 {strides = array<i32>} : memref<8x128xf32, #tpu.memory_space<vmem>>, vector<1x128xf32>,
    %c0_194 = arith.constant 0 : index
    %c512_195 = arith.constant 512 : index
    %447 = vector.load %arg9[%c0_194, %c512_195] : memref<32x1024xf32, #tpu.memory_space<vmem>>, vector<16x128xf32>
    %c16_196 = arith.constant 16 : index
    %c512_197 = arith.constant 512 : index
    %448 = vector.load %arg9[%c16_196, %c512_197] : memref<32x1024xf32, #tpu.memory_space<vmem>>, vector<16x128xf32>
    %c0_198 = arith.constant 0 : index
    %c512_199 = arith.constant 512 : index
    %449 = vector.load %arg10[%c0_198, %c512_199] : memref<16x1024xf32, #tpu.memory_space<vmem>>, vector<16x128xf32>
    %450 = arith.mulf %449, %442 : vector<16x128xf32>
    %451 = vector.extract_strided_slice %356 {offsets = [4, 0], sizes = [1, 128], strides = [1, 1]} : vector<8x128xf32> to vector<1x128xf32>
    %452 = vector.broadcast %451 : vector<1x128xf32> to vector<16x128xf32>
    %453 = arith.mulf %452, %447 : vector<16x128xf32>
    %454 = arith.addf %450, %453 : vector<16x128xf32>
    %455 = arith.mulf %454, %448 : vector<16x128xf32>
    %cst_200 = arith.constant dense<0.000000e+00> : vector<128xf32>
    %456 = vector.multi_reduction <add>, %455, %cst_200 [0] : vector<16x128xf32> to vector<128xf32>
    %457 = vector.shape_cast %456 : vector<128xf32> to vector<1x128xf32>
    %c4_201 = arith.constant 4 : index
    %c0_202 = arith.constant 0 : index
    %458 = vector.load %arg11[%c4_201, %c0_202] : memref<8x128xf32, #tpu.memory_space<vmem>>, vector<1x128xf32>
    tpu.vector_store %arg11[%c4_201, %c0_202], %457 {strides = array<i32>} : memref<8x128xf32, #tpu.memory_space<vmem>>, vector<1x128xf32>,
    %c0_203 = arith.constant 0 : index
    %c640_204 = arith.constant 640 : index
    %459 = vector.load %arg9[%c0_203, %c640_204] : memref<32x1024xf32, #tpu.memory_space<vmem>>, vector<16x128xf32>
    %c16_205 = arith.constant 16 : index
    %c640_206 = arith.constant 640 : index
    %460 = vector.load %arg9[%c16_205, %c640_206] : memref<32x1024xf32, #tpu.memory_space<vmem>>, vector<16x128xf32>
    %c0_207 = arith.constant 0 : index
    %c640_208 = arith.constant 640 : index
    %461 = vector.load %arg10[%c0_207, %c640_208] : memref<16x1024xf32, #tpu.memory_space<vmem>>, vector<16x128xf32>
    %462 = arith.mulf %461, %454 : vector<16x128xf32>
    %463 = vector.extract_strided_slice %356 {offsets = [5, 0], sizes = [1, 128], strides = [1, 1]} : vector<8x128xf32> to vector<1x128xf32>
    %464 = vector.broadcast %463 : vector<1x128xf32> to vector<16x128xf32>
    %465 = arith.mulf %464, %459 : vector<16x128xf32>
    %466 = arith.addf %462, %465 : vector<16x128xf32>
    %467 = arith.mulf %466, %460 : vector<16x128xf32>
    %cst_209 = arith.constant dense<0.000000e+00> : vector<128xf32>
    %468 = vector.multi_reduction <add>, %467, %cst_209 [0] : vector<16x128xf32> to vector<128xf32>
    %469 = vector.shape_cast %468 : vector<128xf32> to vector<1x128xf32>
    %c5_210 = arith.constant 5 : index
    %c0_211 = arith.constant 0 : index
    %470 = vector.load %arg11[%c5_210, %c0_211] : memref<8x128xf32, #tpu.memory_space<vmem>>, vector<1x128xf32>
    tpu.vector_store %arg11[%c5_210, %c0_211], %469 {strides = array<i32>} : memref<8x128xf32, #tpu.memory_space<vmem>>, vector<1x128xf32>,
    %c0_212 = arith.constant 0 : index
    %c768_213 = arith.constant 768 : index
    %471 = vector.load %arg9[%c0_212, %c768_213] : memref<32x1024xf32, #tpu.memory_space<vmem>>, vector<16x128xf32>
    %c16_214 = arith.constant 16 : index
    %c768_215 = arith.constant 768 : index
    %472 = vector.load %arg9[%c16_214, %c768_215] : memref<32x1024xf32, #tpu.memory_space<vmem>>, vector<16x128xf32>
    %c0_216 = arith.constant 0 : index
    %c768_217 = arith.constant 768 : index
    %473 = vector.load %arg10[%c0_216, %c768_217] : memref<16x1024xf32, #tpu.memory_space<vmem>>, vector<16x128xf32>
    %474 = arith.mulf %473, %466 : vector<16x128xf32>
    %475 = vector.extract_strided_slice %356 {offsets = [6, 0], sizes = [1, 128], strides = [1, 1]} : vector<8x128xf32> to vector<1x128xf32>
    %476 = vector.broadcast %475 : vector<1x128xf32> to vector<16x128xf32>
    %477 = arith.mulf %476, %471 : vector<16x128xf32>
    %478 = arith.addf %474, %477 : vector<16x128xf32>
    %479 = arith.mulf %478, %472 : vector<16x128xf32>
    %cst_218 = arith.constant dense<0.000000e+00> : vector<128xf32>
    %480 = vector.multi_reduction <add>, %479, %cst_218 [0] : vector<16x128xf32> to vector<128xf32>
    %481 = vector.shape_cast %480 : vector<128xf32> to vector<1x128xf32>
    %c6_219 = arith.constant 6 : index
    %c0_220 = arith.constant 0 : index
    %482 = vector.load %arg11[%c6_219, %c0_220] : memref<8x128xf32, #tpu.memory_space<vmem>>, vector<1x128xf32>
    tpu.vector_store %arg11[%c6_219, %c0_220], %481 {strides = array<i32>} : memref<8x128xf32, #tpu.memory_space<vmem>>, vector<1x128xf32>,
    %c0_221 = arith.constant 0 : index
    %c896_222 = arith.constant 896 : index
    %483 = vector.load %arg9[%c0_221, %c896_222] : memref<32x1024xf32, #tpu.memory_space<vmem>>, vector<16x128xf32>
    %c16_223 = arith.constant 16 : index
    %c896_224 = arith.constant 896 : index
    %484 = vector.load %arg9[%c16_223, %c896_224] : memref<32x1024xf32, #tpu.memory_space<vmem>>, vector<16x128xf32>
    %c0_225 = arith.constant 0 : index
    %c896_226 = arith.constant 896 : index
    %485 = vector.load %arg10[%c0_225, %c896_226] : memref<16x1024xf32, #tpu.memory_space<vmem>>, vector<16x128xf32>
    %486 = arith.mulf %485, %478 : vector<16x128xf32>
    %487 = vector.extract_strided_slice %356 {offsets = [7, 0], sizes = [1, 128], strides = [1, 1]} : vector<8x128xf32> to vector<1x128xf32>
    %488 = vector.broadcast %487 : vector<1x128xf32> to vector<16x128xf32>
    %489 = arith.mulf %488, %483 : vector<16x128xf32>
    %490 = arith.addf %486, %489 : vector<16x128xf32>
    %491 = arith.mulf %490, %484 : vector<16x128xf32>
    %cst_227 = arith.constant dense<0.000000e+00> : vector<128xf32>
    %492 = vector.multi_reduction <add>, %491, %cst_227 [0] : vector<16x128xf32> to vector<128xf32>
    %493 = vector.shape_cast %492 : vector<128xf32> to vector<1x128xf32>
    %c7_228 = arith.constant 7 : index
    %c0_229 = arith.constant 0 : index
    %494 = vector.load %arg11[%c7_228, %c0_229] : memref<8x128xf32, #tpu.memory_space<vmem>>, vector<1x128xf32>
    tpu.vector_store %arg11[%c7_228, %c0_229], %493 {strides = array<i32>} : memref<8x128xf32, #tpu.memory_space<vmem>>, vector<1x128xf32>,
    %c0_230 = arith.constant 0 : index
    %c0_231 = arith.constant 0 : index
    %495 = vector.load %arg11[%c0_230, %c0_231] : memref<8x128xf32, #tpu.memory_space<vmem>>, vector<8x128xf32>
    %496 = vector.extract_strided_slice %263 {offsets = [4, 0], sizes = [1, 128], strides = [1, 1]} : vector<32x128xf32> to vector<1x128xf32>
    %497 = vector.broadcast %496 : vector<1x128xf32> to vector<8x128xf32>
    %498 = arith.mulf %331, %497 : vector<8x128xf32>
    %499 = arith.addf %495, %498 : vector<8x128xf32>
    %cst_232 = arith.constant 5.000000e-01 : f32
    %500 = vector.broadcast %cst_232 : f32 to vector<8x128xf32>
    %501 = arith.mulf %500, %299 : vector<8x128xf32>
    %502 = math.tanh %501 : vector<8x128xf32>
    %cst_233 = arith.constant 1.000000e+00 : f32
    %503 = vector.broadcast %cst_233 : f32 to vector<8x128xf32>
    %504 = arith.addf %502, %503 : vector<8x128xf32>
    %cst_234 = arith.constant 5.000000e-01 : f32
    %505 = vector.broadcast %cst_234 : f32 to vector<8x128xf32>
    %506 = arith.mulf %505, %504 : vector<8x128xf32>
    %507 = arith.mulf %299, %506 : vector<8x128xf32>
    %508 = arith.mulf %499, %507 : vector<8x128xf32>
    %509 = vector.extract_strided_slice %508 {offsets = [0, 0], sizes = [8, 64], strides = [1, 1]} : vector<8x128xf32> to vector<8x64xf32>
    %510 = vector.extract_strided_slice %508 {offsets = [0, 64], sizes = [8, 64], strides = [1, 1]} : vector<8x128xf32> to vector<8x64xf32>
    %511 = tpu.concatenate %509, %510 in 0 : vector<8x64xf32>, vector<8x64xf32> -> vector<16x64xf32>
    %c3_235 = arith.constant 3 : index
    %c0_236 = arith.constant 0 : index
    %c0_237 = arith.constant 0 : index
    %512 = vector.load %arg6[%c3_235, %c0_236, %c0_237] : memref<4x64x128xf32, #tpu.memory_space<vmem>>, vector<1x64x128xf32>
    %513 = vector.shape_cast %512 : vector<1x64x128xf32> to vector<64x128xf32>
    %cst_238 = arith.constant dense<0.000000e+00> : vector<16x128xf32>
    %514 = tpu.matmul %511, %513, %cst_238 {dimension_numbers = #tpu.dot_dimension_numbers<[1], [0], [0], [1], [0, 0, 1, 1], [], []>} : vector<16x64xf32>, vector<64x128xf32>, vector<16x128xf32> -> vector<16x128xf32>
    %515 = arith.addf %514, %264 : vector<16x128xf32>
    %c0_239 = arith.constant 0 : index
    %c0_240 = arith.constant 0 : index
    %516 = vector.load %arg3[%c0_239, %c0_240] : memref<8x128xf32, #tpu.memory_space<vmem>>, vector<8x128xf32>
    %517 = vector.extract_strided_slice %516 {offsets = [0, 0], sizes = [1, 128], strides = [1, 1]} : vector<8x128xf32> to vector<1x128xf32>
    %518 = vector.extract_strided_slice %516 {offsets = [1, 0], sizes = [1, 128], strides = [1, 1]} : vector<8x128xf32> to vector<1x128xf32>
    %cst_241 = arith.constant dense<0.000000e+00> : vector<16xf32>
    %519 = vector.multi_reduction <add>, %515, %cst_241 [1] : vector<16x128xf32> to vector<16xf32>
    %520 = vector.shape_cast %519 : vector<16xf32> to vector<16x1xf32>
    %cst_242 = arith.constant 3.125000e-02 : f32
    %521 = vector.broadcast %cst_242 : f32 to vector<16x1xf32>
    %522 = arith.mulf %520, %521 : vector<16x1xf32>
    %523 = arith.mulf %515, %515 : vector<16x128xf32>
    %cst_243 = arith.constant dense<0.000000e+00> : vector<16xf32>
    %524 = vector.multi_reduction <add>, %523, %cst_243 [1] : vector<16x128xf32> to vector<16xf32>
    %525 = vector.shape_cast %524 : vector<16xf32> to vector<16x1xf32>
    %cst_244 = arith.constant 3.125000e-02 : f32
    %526 = vector.broadcast %cst_244 : f32 to vector<16x1xf32>
    %527 = arith.mulf %525, %526 : vector<16x1xf32>
    %528 = arith.mulf %522, %522 : vector<16x1xf32>
    %529 = arith.subf %527, %528 : vector<16x1xf32>
    %530 = vector.broadcast %522 : vector<16x1xf32> to vector<16x128xf32>
    %531 = arith.subf %515, %530 : vector<16x128xf32>
    %cst_245 = arith.constant 9.99999974E-6 : f32
    %532 = vector.broadcast %cst_245 : f32 to vector<16x1xf32>
    %533 = arith.addf %529, %532 : vector<16x1xf32>
    %534 = math.rsqrt %533 : vector<16x1xf32>
    %535 = vector.broadcast %534 : vector<16x1xf32> to vector<16x128xf32>
    %536 = arith.mulf %531, %535 : vector<16x128xf32>
    %537 = vector.broadcast %517 : vector<1x128xf32> to vector<16x128xf32>
    %538 = arith.mulf %536, %537 : vector<16x128xf32>
    %539 = vector.broadcast %518 : vector<1x128xf32> to vector<16x128xf32>
    %540 = arith.addf %538, %539 : vector<16x128xf32>
    %c0_246 = arith.constant 0 : index
    %c0_247 = arith.constant 0 : index
    %541 = vector.load %arg2[%c0_246, %c0_247] : memref<128x128xf32, #tpu.memory_space<vmem>>, vector<128x128xf32>
    %cst_248 = arith.constant dense<0.000000e+00> : vector<16x128xf32>
    %542 = tpu.matmul %540, %541, %cst_248 {dimension_numbers = #tpu.dot_dimension_numbers<[1], [0], [0], [1], [0, 0, 1, 1], [], []>} : vector<16x128xf32>, vector<128x128xf32>, vector<16x128xf32> -> vector<16x128xf32>
    %c0_249 = arith.constant 0 : index
    %c0_250 = arith.constant 0 : index
    %543 = vector.load %arg8[%c0_249, %c0_250] : memref<16x128xf32, #tpu.memory_space<vmem>>, vector<16x128xf32>
    tpu.vector_store %arg8[%c0_249, %c0_250], %542 {strides = array<i32>} : memref<16x128xf32, #tpu.memory_space<vmem>>, vector<16x128xf32>,
    return
  }
}

</mosaic_0001>

<llo_original>
// kernel: forward.1
$region0: #{forward.1}
  #allocation0 [shape = 'u32[]', space=smem, size = 0x4, offset = 0x4, fixed_abs, tag = 'smem constant byte address 0x4 - core index']
  #allocation1 [shape = 'u32[144,128]{1,0:T(1,128)}', space=vmem, size = 0x12000, scoped, tag = 'internal scratch']
  #allocation2 [shape = 'f32[32,1024]{1,0:T(8,128)}', space=vmem, size = 0x20000, scoped, tag = 'scratch operand']
  #allocation3 [shape = 'f32[16,1024]{1,0:T(8,128)}', space=vmem, size = 0x10000, scoped, tag = 'scratch operand']
  #allocation4 [shape = 'f32[8,128]{1,0:T(8,128)}', space=vmem, size = 0x1000, scoped, tag = 'scratch operand']
  %s0 = inlined_call_operand.vmem [shape: s32[16,1], index: 0, kind: input, shape index: {}]
  %s1 = inlined_call_operand.hbm [shape: f32[48,128], index: 1, kind: input, shape index: {}]
  %s2 = inlined_call_operand.hbm [shape: f32[128,128], index: 2, kind: input, shape index: {}]
  %s3 = inlined_call_operand.vmem [shape: f32[8,128], index: 3, kind: input, shape index: {}]
  %s4 = inlined_call_operand.hbm [shape: f32[2,32,128], index: 4, kind: input, shape index: {}]
  %s5 = inlined_call_operand.hbm [shape: f32[2,128,128], index: 5, kind: input, shape index: {}]
  %s6 = inlined_call_operand.hbm [shape: f32[4,64,128], index: 6, kind: input, shape index: {}]
  %s7 = inlined_call_operand.hbm [shape: f32[16,1024], index: 7, kind: input, shape index: {}]
  %s8 = inlined_call_operand.vmem [shape: f32[16,128], index: 8, kind: output, shape index: {}]
  %s9 = sld [smem:[#allocation0]]
  $region66: #{forward.1} parent=0
    _
  %s11 = ssub.s32 1, %s9
  %s12 = scalar_select 0, %s11, %s9
  $region1: #{forward.1} parent=0
    #allocation5 [shape = 'u8[24576]{0}', space=vmem, size = 0x6000, scoped, tag = 'input window, operand 1, single buffered']
    #allocation6 [shape = 's32[1]{0}', space=sflag, size = 0x4, scoped, tag = 'scoped memory for forward.1']
    #allocation7 [shape = 'u8[65536]{0}', space=vmem, size = 0x10000, scoped, tag = 'input window, operand 2, single buffered']
    #allocation8 [shape = 's32[1]{0}', space=sflag, size = 0x4, scoped, tag = 'scoped memory for forward.1']
    #allocation9 [shape = 'u8[32768]{0}', space=vmem, size = 0x8000, scoped, tag = 'input window, operand 4, single buffered']
    #allocation10 [shape = 'u8[131072]{0}', space=vmem, size = 0x20000, scoped, tag = 'input window, operand 5, single buffered']
    #allocation11 [shape = 's32[1]{0}', space=sflag, size = 0x4, scoped, tag = 'scoped memory for forward.1']
    #allocation12 [shape = 'u8[131072]{0}', space=vmem, size = 0x20000, scoped, tag = 'input window, operand 6, single buffered']
    #allocation13 [shape = 'u8[65536]{0}', space=vmem, size = 0x10000, scoped, tag = 'input window, operand 7, single buffered']
    #allocation14 [shape = 's32[1]{0}', space=sflag, size = 0x4, scoped, tag = 'scoped memory for forward.1']
    %13 = vsyncpa [#allocation6], 0
    %14 = vsyncpa [#allocation8], 0
    %15 = vsyncpa [#allocation11], 0
    %16 = vsyncpa [#allocation14], 0
    // Predicated region
    $region2: #{forward.1} parent=1 // pred_check
      _
    $region3: #{forward.1} parent=1 // pred_check_branch
      %18 = sbr.rel (0) target = $region5
    $region4: #{forward.1} parent=1 // pred_region
      _
    $region5: #{forward.1} parent=1 // pred_fallthru
      _
    // Predicated region
    $region6: #{forward.1} parent=1 // pred_check
      _
    $region7: #{forward.1} parent=1 // pred_check_branch
      %20 = sbr.rel (0) target = $region9
    $region8: #{forward.1} parent=1 // pred_region
      %s22 = ssub.s32 768, 768
      %23 = vsyncadd [#allocation6], %s22
      %s24 = sshll.u32 [#allocation5], 4
      %s25 = int_to_ptr.vmem [resolvable:$true] %s24
      %30 = dma.hbm_to_vmem [thread:$0]  %s1, 768, %s25, [#allocation6], 128, 128, 8
    $region9: #{forward.1} parent=1 // pred_fallthru
      _
    // Predicated region
    $region10: #{forward.1} parent=1 // pred_check
      _
    $region11: #{forward.1} parent=1 // pred_check_branch
      %32 = sbr.rel (0) target = $region13
    $region12: #{forward.1} parent=1 // pred_region
      %s34 = ssub.s32 2048, 2048
      %35 = vsyncadd [#allocation8], %s34
      %s36 = sshll.u32 [#allocation7], 4
      %s37 = int_to_ptr.vmem [resolvable:$true] %s36
      %42 = dma.hbm_to_vmem [thread:$0]  %s2, 2048, %s37, [#allocation8], 128, 128, 8
    $region13: #{forward.1} parent=1 // pred_fallthru
      _
    // Predicated region
    $region14: #{forward.1} parent=1 // pred_check
      _
    $region15: #{forward.1} parent=1 // pred_check_branch
      %44 = sbr.rel (0) target = $region17
    $region16: #{forward.1} parent=1 // pred_region
      _
    $region17: #{forward.1} parent=1 // pred_fallthru
      _
    // Predicated region
    $region18: #{forward.1} parent=1 // pred_check
      _
    $region19: #{forward.1} parent=1 // pred_check_branch
      %46 = sbr.rel (0) target = $region21
    $region20: #{forward.1} parent=1 // pred_region
      %s48 = ssub.s32 1024, 1024
      %49 = vsyncadd [#allocation8], %s48
      %s50 = sshll.u32 [#allocation9], 4
      %s51 = int_to_ptr.vmem [resolvable:$true] %s50
      %56 = dma.hbm_to_vmem [thread:$0]  %s4, 1024, %s51, [#allocation8], 128, 128, 8
    $region21: #{forward.1} parent=1 // pred_fallthru
      _
    // Predicated region
    $region22: #{forward.1} parent=1 // pred_check
      _
    $region23: #{forward.1} parent=1 // pred_check_branch
      %58 = sbr.rel (0) target = $region25
    $region24: #{forward.1} parent=1 // pred_region
      %s60 = ssub.s32 4096, 4096
      %61 = vsyncadd [#allocation11], %s60
      %s62 = sshll.u32 [#allocation10], 4
      %s63 = int_to_ptr.vmem [resolvable:$true] %s62
      %68 = dma.hbm_to_vmem [thread:$0]  %s5, 4096, %s63, [#allocation11], 128, 128, 8
    $region25: #{forward.1} parent=1 // pred_fallthru
      _
    // Predicated region
    $region26: #{forward.1} parent=1 // pred_check
      _
    $region27: #{forward.1} parent=1 // pred_check_branch
      %70 = sbr.rel (0) target = $region29
    $region28: #{forward.1} parent=1 // pred_region
      %s72 = ssub.s32 4096, 4096
      %73 = vsyncadd [#allocation11], %s72
      %s74 = sshll.u32 [#allocation12], 4
      %s75 = int_to_ptr.vmem [resolvable:$true] %s74
      %80 = dma.hbm_to_vmem [thread:$0]  %s6, 4096, %s75, [#allocation11], 128, 128, 8
    $region29: #{forward.1} parent=1 // pred_fallthru
      _
    // Predicated region
    $region30: #{forward.1} parent=1 // pred_check
      _
    $region31: #{forward.1} parent=1 // pred_check_branch
      %82 = sbr.rel (0) target = $region33
    $region32: #{forward.1} parent=1 // pred_region
      %s84 = ssub.s32 2048, 2048
      %85 = vsyncadd [#allocation14], %s84
      %s86 = sshll.u32 [#allocation13], 4
      %s87 = int_to_ptr.vmem [resolvable:$true] %s86
      %92 = dma.hbm_to_vmem [thread:$0]  %s7, 2048, %s87, [#allocation14], 1024, 1024, 64
    $region33: #{forward.1} parent=1 // pred_fallthru
      _
    // Predicated region
    $region34: #{forward.1} parent=1 // pred_check
      _
    $region35: #{forward.1} parent=1 // pred_check_branch
      %94 = sbr.rel (0) target = $region37
    $region36: #{forward.1} parent=1 // pred_region
      %95 = dma.done [#allocation6], 768
    $region37: #{forward.1} parent=1 // pred_fallthru
      _
    // Predicated region
    $region38: #{forward.1} parent=1 // pred_check
      _
    $region39: #{forward.1} parent=1 // pred_check_branch
      %97 = sbr.rel (0) target = $region41
    $region40: #{forward.1} parent=1 // pred_region
      %98 = dma.done [#allocation8], 2048
    $region41: #{forward.1} parent=1 // pred_fallthru
      _
    // Predicated region
    $region42: #{forward.1} parent=1 // pred_check
      _
    $region43: #{forward.1} parent=1 // pred_check_branch
      %100 = sbr.rel (0) target = $region45
    $region44: #{forward.1} parent=1 // pred_region
      %101 = dma.done [#allocation8], 1024
    $region45: #{forward.1} parent=1 // pred_fallthru
      _
    // Predicated region
    $region46: #{forward.1} parent=1 // pred_check
      _
    $region47: #{forward.1} parent=1 // pred_check_branch
      %103 = sbr.rel (0) target = $region49
    $region48: #{forward.1} parent=1 // pred_region
      %104 = dma.done [#allocation11], 4096
    $region49: #{forward.1} parent=1 // pred_fallthru
      _
    // Predicated region
    $region50: #{forward.1} parent=1 // pred_check
      _
    $region51: #{forward.1} parent=1 // pred_check_branch
      %106 = sbr.rel (0) target = $region53
    $region52: #{forward.1} parent=1 // pred_region
      %107 = dma.done [#allocation11], 4096
    $region53: #{forward.1} parent=1 // pred_fallthru
      _
    // Predicated region
    $region54: #{forward.1} parent=1 // pred_check
      _
    $region55: #{forward.1} parent=1 // pred_check_branch
      %109 = sbr.rel (0) target = $region57
    $region56: #{forward.1} parent=1 // pred_region
      %110 = dma.done [#allocation14], 2048
    $region57: #{forward.1} parent=1 // pred_fallthru
      _
    %v111 = vld [vmem:[%s0] sm:$0xff]
    %v112 = vld [vmem:[%s0 + $0x8] sm:$0xff]
    %v113 = vlaneseq
    %v114 = vand.u32 %v113, 127
    %115 = vset.pattern.permute.xlu0 0
    %116 = vperm.xlu0 %115, %v111
    %v117 = vpop.permute.xlu0 %116
    %118 = vset.pattern.permute.xlu0 0
    %119 = vperm.xlu0 %118, %v112
    %v120 = vpop.permute.xlu0 %119
    %vm121 = vcmp.eq.s32.totalorder %v117, %v114
    %vm122 = vcmp.eq.s32.totalorder %v120, %v114
    %v123 = vsel %vm121, 1, 0
    %v124 = vsel %vm122, 1, 0
    %v125 = vcvt.s32.f32 %v123
    %v126 = vcvt.s32.f32 %v124
    %v127 = vld [vmem:[#allocation5] sm:$0xff]
    %v128 = vld [vmem:[#allocation5 + $0x8] sm:$0xff]
    %v129 = vld [vmem:[#allocation5 + $0x10] sm:$0xff]
    %v130 = vld [vmem:[#allocation5 + $0x18] sm:$0xff]
    %v131 = vld [vmem:[#allocation5 + $0x20] sm:$0xff]
    %v132 = vld [vmem:[#allocation5 + $0x28] sm:$0xff]
    %v133 = vld [vmem:[#allocation9] sm:$0xff]
    %v134 = vld [vmem:[#allocation9 + $0x8] sm:$0xff]
    %v135 = vld [vmem:[#allocation9 + $0x10] sm:$0xff]
    %v136 = vld [vmem:[#allocation9 + $0x18] sm:$0xff]
    %vm137 = vcmask 392192
    %v139 = vsel %vm137, %v125, 0
    %v142 = vsel %vm137, %v126, 0
    %144 = vmatprep.subr.mxu0 0.0
    %145 = vmatpush1.msra.mxu0 %v127
    %146 = vmatprep.subr.mxu0 0.0
    %147 = vmatpush1.msra.mxu0 %v128
    %148 = vmatprep.subr.mxu0 0.0
    %149 = vmatpush1.msra.mxu0 %v129
    %150 = vmatprep.subr.mxu0 0.0
    %151 = vmatpush1.msra.mxu0 %v130
    %152 = vmatprep.subr.mxu0 0.0
    %153 = vmatpush1.msra.mxu0 %v131
    %154 = vmatprep.subr.mxu0 0.0
    %155 = vmatpush1.msra.mxu0 %v132
    %156 = vmatprep.subr.mxu0 0.0
    %157 = vmatpush1.msra.mxu0 0.0
    %158 = vmatprep.subr.mxu0 0.0
    %159 = vmatpush1.msra.mxu0 0.0
    %160 = vmatprep.subr.mxu0 0.0
    %161 = vmatpush1.msra.mxu0 0.0
    %162 = vmatprep.subr.mxu0 0.0
    %163 = vmatpush1.msra.mxu0 0.0
    %164 = vmatprep.subr.mxu0 0.0
    %165 = vmatpush1.msra.mxu0 0.0
    %166 = vmatprep.subr.mxu0 0.0
    %167 = vmatpush1.msra.mxu0 0.0
    %168 = vmatprep.subr.mxu0 0.0
    %169 = vmatpush1.msra.mxu0 0.0
    %170 = vmatprep.subr.mxu0 0.0
    %171 = vmatpush1.msra.mxu0 0.0
    %172 = vmatprep.subr.mxu0 0.0
    %173 = vmatpush1.msra.mxu0 0.0
    %174 = vmatprep.subr.mxu0 0.0
    %175 = vmatpush1.msra.mxu0 0.0
    %176 = vmatprep.subr.mxu0 0.0
    %177 = vmatpush1.msra.mxu0 0.0
    %178 = vmatprep.subr.mxu0 0.0
    %179 = vmatpush1.msra.mxu0 0.0
    %180 = vmatprep.subr.mxu0 0.0
    %181 = vmatpush1.msra.mxu0 0.0
    %182 = vmatprep.subr.mxu0 0.0
    %183 = vmatpush1.msra.mxu0 0.0
    %184 = vmatprep.subr.mxu0 0.0
    %185 = vmatpush1.msra.mxu0 0.0
    %186 = vmatprep.subr.mxu0 0.0
    %187 = vmatpush1.msra.mxu0 0.0
    %188 = vmatprep.subr.mxu0 0.0
    %189 = vmatpush1.msra.mxu0 0.0
    %190 = vmatprep.subr.mxu0 0.0
    %191 = vmatpush1.msra.mxu0 0.0
    %192 = vmatprep.subr.mxu0 0.0
    %193 = vmatpush1.msra.mxu0 0.0
    %194 = vmatprep.subr.mxu0 0.0
    %195 = vmatpush1.msra.mxu0 0.0
    %196 = vmatprep.subr.mxu0 0.0
    %197 = vmatpush1.msra.mxu0 0.0
    %198 = vmatprep.subr.mxu0 0.0
    %199 = vmatpush1.msra.mxu0 0.0
    %200 = vmatprep.subr.mxu0 0.0
    %201 = vmatpush1.msra.mxu0 0.0
    %202 = vmatprep.subr.mxu0 0.0
    %203 = vmatpush1.msra.mxu0 0.0
    %204 = vmatprep.subr.mxu0 0.0
    %205 = vmatpush1.msra.mxu0 0.0
    %206 = vmatprep.subr.mxu0 0.0
    %207 = vmatpush1.msra.mxu0 0.0
    %208 = vmatprep.mubr.f32.mxu0 0.0
    %209 = vmatmul.mubr.f32.gmra.mrb[0].mxu0 %v139
    %v210 = vpop.f32.mrb[0].mxu0
    %v211 = vadd.f32 0.0, %v210
    %v212 = vpop.f32.mrb[0].mxu0
    %213 = vmatprep.mubr.f32.mxu0 0.0
    %214 = vmatmul.mubr.f32.gmra.mrb[0].mxu0 %v142
    %v215 = vpop.f32.mrb[0].mxu0
    %v216 = vadd.f32 0.0, %v215
    %v217 = vpop.f32.mrb[0].mxu0
    %218 = vdwg.mxu0
    %219 = vadd.xlane.f32.xlu0 %v211
    %v220 = vpop.xlane.xlu0 %219
    %221 = vadd.xlane.f32.xlu0 %v216
    %v222 = vpop.xlane.xlu0 %221
    %v223 = vmul.f32 %v220, 0.03125
    %v224 = vmul.f32 %v222, 0.03125
    %v225 = vmul.f32 %v211, %v211
    %v226 = vmul.f32 %v216, %v216
    %227 = vadd.xlane.f32.xlu0 %v225
    %v228 = vpop.xlane.xlu0 %227
    %229 = vadd.xlane.f32.xlu0 %v226
    %v230 = vpop.xlane.xlu0 %229
    %v231 = vmul.f32 %v228, 0.03125
    %v232 = vmul.f32 %v230, 0.03125
    %v233 = vmul.f32 %v223, %v223
    %v234 = vmul.f32 %v224, %v224
    %v235 = vsub.f32 %v231, %v233
    %v236 = vsub.f32 %v232, %v234
    %v237 = vsub.f32 %v211, %v223
    %v238 = vsub.f32 %v216, %v224
    %v239 = vadd.f32 %v235, 1e-05
    %v240 = vadd.f32 %v236, 1e-05
    %v241 = vrsqrt.pop %v239
    %v242 = vrsqrt.pop %v240
    %v243 = vmul.f32 %v237, %v241
    %v244 = vmul.f32 %v238, %v242
    %v245 = vlaneseq
    %v246 = vshrl.u32 %v245, 7
    %v247 = vsub.s32 0, %v246
    %v248 = vrot.slane %v133, %v247
    %v249 = vmul.f32 %v243, %v248
    %v250 = vmul.f32 %v244, %v248
    %v251 = vlaneseq
    %v252 = vshrl.u32 %v251, 7
    %v253 = vsub.s32 1, %v252
    %v254 = vrot.slane %v133, %v253
    %v255 = vadd.f32 %v249, %v254
    %v256 = vadd.f32 %v250, %v254
    %v257 = vld [vmem:[#allocation10] sm:$0xff]
    %v258 = vld [vmem:[#allocation10 + $0x8] sm:$0xff]
    %v259 = vld [vmem:[#allocation10 + $0x10] sm:$0xff]
    %v260 = vld [vmem:[#allocation10 + $0x18] sm:$0xff]
    %v261 = vld [vmem:[#allocation10 + $0x20] sm:$0xff]
    %v262 = vld [vmem:[#allocation10 + $0x28] sm:$0xff]
    %v263 = vld [vmem:[#allocation10 + $0x30] sm:$0xff]
    %v264 = vld [vmem:[#allocation10 + $0x38] sm:$0xff]
    %v265 = vld [vmem:[#allocation10 + $0x40] sm:$0xff]
    %v266 = vld [vmem:[#allocation10 + $0x48] sm:$0xff]
    %v267 = vld [vmem:[#allocation10 + $0x50] sm:$0xff]
    %v268 = vld [vmem:[#allocation10 + $0x58] sm:$0xff]
    %v269 = vld [vmem:[#allocation10 + $0x60] sm:$0xff]
    %v270 = vld [vmem:[#allocation10 + $0x68] sm:$0xff]
    %v271 = vld [vmem:[#allocation10 + $0x70] sm:$0xff]
    %v272 = vld [vmem:[#allocation10 + $0x78] sm:$0xff]
    %273 = vmatprep.subr.mxu0 0.0
    %274 = vmatpush1.msra.mxu0 %v257
    %275 = vmatprep.subr.mxu0 0.0
    %276 = vmatpush1.msra.mxu0 %v258
    %277 = vmatprep.subr.mxu0 0.0
    %278 = vmatpush1.msra.mxu0 %v259
    %279 = vmatprep.subr.mxu0 0.0
    %280 = vmatpush1.msra.mxu0 %v260
    %281 = vmatprep.subr.mxu0 0.0
    %282 = vmatpush1.msra.mxu0 %v261
    %283 = vmatprep.subr.mxu0 0.0
    %284 = vmatpush1.msra.mxu0 %v262
    %285 = vmatprep.subr.mxu0 0.0
    %286 = vmatpush1.msra.mxu0 %v263
    %287 = vmatprep.subr.mxu0 0.0
    %288 = vmatpush1.msra.mxu0 %v264
    %289 = vmatprep.subr.mxu0 0.0
    %290 = vmatpush1.msra.mxu0 %v265
    %291 = vmatprep.subr.mxu0 0.0
    %292 = vmatpush1.msra.mxu0 %v266
    %293 = vmatprep.subr.mxu0 0.0
    %294 = vmatpush1.msra.mxu0 %v267
    %295 = vmatprep.subr.mxu0 0.0
    %296 = vmatpush1.msra.mxu0 %v268
    %297 = vmatprep.subr.mxu0 0.0
    %298 = vmatpush1.msra.mxu0 %v269
    %299 = vmatprep.subr.mxu0 0.0
    %300 = vmatpush1.msra.mxu0 %v270
    %301 = vmatprep.subr.mxu0 0.0
    %302 = vmatpush1.msra.mxu0 %v271
    %303 = vmatprep.subr.mxu0 0.0
    %304 = vmatpush1.msra.mxu0 %v272
    %305 = vmatprep.subr.mxu0 0.0
    %306 = vmatpush1.msra.mxu0 0.0
    %307 = vmatprep.subr.mxu0 0.0
    %308 = vmatpush1.msra.mxu0 0.0
    %309 = vmatprep.subr.mxu0 0.0
    %310 = vmatpush1.msra.mxu0 0.0
    %311 = vmatprep.subr.mxu0 0.0
    %312 = vmatpush1.msra.mxu0 0.0
    %313 = vmatprep.subr.mxu0 0.0
    %314 = vmatpush1.msra.mxu0 0.0
    %315 = vmatprep.subr.mxu0 0.0
    %316 = vmatpush1.msra.mxu0 0.0
    %317 = vmatprep.subr.mxu0 0.0
    %318 = vmatpush1.msra.mxu0 0.0
    %319 = vmatprep.subr.mxu0 0.0
    %320 = vmatpush1.msra.mxu0 0.0
    %321 = vmatprep.subr.mxu0 0.0
    %322 = vmatpush1.msra.mxu0 0.0
    %323 = vmatprep.subr.mxu0 0.0
    %324 = vmatpush1.msra.mxu0 0.0
    %325 = vmatprep.subr.mxu0 0.0
    %326 = vmatpush1.msra.mxu0 0.0
    %327 = vmatprep.subr.mxu0 0.0
    %328 = vmatpush1.msra.mxu0 0.0
    %329 = vmatprep.subr.mxu0 0.0
    %330 = vmatpush1.msra.mxu0 0.0
    %331 = vmatprep.subr.mxu0 0.0
    %332 = vmatpush1.msra.mxu0 0.0
    %333 = vmatprep.subr.mxu0 0.0
    %334 = vmatpush1.msra.mxu0 0.0
    %335 = vmatprep.subr.mxu0 0.0
    %336 = vmatpush1.msra.mxu0 0.0
    %337 = vmatprep.mubr.f32.mxu0 0.0
    %338 = vmatmul.mubr.f32.gmra.mrb[0].mxu0 %v255
    %v339 = vpop.f32.mrb[0].mxu0
    %v340 = vadd.f32 0.0, %v339
    %v341 = vpop.f32.mrb[0].mxu0
    %342 = vmatprep.mubr.f32.mxu0 0.0
    %343 = vmatmul.mubr.f32.gmra.mrb[0].mxu0 %v256
    %v344 = vpop.f32.mrb[0].mxu0
    %v345 = vadd.f32 0.0, %v344
    %v346 = vpop.f32.mrb[0].mxu0
    %347 = vdwg.mxu0
    %349 = vrot.lane.b32.xlu0 %v345, 64
    %v350 = vpop.permute.xlu0 %349
    %vm352 = vcmask 523264
    %v353 = vsel %vm352, %v340, %v350
    %355 = vrot.lane.b32.xlu0 %v340, 64
    %v356 = vpop.permute.xlu0 %355
    %v358 = vsel %vm352, %v356, %v345
    %v360 = vrot.slane %v353, 5
    %vm362 = vcmask 1042432
    %v363 = vsel %vm362, 0.0, %v360
    %v364 = vlaneseq
    %v365 = vshrl.u32 %v364, 7
    %v366 = vsub.s32 0, %v365
    %v367 = vrot.slane %v134, %v366
    %v368 = vmul.f32 %v363, %v367
    %v369 = vlaneseq
    %v370 = vshrl.u32 %v369, 7
    %v371 = vsub.s32 2, %v370
    %v372 = vrot.slane %v133, %v371
    %v373 = vadd.f32 %v372, %v368
    %v374 = vlaneseq
    %v375 = vshrl.u32 %v374, 7
    %v376 = vsub.s32 1, %v375
    %v377 = vrot.slane %v134, %v376
    %v378 = vmul.f32 %v363, %v377
    %v379 = vmul.f32 %v360, %v377
    %vm382 = vcmask 1046528
    %v383 = vrot.slane %v378, 1
    %v384 = vrot.slane %v379, 1
    %v385 = vsel %vm382, %v383, %v384
    %v387 = vadd.f32 %v373, %v385
    %v388 = vlaneseq
    %v389 = vshrl.u32 %v388, 7
    %v390 = vsub.s32 2, %v389
    %v391 = vrot.slane %v134, %v390
    %v392 = vmul.f32 %v363, %v391
    %v393 = vmul.f32 %v360, %v391
    %vm396 = vcmask 1045504
    %v397 = vrot.slane %v392, 2
    %v398 = vrot.slane %v393, 2
    %v399 = vsel %vm396, %v397, %v398
    %v401 = vadd.f32 %v387, %v399
    %v402 = vlaneseq
    %v403 = vshrl.u32 %v402, 7
    %v404 = vsub.s32 3, %v403
    %v405 = vrot.slane %v134, %v404
    %v406 = vmul.f32 %v363, %v405
    %v407 = vmul.f32 %v360, %v405
    %vm410 = vcmask 1044480
    %v411 = vrot.slane %v406, 3
    %v412 = vrot.slane %v407, 3
    %v413 = vsel %vm410, %v411, %v412
    %v415 = vadd.f32 %v401, %v413
    %v416 = vmul.f32 %v415, 0.5
    %v417 = vtanh.pop %v416
    %v418 = vadd.f32 %v417, 1.0
    %v419 = vmul.f32 %v418, 0.5
    %v420 = vmul.f32 %v415, %v419
    %422 = vrot.lane.b32.xlu0 %v420, 64
    %v423 = vpop.permute.xlu0 %422
    %v424 = vld [vmem:[#allocation12] sm:$0xff]
    %v425 = vld [vmem:[#allocation12 + $0x8] sm:$0xff]
    %v426 = vld [vmem:[#allocation12 + $0x10] sm:$0xff]
    %v427 = vld [vmem:[#allocation12 + $0x18] sm:$0xff]
    %v428 = vld [vmem:[#allocation12 + $0x20] sm:$0xff]
    %v429 = vld [vmem:[#allocation12 + $0x28] sm:$0xff]
    %v430 = vld [vmem:[#allocation12 + $0x30] sm:$0xff]
    %v431 = vld [vmem:[#allocation12 + $0x38] sm:$0xff]
    %v432 = vsel %vm352, %v420, 0
    %v434 = vsel %vm352, %v423, 0
    %436 = vmatprep.subr.mxu0 0.0
    %437 = vmatpush1.msra.mxu0 %v424
    %438 = vmatprep.subr.mxu0 0.0
    %439 = vmatpush1.msra.mxu0 %v425
    %440 = vmatprep.subr.mxu0 0.0
    %441 = vmatpush1.msra.mxu0 %v426
    %442 = vmatprep.subr.mxu0 0.0
    %443 = vmatpush1.msra.mxu0 %v427
    %444 = vmatprep.subr.mxu0 0.0
    %445 = vmatpush1.msra.mxu0 %v428
    %446 = vmatprep.subr.mxu0 0.0
    %447 = vmatpush1.msra.mxu0 %v429
    %448 = vmatprep.subr.mxu0 0.0
    %449 = vmatpush1.msra.mxu0 %v430
    %450 = vmatprep.subr.mxu0 0.0
    %451 = vmatpush1.msra.mxu0 %v431
    %452 = vmatprep.subr.mxu0 0.0
    %453 = vmatpush1.msra.mxu0 0.0
    %454 = vmatprep.subr.mxu0 0.0
    %455 = vmatpush1.msra.mxu0 0.0
    %456 = vmatprep.subr.mxu0 0.0
    %457 = vmatpush1.msra.mxu0 0.0
    %458 = vmatprep.subr.mxu0 0.0
    %459 = vmatpush1.msra.mxu0 0.0
    %460 = vmatprep.subr.mxu0 0.0
    %461 = vmatpush1.msra.mxu0 0.0
    %462 = vmatprep.subr.mxu0 0.0
    %463 = vmatpush1.msra.mxu0 0.0
    %464 = vmatprep.subr.mxu0 0.0
    %465 = vmatpush1.msra.mxu0 0.0
    %466 = vmatprep.subr.mxu0 0.0
    %467 = vmatpush1.msra.mxu0 0.0
    %468 = vmatprep.subr.mxu0 0.0
    %469 = vmatpush1.msra.mxu0 0.0
    %470 = vmatprep.subr.mxu0 0.0
    %471 = vmatpush1.msra.mxu0 0.0
    %472 = vmatprep.subr.mxu0 0.0
    %473 = vmatpush1.msra.mxu0 0.0
    %474 = vmatprep.subr.mxu0 0.0
    %475 = vmatpush1.msra.mxu0 0.0
    %476 = vmatprep.subr.mxu0 0.0
    %477 = vmatpush1.msra.mxu0 0.0
    %478 = vmatprep.subr.mxu0 0.0
    %479 = vmatpush1.msra.mxu0 0.0
    %480 = vmatprep.subr.mxu0 0.0
    %481 = vmatpush1.msra.mxu0 0.0
    %482 = vmatprep.subr.mxu0 0.0
    %483 = vmatpush1.msra.mxu0 0.0
    %484 = vmatprep.subr.mxu0 0.0
    %485 = vmatpush1.msra.mxu0 0.0
    %486 = vmatprep.subr.mxu0 0.0
    %487 = vmatpush1.msra.mxu0 0.0
    %488 = vmatprep.subr.mxu0 0.0
    %489 = vmatpush1.msra.mxu0 0.0
    %490 = vmatprep.subr.mxu0 0.0
    %491 = vmatpush1.msra.mxu0 0.0
    %492 = vmatprep.subr.mxu0 0.0
    %493 = vmatpush1.msra.mxu0 0.0
    %494 = vmatprep.subr.mxu0 0.0
    %495 = vmatpush1.msra.mxu0 0.0
    %496 = vmatprep.subr.mxu0 0.0
    %497 = vmatpush1.msra.mxu0 0.0
    %498 = vmatprep.subr.mxu0 0.0
    %499 = vmatpush1.msra.mxu0 0.0
    %500 = vmatprep.mubr.f32.mxu0 0.0
    %501 = vmatmul.mubr.f32.gmra.mrb[0].mxu0 %v432
    %v502 = vpop.f32.mrb[0].mxu0
    %v503 = vadd.f32 0.0, %v502
    %v504 = vpop.f32.mrb[0].mxu0
    %505 = vmatprep.mubr.f32.mxu0 0.0
    %506 = vmatmul.mubr.f32.gmra.mrb[0].mxu0 %v434
    %v507 = vpop.f32.mrb[0].mxu0
    %v508 = vadd.f32 0.0, %v507
    %v509 = vpop.f32.mrb[0].mxu0
    %510 = vdwg.mxu0
    %512 = vrot.lane.b32.xlu0 %v508, 64
    %v513 = vpop.permute.xlu0 %512
    %v515 = vsel %vm352, %v503, %v513
    %v516 = vlaneseq
    %v517 = vshrl.u32 %v516, 7
    %v518 = vsub.s32 3, %v517
    %v519 = vrot.slane %v133, %v518
    %v520 = vadd.f32 %v515, %v519
    %vm521 = vcmp.gt.f32.partialorder %v520, 20.0
    %v522 = vmin.f32 %v520, 20.0
    %v523 = vmul.f32 %v522, 1.442695
    %v524 = vpow.pop %v523
    %v525 = vadd.f32 %v524, 1.0
    %v526 = vlog2.pop %v525
    %v527 = vmul.f32 %v526, 0.6931472
    %v528 = vmul.f32 -0.5, %v524
    %v529 = vadd.f32 %v528, 1.0
    %v530 = vmul.f32 %v529, %v524
    %v531 = vand.u32 2147483647, %v524
    %vm532 = vcmp.lt.f32.partialorder %v531, 0.0004427343
    %v533 = vsel %vm532, %v530, %v527
    %v534 = vsel %vm521, %v520, %v533
    %v535 = vld [vmem:[#allocation13] sm:$0xff]
    %v536 = vld [vmem:[#allocation13 + $0x8] sm:$0xff]
    %v537 = vld [vmem:[#allocation13 + $0x10] sm:$0xff]
    %v538 = vld [vmem:[#allocation13 + $0x18] sm:$0xff]
    %v539 = vld [vmem:[#allocation13 + $0x20] sm:$0xff]
    %v540 = vld [vmem:[#allocation13 + $0x28] sm:$0xff]
    %v541 = vld [vmem:[#allocation13 + $0x30] sm:$0xff]
    %v542 = vld [vmem:[#allocation13 + $0x38] sm:$0xff]
    %v543 = vld [vmem:[#allocation13 + $0x40] sm:$0xff]
    %v544 = vld [vmem:[#allocation13 + $0x48] sm:$0xff]
    %v545 = vld [vmem:[#allocation13 + $0x50] sm:$0xff]
    %v546 = vld [vmem:[#allocation13 + $0x58] sm:$0xff]
    %v547 = vld [vmem:[#allocation13 + $0x60] sm:$0xff]
    %v548 = vld [vmem:[#allocation13 + $0x68] sm:$0xff]
    %v549 = vld [vmem:[#allocation13 + $0x70] sm:$0xff]
    %v550 = vld [vmem:[#allocation13 + $0x78] sm:$0xff]
    %552 = vrot.lane.b32.xlu0 %v503, 64
    %v553 = vpop.permute.xlu0 %552
    %555 = vxpose.xlu0.b32.start [1/16] %v553, 128
    %556 = vxpose.xlu0.b32.cont [2/16] %v513, 128
    %557 = vxpose.xlu0.b32.cont [3/16] 0.0, 128
    %558 = vxpose.xlu0.b32.cont [4/16] 0.0, 128
    %559 = vxpose.xlu0.b32.cont [5/16] 0.0, 128
    %560 = vxpose.xlu0.b32.cont [6/16] 0.0, 128
    %561 = vxpose.xlu0.b32.cont [7/16] 0.0, 128
    %562 = vxpose.xlu0.b32.cont [8/16] 0.0, 128
    %563 = vxpose.xlu0.b32.cont [9/16] 0.0, 128
    %564 = vxpose.xlu0.b32.cont [10/16] 0.0, 128
    %565 = vxpose.xlu0.b32.cont [11/16] 0.0, 128
    %566 = vxpose.xlu0.b32.cont [12/16] 0.0, 128
    %567 = vxpose.xlu0.b32.cont [13/16] 0.0, 128
    %568 = vxpose.xlu0.b32.cont [14/16] 0.0, 128
    %569 = vxpose.xlu0.b32.cont [15/16] 0.0, 128
    %570 = vxpose.xlu0.b32.end [16/16] 0.0, 128
    %v571 = vpop.trf.xlu0
    %v572 = vpop.trf.xlu0
    %v573 = vpop.trf.xlu0
    %v574 = vpop.trf.xlu0
    %v575 = vpop.trf.xlu0
    %v576 = vpop.trf.xlu0
    %v577 = vpop.trf.xlu0
    %v578 = vpop.trf.xlu0
    %v579 = vpop.trf.xlu0
    %v580 = vpop.trf.xlu0
    %v581 = vpop.trf.xlu0
    %v582 = vpop.trf.xlu0
    %v583 = vpop.trf.xlu0
    %v584 = vpop.trf.xlu0
    %v585 = vpop.trf.xlu0
    %v586 = vpop.trf.xlu0
    %vm587 = vcmask 130048
    %v589 = vsel %vm587, %v571, 0
    %v592 = vsel %vm587, %v572, 0
    %v595 = vsel %vm587, %v573, 0
    %v598 = vsel %vm587, %v574, 0
    %600 = vmatprep.subr.mxu0 %v536
    %601 = vmatpush1.msra.mxu0 %v535
    %602 = vmatprep.subr.mxu0 %v544
    %603 = vmatpush1.msra.mxu0 %v543
    %604 = vmatprep.subr.mxu0 0.0
    %605 = vmatpush1.msra.mxu0 0.0
    %606 = vmatprep.subr.mxu0 0.0
    %607 = vmatpush1.msra.mxu0 0.0
    %608 = vmatprep.subr.mxu0 0.0
    %609 = vmatpush1.msra.mxu0 0.0
    %610 = vmatprep.subr.mxu0 0.0
    %611 = vmatpush1.msra.mxu0 0.0
    %612 = vmatprep.subr.mxu0 0.0
    %613 = vmatpush1.msra.mxu0 0.0
    %614 = vmatprep.subr.mxu0 0.0
    %615 = vmatpush1.msra.mxu0 0.0
    %616 = vmatprep.subr.mxu0 0.0
    %617 = vmatpush1.msra.mxu0 0.0
    %618 = vmatprep.subr.mxu0 0.0
    %619 = vmatpush1.msra.mxu0 0.0
    %620 = vmatprep.subr.mxu0 0.0
    %621 = vmatpush1.msra.mxu0 0.0
    %622 = vmatprep.subr.mxu0 0.0
    %623 = vmatpush1.msra.mxu0 0.0
    %624 = vmatprep.subr.mxu0 0.0
    %625 = vmatpush1.msra.mxu0 0.0
    %626 = vmatprep.subr.mxu0 0.0
    %627 = vmatpush1.msra.mxu0 0.0
    %628 = vmatprep.subr.mxu0 0.0
    %629 = vmatpush1.msra.mxu0 0.0
    %630 = vmatprep.subr.mxu0 0.0
    %631 = vmatpush1.msra.mxu0 0.0
    %632 = vmatprep.subr.mxu0 0.0
    %633 = vmatpush1.msra.mxu0 0.0
    %634 = vmatprep.subr.mxu0 0.0
    %635 = vmatpush1.msra.mxu0 0.0
    %636 = vmatprep.subr.mxu0 0.0
    %637 = vmatpush1.msra.mxu0 0.0
    %638 = vmatprep.subr.mxu0 0.0
    %639 = vmatpush1.msra.mxu0 0.0
    %640 = vmatprep.subr.mxu0 0.0
    %641 = vmatpush1.msra.mxu0 0.0
    %642 = vmatprep.subr.mxu0 0.0
    %643 = vmatpush1.msra.mxu0 0.0
    %644 = vmatprep.subr.mxu0 0.0
    %645 = vmatpush1.msra.mxu0 0.0
    %646 = vmatprep.subr.mxu0 0.0
    %647 = vmatpush1.msra.mxu0 0.0
    %648 = vmatprep.subr.mxu0 0.0
    %649 = vmatpush1.msra.mxu0 0.0
    %650 = vmatprep.subr.mxu0 0.0
    %651 = vmatpush1.msra.mxu0 0.0
    %652 = vmatprep.subr.mxu0 0.0
    %653 = vmatpush1.msra.mxu0 0.0
    %654 = vmatprep.subr.mxu0 0.0
    %655 = vmatpush1.msra.mxu0 0.0
    %656 = vmatprep.subr.mxu0 0.0
    %657 = vmatpush1.msra.mxu0 0.0
    %658 = vmatprep.subr.mxu0 0.0
    %659 = vmatpush1.msra.mxu0 0.0
    %660 = vmatprep.subr.mxu0 0.0
    %661 = vmatpush1.msra.mxu0 0.0
    %662 = vmatprep.subr.mxu0 0.0
    %663 = vmatpush1.msra.mxu0 0.0
    %664 = vmatprep.mubr.f32.mxu0 0.0
    %665 = vmatmul.mubr.f32.gmra.mrb[0].mxu0 %v589
    %v666 = vpop.f32.mrb[0].mxu0
    %v667 = vadd.f32 0.0, %v666
    %v668 = vpop.f32.mrb[0].mxu0
    %v669 = vadd.f32 0.0, %v668
    %670 = vmatprep.mubr.f32.mxu0 0.0
    %671 = vmatmul.mubr.f32.gmra.mrb[0].mxu0 %v592
    %v672 = vpop.f32.mrb[0].mxu0
    %v673 = vadd.f32 0.0, %v672
    %v674 = vpop.f32.mrb[0].mxu0
    %v675 = vadd.f32 0.0, %v674
    %676 = vmatprep.mubr.f32.mxu0 0.0
    %677 = vmatmul.mubr.f32.gmra.mrb[0].mxu0 %v595
    %v678 = vpop.f32.mrb[0].mxu0
    %v679 = vadd.f32 0.0, %v678
    %v680 = vpop.f32.mrb[0].mxu0
    %v681 = vadd.f32 0.0, %v680
    %682 = vmatprep.mubr.f32.mxu0 0.0
    %683 = vmatmul.mubr.f32.gmra.mrb[0].mxu0 %v598
    %v684 = vpop.f32.mrb[0].mxu0
    %v685 = vadd.f32 0.0, %v684
    %v686 = vpop.f32.mrb[0].mxu0
    %v687 = vadd.f32 0.0, %v686
    %688 = vdwg.mxu0
    %689 = vmatprep.subr.mxu0 %v538
    %690 = vmatpush1.msra.mxu0 %v537
    %691 = vmatprep.subr.mxu0 %v546
    %692 = vmatpush1.msra.mxu0 %v545
    %693 = vmatprep.subr.mxu0 0.0
    %694 = vmatpush1.msra.mxu0 0.0
    %695 = vmatprep.subr.mxu0 0.0
    %696 = vmatpush1.msra.mxu0 0.0
    %697 = vmatprep.subr.mxu0 0.0
    %698 = vmatpush1.msra.mxu0 0.0
    %699 = vmatprep.subr.mxu0 0.0
    %700 = vmatpush1.msra.mxu0 0.0
    %701 = vmatprep.subr.mxu0 0.0
    %702 = vmatpush1.msra.mxu0 0.0
    %703 = vmatprep.subr.mxu0 0.0
    %704 = vmatpush1.msra.mxu0 0.0
    %705 = vmatprep.subr.mxu0 0.0
    %706 = vmatpush1.msra.mxu0 0.0
    %707 = vmatprep.subr.mxu0 0.0
    %708 = vmatpush1.msra.mxu0 0.0
    %709 = vmatprep.subr.mxu0 0.0
    %710 = vmatpush1.msra.mxu0 0.0
    %711 = vmatprep.subr.mxu0 0.0
    %712 = vmatpush1.msra.mxu0 0.0
    %713 = vmatprep.subr.mxu0 0.0
    %714 = vmatpush1.msra.mxu0 0.0
    %715 = vmatprep.subr.mxu0 0.0
    %716 = vmatpush1.msra.mxu0 0.0
    %717 = vmatprep.subr.mxu0 0.0
    %718 = vmatpush1.msra.mxu0 0.0
    %719 = vmatprep.subr.mxu0 0.0
    %720 = vmatpush1.msra.mxu0 0.0
    %721 = vmatprep.subr.mxu0 0.0
    %722 = vmatpush1.msra.mxu0 0.0
    %723 = vmatprep.subr.mxu0 0.0
    %724 = vmatpush1.msra.mxu0 0.0
    %725 = vmatprep.subr.mxu0 0.0
    %726 = vmatpush1.msra.mxu0 0.0
    %727 = vmatprep.subr.mxu0 0.0
    %728 = vmatpush1.msra.mxu0 0.0
    %729 = vmatprep.subr.mxu0 0.0
    %730 = vmatpush1.msra.mxu0 0.0
    %731 = vmatprep.subr.mxu0 0.0
    %732 = vmatpush1.msra.mxu0 0.0
    %733 = vmatprep.subr.mxu0 0.0
    %734 = vmatpush1.msra.mxu0 0.0
    %735 = vmatprep.subr.mxu0 0.0
    %736 = vmatpush1.msra.mxu0 0.0
    %737 = vmatprep.subr.mxu0 0.0
    %738 = vmatpush1.msra.mxu0 0.0
    %739 = vmatprep.subr.mxu0 0.0
    %740 = vmatpush1.msra.mxu0 0.0
    %741 = vmatprep.subr.mxu0 0.0
    %742 = vmatpush1.msra.mxu0 0.0
    %743 = vmatprep.subr.mxu0 0.0
    %744 = vmatpush1.msra.mxu0 0.0
    %745 = vmatprep.subr.mxu0 0.0
    %746 = vmatpush1.msra.mxu0 0.0
    %747 = vmatprep.subr.mxu0 0.0
    %748 = vmatpush1.msra.mxu0 0.0
    %749 = vmatprep.subr.mxu0 0.0
    %750 = vmatpush1.msra.mxu0 0.0
    %751 = vmatprep.subr.mxu0 0.0
    %752 = vmatpush1.msra.mxu0 0.0
    %753 = vmatprep.mubr.f32.mxu0 0.0
    %754 = vmatmul.mubr.f32.gmra.mrb[0].mxu0 %v589
    %v755 = vpop.f32.mrb[0].mxu0
    %v756 = vadd.f32 0.0, %v755
    %v757 = vpop.f32.mrb[0].mxu0
    %v758 = vadd.f32 0.0, %v757
    %759 = vmatprep.mubr.f32.mxu0 0.0
    %760 = vmatmul.mubr.f32.gmra.mrb[0].mxu0 %v592
    %v761 = vpop.f32.mrb[0].mxu0
    %v762 = vadd.f32 0.0, %v761
    %v763 = vpop.f32.mrb[0].mxu0
    %v764 = vadd.f32 0.0, %v763
    %765 = vmatprep.mubr.f32.mxu0 0.0
    %766 = vmatmul.mubr.f32.gmra.mrb[0].mxu0 %v595
    %v767 = vpop.f32.mrb[0].mxu0
    %v768 = vadd.f32 0.0, %v767
    %v769 = vpop.f32.mrb[0].mxu0
    %v770 = vadd.f32 0.0, %v769
    %771 = vmatprep.mubr.f32.mxu0 0.0
    %772 = vmatmul.mubr.f32.gmra.mrb[0].mxu0 %v598
    %v773 = vpop.f32.mrb[0].mxu0
    %v774 = vadd.f32 0.0, %v773
    %v775 = vpop.f32.mrb[0].mxu0
    %v776 = vadd.f32 0.0, %v775
    %777 = vdwg.mxu0
    %778 = vmatprep.subr.mxu0 %v540
    %779 = vmatpush1.msra.mxu0 %v539
    %780 = vmatprep.subr.mxu0 %v548
    %781 = vmatpush1.msra.mxu0 %v547
    %782 = vmatprep.subr.mxu0 0.0
    %783 = vmatpush1.msra.mxu0 0.0
    %784 = vmatprep.subr.mxu0 0.0
    %785 = vmatpush1.msra.mxu0 0.0
    %786 = vmatprep.subr.mxu0 0.0
    %787 = vmatpush1.msra.mxu0 0.0
    %788 = vmatprep.subr.mxu0 0.0
    %789 = vmatpush1.msra.mxu0 0.0
    %790 = vmatprep.subr.mxu0 0.0
    %791 = vmatpush1.msra.mxu0 0.0
    %792 = vmatprep.subr.mxu0 0.0
    %793 = vmatpush1.msra.mxu0 0.0
    %794 = vmatprep.subr.mxu0 0.0
    %795 = vmatpush1.msra.mxu0 0.0
    %796 = vmatprep.subr.mxu0 0.0
    %797 = vmatpush1.msra.mxu0 0.0
    %798 = vmatprep.subr.mxu0 0.0
    %799 = vmatpush1.msra.mxu0 0.0
    %800 = vmatprep.subr.mxu0 0.0
    %801 = vmatpush1.msra.mxu0 0.0
    %802 = vmatprep.subr.mxu0 0.0
    %803 = vmatpush1.msra.mxu0 0.0
    %804 = vmatprep.subr.mxu0 0.0
    %805 = vmatpush1.msra.mxu0 0.0
    %806 = vmatprep.subr.mxu0 0.0
    %807 = vmatpush1.msra.mxu0 0.0
    %808 = vmatprep.subr.mxu0 0.0
    %809 = vmatpush1.msra.mxu0 0.0
    %810 = vmatprep.subr.mxu0 0.0
    %811 = vmatpush1.msra.mxu0 0.0
    %812 = vmatprep.subr.mxu0 0.0
    %813 = vmatpush1.msra.mxu0 0.0
    %814 = vmatprep.subr.mxu0 0.0
    %815 = vmatpush1.msra.mxu0 0.0
    %816 = vmatprep.subr.mxu0 0.0
    %817 = vmatpush1.msra.mxu0 0.0
    %818 = vmatprep.subr.mxu0 0.0
    %819 = vmatpush1.msra.mxu0 0.0
    %820 = vmatprep.subr.mxu0 0.0
    %821 = vmatpush1.msra.mxu0 0.0
    %822 = vmatprep.subr.mxu0 0.0
    %823 = vmatpush1.msra.mxu0 0.0
    %824 = vmatprep.subr.mxu0 0.0
    %825 = vmatpush1.msra.mxu0 0.0
    %826 = vmatprep.subr.mxu0 0.0
    %827 = vmatpush1.msra.mxu0 0.0
    %828 = vmatprep.subr.mxu0 0.0
    %829 = vmatpush1.msra.mxu0 0.0
    %830 = vmatprep.subr.mxu0 0.0
    %831 = vmatpush1.msra.mxu0 0.0
    %832 = vmatprep.subr.mxu0 0.0
    %833 = vmatpush1.msra.mxu0 0.0
    %834 = vmatprep.subr.mxu0 0.0
    %835 = vmatpush1.msra.mxu0 0.0
    %836 = vmatprep.subr.mxu0 0.0
    %837 = vmatpush1.msra.mxu0 0.0
    %838 = vmatprep.subr.mxu0 0.0
    %839 = vmatpush1.msra.mxu0 0.0
    %840 = vmatprep.subr.mxu0 0.0
    %841 = vmatpush1.msra.mxu0 0.0
    %842 = vmatprep.mubr.f32.mxu0 0.0
    %843 = vmatmul.mubr.f32.gmra.mrb[0].mxu0 %v589
    %v844 = vpop.f32.mrb[0].mxu0
    %v845 = vadd.f32 0.0, %v844
    %v846 = vpop.f32.mrb[0].mxu0
    %v847 = vadd.f32 0.0, %v846
    %848 = vmatprep.mubr.f32.mxu0 0.0
    %849 = vmatmul.mubr.f32.gmra.mrb[0].mxu0 %v592
    %v850 = vpop.f32.mrb[0].mxu0
    %v851 = vadd.f32 0.0, %v850
    %v852 = vpop.f32.mrb[0].mxu0
    %v853 = vadd.f32 0.0, %v852
    %854 = vmatprep.mubr.f32.mxu0 0.0
    %855 = vmatmul.mubr.f32.gmra.mrb[0].mxu0 %v595
    %v856 = vpop.f32.mrb[0].mxu0
    %v857 = vadd.f32 0.0, %v856
    %v858 = vpop.f32.mrb[0].mxu0
    %v859 = vadd.f32 0.0, %v858
    %860 = vmatprep.mubr.f32.mxu0 0.0
    %861 = vmatmul.mubr.f32.gmra.mrb[0].mxu0 %v598
    %v862 = vpop.f32.mrb[0].mxu0
    %v863 = vadd.f32 0.0, %v862
    %v864 = vpop.f32.mrb[0].mxu0
    %v865 = vadd.f32 0.0, %v864
    %866 = vdwg.mxu0
    %867 = vmatprep.subr.mxu0 %v542
    %868 = vmatpush1.msra.mxu0 %v541
    %869 = vmatprep.subr.mxu0 %v550
    %870 = vmatpush1.msra.mxu0 %v549
    %871 = vmatprep.subr.mxu0 0.0
    %872 = vmatpush1.msra.mxu0 0.0
    %873 = vmatprep.subr.mxu0 0.0
    %874 = vmatpush1.msra.mxu0 0.0
    %875 = vmatprep.subr.mxu0 0.0
    %876 = vmatpush1.msra.mxu0 0.0
    %877 = vmatprep.subr.mxu0 0.0
    %878 = vmatpush1.msra.mxu0 0.0
    %879 = vmatprep.subr.mxu0 0.0
    %880 = vmatpush1.msra.mxu0 0.0
    %881 = vmatprep.subr.mxu0 0.0
    %882 = vmatpush1.msra.mxu0 0.0
    %883 = vmatprep.subr.mxu0 0.0
    %884 = vmatpush1.msra.mxu0 0.0
    %885 = vmatprep.subr.mxu0 0.0
    %886 = vmatpush1.msra.mxu0 0.0
    %887 = vmatprep.subr.mxu0 0.0
    %888 = vmatpush1.msra.mxu0 0.0
    %889 = vmatprep.subr.mxu0 0.0
    %890 = vmatpush1.msra.mxu0 0.0
    %891 = vmatprep.subr.mxu0 0.0
    %892 = vmatpush1.msra.mxu0 0.0
    %893 = vmatprep.subr.mxu0 0.0
    %894 = vmatpush1.msra.mxu0 0.0
    %895 = vmatprep.subr.mxu0 0.0
    %896 = vmatpush1.msra.mxu0 0.0
    %897 = vmatprep.subr.mxu0 0.0
    %898 = vmatpush1.msra.mxu0 0.0
    %899 = vmatprep.subr.mxu0 0.0
    %900 = vmatpush1.msra.mxu0 0.0
    %901 = vmatprep.subr.mxu0 0.0
    %902 = vmatpush1.msra.mxu0 0.0
    %903 = vmatprep.subr.mxu0 0.0
    %904 = vmatpush1.msra.mxu0 0.0
    %905 = vmatprep.subr.mxu0 0.0
    %906 = vmatpush1.msra.mxu0 0.0
    %907 = vmatprep.subr.mxu0 0.0
    %908 = vmatpush1.msra.mxu0 0.0
    %909 = vmatprep.subr.mxu0 0.0
    %910 = vmatpush1.msra.mxu0 0.0
    %911 = vmatprep.subr.mxu0 0.0
    %912 = vmatpush1.msra.mxu0 0.0
    %913 = vmatprep.subr.mxu0 0.0
    %914 = vmatpush1.msra.mxu0 0.0
    %915 = vmatprep.subr.mxu0 0.0
    %916 = vmatpush1.msra.mxu0 0.0
    %917 = vmatprep.subr.mxu0 0.0
    %918 = vmatpush1.msra.mxu0 0.0
    %919 = vmatprep.subr.mxu0 0.0
    %920 = vmatpush1.msra.mxu0 0.0
    %921 = vmatprep.subr.mxu0 0.0
    %922 = vmatpush1.msra.mxu0 0.0
    %923 = vmatprep.subr.mxu0 0.0
    %924 = vmatpush1.msra.mxu0 0.0
    %925 = vmatprep.subr.mxu0 0.0
    %926 = vmatpush1.msra.mxu0 0.0
    %927 = vmatprep.subr.mxu0 0.0
    %928 = vmatpush1.msra.mxu0 0.0
    %929 = vmatprep.subr.mxu0 0.0
    %930 = vmatpush1.msra.mxu0 0.0
    %931 = vmatprep.mubr.f32.mxu0 0.0
    %932 = vmatmul.mubr.f32.gmra.mrb[0].mxu0 %v589
    %v933 = vpop.f32.mrb[0].mxu0
    %v934 = vadd.f32 0.0, %v933
    %v935 = vpop.f32.mrb[0].mxu0
    %v936 = vadd.f32 0.0, %v935
    %937 = vmatprep.mubr.f32.mxu0 0.0
    %938 = vmatmul.mubr.f32.gmra.mrb[0].mxu0 %v592
    %v939 = vpop.f32.mrb[0].mxu0
    %v940 = vadd.f32 0.0, %v939
    %v941 = vpop.f32.mrb[0].mxu0
    %v942 = vadd.f32 0.0, %v941
    %943 = vmatprep.mubr.f32.mxu0 0.0
    %944 = vmatmul.mubr.f32.gmra.mrb[0].mxu0 %v595
    %v945 = vpop.f32.mrb[0].mxu0
    %v946 = vadd.f32 0.0, %v945
    %v947 = vpop.f32.mrb[0].mxu0
    %v948 = vadd.f32 0.0, %v947
    %949 = vmatprep.mubr.f32.mxu0 0.0
    %950 = vmatmul.mubr.f32.gmra.mrb[0].mxu0 %v598
    %v951 = vpop.f32.mrb[0].mxu0
    %v952 = vadd.f32 0.0, %v951
    %v953 = vpop.f32.mrb[0].mxu0
    %v954 = vadd.f32 0.0, %v953
    %955 = vdwg.mxu0
    %956 = vst [vmem:[#allocation2] sm:$0xff] %v667
    %957 = vst [vmem:[#allocation2 + $0x8] sm:$0xff] %v669
    %958 = vst [vmem:[#allocation2 + $0x10] sm:$0xff] %v756
    %959 = vst [vmem:[#allocation2 + $0x18] sm:$0xff] %v758
    %960 = vst [vmem:[#allocation2 + $0x20] sm:$0xff] %v845
    %961 = vst [vmem:[#allocation2 + $0x28] sm:$0xff] %v847
    %962 = vst [vmem:[#allocation2 + $0x30] sm:$0xff] %v934
    %963 = vst [vmem:[#allocation2 + $0x38] sm:$0xff] %v936
    %964 = vst [vmem:[#allocation2 + $0x40] sm:$0xff] %v673
    %965 = vst [vmem:[#allocation2 + $0x48] sm:$0xff] %v675
    %966 = vst [vmem:[#allocation2 + $0x50] sm:$0xff] %v762
    %967 = vst [vmem:[#allocation2 + $0x58] sm:$0xff] %v764
    %968 = vst [vmem:[#allocation2 + $0x60] sm:$0xff] %v851
    %969 = vst [vmem:[#allocation2 + $0x68] sm:$0xff] %v853
    %970 = vst [vmem:[#allocation2 + $0x70] sm:$0xff] %v940
    %971 = vst [vmem:[#allocation2 + $0x78] sm:$0xff] %v942
    %972 = vst [vmem:[#allocation2 + $0x80] sm:$0xff] %v679
    %973 = vst [vmem:[#allocation2 + $0x88] sm:$0xff] %v681
    %974 = vst [vmem:[#allocation2 + $0x90] sm:$0xff] %v768
    %975 = vst [vmem:[#allocation2 + $0x98] sm:$0xff] %v770
    %976 = vst [vmem:[#allocation2 + $0xa0] sm:$0xff] %v857
    %977 = vst [vmem:[#allocation2 + $0xa8] sm:$0xff] %v859
    %978 = vst [vmem:[#allocation2 + $0xb0] sm:$0xff] %v946
    %979 = vst [vmem:[#allocation2 + $0xb8] sm:$0xff] %v948
    %980 = vst [vmem:[#allocation2 + $0xc0] sm:$0xff] %v685
    %981 = vst [vmem:[#allocation2 + $0xc8] sm:$0xff] %v687
    %982 = vst [vmem:[#allocation2 + $0xd0] sm:$0xff] %v774
    %983 = vst [vmem:[#allocation2 + $0xd8] sm:$0xff] %v776
    %984 = vst [vmem:[#allocation2 + $0xe0] sm:$0xff] %v863
    %985 = vst [vmem:[#allocation2 + $0xe8] sm:$0xff] %v865
    %986 = vst [vmem:[#allocation2 + $0xf0] sm:$0xff] %v952
    %987 = vst [vmem:[#allocation2 + $0xf8] sm:$0xff] %v954
    %v988 = vmul.f32 %v534, %v420
    %v989 = vlaneseq
    %v990 = vshrl.u32 %v989, 7
    %v991 = vsub.s32 0, %v990
    %v992 = vrot.slane %v534, %v991
    %v993 = vmul.f32 %v992, %v135
    %v994 = vmul.f32 %v992, %v136
    %v995 = vmul.f32 %v993, 1.442695
    %v996 = vpow.pop %v995
    %v997 = vmul.f32 %v994, 1.442695
    %v998 = vpow.pop %v997
    %999 = vst [vmem:[#allocation3] sm:$0xff] %v996
    %1000 = vst [vmem:[#allocation3 + $0x40] sm:$0xff] %v998
    %v1001 = vlaneseq
    %v1002 = vshrl.u32 %v1001, 7
    %v1003 = vsub.s32 1, %v1002
    %v1004 = vrot.slane %v534, %v1003
    %v1005 = vmul.f32 %v1004, %v135
    %v1006 = vmul.f32 %v1004, %v136
    %v1007 = vmul.f32 %v1005, 1.442695
    %v1008 = vpow.pop %v1007
    %v1009 = vmul.f32 %v1006, 1.442695
    %v1010 = vpow.pop %v1009
    %1011 = vst [vmem:[#allocation3 + $0x8] sm:$0xff] %v1008
    %1012 = vst [vmem:[#allocation3 + $0x48] sm:$0xff] %v1010
    %v1013 = vlaneseq
    %v1014 = vshrl.u32 %v1013, 7
    %v1015 = vsub.s32 2, %v1014
    %v1016 = vrot.slane %v534, %v1015
    %v1017 = vmul.f32 %v1016, %v135
    %v1018 = vmul.f32 %v1016, %v136
    %v1019 = vmul.f32 %v1017, 1.442695
    %v1020 = vpow.pop %v1019
    %v1021 = vmul.f32 %v1018, 1.442695
    %v1022 = vpow.pop %v1021
    %1023 = vst [vmem:[#allocation3 + $0x10] sm:$0xff] %v1020
    %1024 = vst [vmem:[#allocation3 + $0x50] sm:$0xff] %v1022
    %v1025 = vlaneseq
    %v1026 = vshrl.u32 %v1025, 7
    %v1027 = vsub.s32 3, %v1026
    %v1028 = vrot.slane %v534, %v1027
    %v1029 = vmul.f32 %v1028, %v135
    %v1030 = vmul.f32 %v1028, %v136
    %v1031 = vmul.f32 %v1029, 1.442695
    %v1032 = vpow.pop %v1031
    %v1033 = vmul.f32 %v1030, 1.442695
    %v1034 = vpow.pop %v1033
    %1035 = vst [vmem:[#allocation3 + $0x18] sm:$0xff] %v1032
    %1036 = vst [vmem:[#allocation3 + $0x58] sm:$0xff] %v1034
    %v1037 = vlaneseq
    %v1038 = vshrl.u32 %v1037, 7
    %v1039 = vsub.s32 4, %v1038
    %v1040 = vrot.slane %v534, %v1039
    %v1041 = vmul.f32 %v1040, %v135
    %v1042 = vmul.f32 %v1040, %v136
    %v1043 = vmul.f32 %v1041, 1.442695
    %v1044 = vpow.pop %v1043
    %v1045 = vmul.f32 %v1042, 1.442695
    %v1046 = vpow.pop %v1045
    %1047 = vst [vmem:[#allocation3 + $0x20] sm:$0xff] %v1044
    %1048 = vst [vmem:[#allocation3 + $0x60] sm:$0xff] %v1046
    %v1049 = vlaneseq
    %v1050 = vshrl.u32 %v1049, 7
    %v1051 = vsub.s32 5, %v1050
    %v1052 = vrot.slane %v534, %v1051
    %v1053 = vmul.f32 %v1052, %v135
    %v1054 = vmul.f32 %v1052, %v136
    %v1055 = vmul.f32 %v1053, 1.442695
    %v1056 = vpow.pop %v1055
    %v1057 = vmul.f32 %v1054, 1.442695
    %v1058 = vpow.pop %v1057
    %1059 = vst [vmem:[#allocation3 + $0x28] sm:$0xff] %v1056
    %1060 = vst [vmem:[#allocation3 + $0x68] sm:$0xff] %v1058
    %v1061 = vlaneseq
    %v1062 = vshrl.u32 %v1061, 7
    %v1063 = vsub.s32 6, %v1062
    %v1064 = vrot.slane %v534, %v1063
    %v1065 = vmul.f32 %v1064, %v135
    %v1066 = vmul.f32 %v1064, %v136
    %v1067 = vmul.f32 %v1065, 1.442695
    %v1068 = vpow.pop %v1067
    %v1069 = vmul.f32 %v1066, 1.442695
    %v1070 = vpow.pop %v1069
    %1071 = vst [vmem:[#allocation3 + $0x30] sm:$0xff] %v1068
    %1072 = vst [vmem:[#allocation3 + $0x70] sm:$0xff] %v1070
    %v1073 = vlaneseq
    %v1074 = vshrl.u32 %v1073, 7
    %v1075 = vsub.s32 7, %v1074
    %v1076 = vrot.slane %v534, %v1075
    %v1077 = vmul.f32 %v1076, %v135
    %v1078 = vmul.f32 %v1076, %v136
    %v1079 = vmul.f32 %v1077, 1.442695
    %v1080 = vpow.pop %v1079
    %v1081 = vmul.f32 %v1078, 1.442695
    %v1082 = vpow.pop %v1081
    %1083 = vst [vmem:[#allocation3 + $0x38] sm:$0xff] %v1080
    %1084 = vst [vmem:[#allocation3 + $0x78] sm:$0xff] %v1082
    %v1085 = vld [vmem:[#allocation2] sm:$0xff]
    %v1086 = vld [vmem:[#allocation2 + $0x40] sm:$0xff]
    %v1087 = vld [vmem:[#allocation2 + $0x80] sm:$0xff]
    %v1088 = vld [vmem:[#allocation2 + $0xc0] sm:$0xff]
    %v1089 = vld [vmem:[#allocation3] sm:$0xff]
    %v1090 = vld [vmem:[#allocation3 + $0x40] sm:$0xff]
    %v1091 = vmul.f32 %v1089, 0.0
    %v1092 = vmul.f32 %v1090, 0.0
    %v1093 = vlaneseq
    %v1094 = vshrl.u32 %v1093, 7
    %v1095 = vsub.s32 0, %v1094
    %v1096 = vrot.slane %v988, %v1095
    %v1097 = vmul.f32 %v1096, %v1085
    %v1098 = vmul.f32 %v1096, %v1086
    %v1099 = vadd.f32 %v1091, %v1097
    %v1100 = vadd.f32 %v1092, %v1098
    %v1101 = vmul.f32 %v1099, %v1087
    %v1102 = vmul.f32 %v1100, %v1088
    %v1103 = vadd.f32 %v1101, %v1102
    %v1104 = vrot.slane %v1103, 4
    %v1105 = vadd.f32 %v1103, %v1104
    %v1106 = vrot.slane %v1105, 2
    %v1107 = vadd.f32 %v1105, %v1106
    %v1108 = vrot.slane %v1107, 1
    %v1109 = vadd.f32 %v1107, %v1108
    %1110 = vst [vmem:[#allocation4] sm:$0x1] %v1109
    %v1111 = vld [vmem:[#allocation2 + $0x8] sm:$0xff]
    %v1112 = vld [vmem:[#allocation2 + $0x48] sm:$0xff]
    %v1113 = vld [vmem:[#allocation2 + $0x88] sm:$0xff]
    %v1114 = vld [vmem:[#allocation2 + $0xc8] sm:$0xff]
    %v1115 = vld [vmem:[#allocation3 + $0x8] sm:$0xff]
    %v1116 = vld [vmem:[#allocation3 + $0x48] sm:$0xff]
    %v1117 = vmul.f32 %v1115, %v1099
    %v1118 = vmul.f32 %v1116, %v1100
    %v1119 = vlaneseq
    %v1120 = vshrl.u32 %v1119, 7
    %v1121 = vsub.s32 1, %v1120
    %v1122 = vrot.slane %v988, %v1121
    %v1123 = vmul.f32 %v1122, %v1111
    %v1124 = vmul.f32 %v1122, %v1112
    %v1125 = vadd.f32 %v1117, %v1123
    %v1126 = vadd.f32 %v1118, %v1124
    %v1127 = vmul.f32 %v1125, %v1113
    %v1128 = vmul.f32 %v1126, %v1114
    %v1129 = vadd.f32 %v1127, %v1128
    %v1130 = vrot.slane %v1129, 4
    %v1131 = vadd.f32 %v1129, %v1130
    %v1132 = vrot.slane %v1131, 2
    %v1133 = vadd.f32 %v1131, %v1132
    %v1134 = vrot.slane %v1133, 1
    %v1135 = vadd.f32 %v1133, %v1134
    %1136 = vst [vmem:[#allocation4 + $0x1] sm:$0x1] %v1135
    %v1137 = vld [vmem:[#allocation2 + $0x10] sm:$0xff]
    %v1138 = vld [vmem:[#allocation2 + $0x50] sm:$0xff]
    %v1139 = vld [vmem:[#allocation2 + $0x90] sm:$0xff]
    %v1140 = vld [vmem:[#allocation2 + $0xd0] sm:$0xff]
    %v1141 = vld [vmem:[#allocation3 + $0x10] sm:$0xff]
    %v1142 = vld [vmem:[#allocation3 + $0x50] sm:$0xff]
    %v1143 = vmul.f32 %v1141, %v1125
    %v1144 = vmul.f32 %v1142, %v1126
    %v1145 = vlaneseq
    %v1146 = vshrl.u32 %v1145, 7
    %v1147 = vsub.s32 2, %v1146
    %v1148 = vrot.slane %v988, %v1147
    %v1149 = vmul.f32 %v1148, %v1137
    %v1150 = vmul.f32 %v1148, %v1138
    %v1151 = vadd.f32 %v1143, %v1149
    %v1152 = vadd.f32 %v1144, %v1150
    %v1153 = vmul.f32 %v1151, %v1139
    %v1154 = vmul.f32 %v1152, %v1140
    %v1155 = vadd.f32 %v1153, %v1154
    %v1156 = vrot.slane %v1155, 4
    %v1157 = vadd.f32 %v1155, %v1156
    %v1158 = vrot.slane %v1157, 2
    %v1159 = vadd.f32 %v1157, %v1158
    %v1160 = vrot.slane %v1159, 1
    %v1161 = vadd.f32 %v1159, %v1160
    %1162 = vst [vmem:[#allocation4 + $0x2] sm:$0x1] %v1161
    %v1163 = vld [vmem:[#allocation2 + $0x18] sm:$0xff]
    %v1164 = vld [vmem:[#allocation2 + $0x58] sm:$0xff]
    %v1165 = vld [vmem:[#allocation2 + $0x98] sm:$0xff]
    %v1166 = vld [vmem:[#allocation2 + $0xd8] sm:$0xff]
    %v1167 = vld [vmem:[#allocation3 + $0x18] sm:$0xff]
    %v1168 = vld [vmem:[#allocation3 + $0x58] sm:$0xff]
    %v1169 = vmul.f32 %v1167, %v1151
    %v1170 = vmul.f32 %v1168, %v1152
    %v1171 = vlaneseq
    %v1172 = vshrl.u32 %v1171, 7
    %v1173 = vsub.s32 3, %v1172
    %v1174 = vrot.slane %v988, %v1173
    %v1175 = vmul.f32 %v1174, %v1163
    %v1176 = vmul.f32 %v1174, %v1164
    %v1177 = vadd.f32 %v1169, %v1175
    %v1178 = vadd.f32 %v1170, %v1176
    %v1179 = vmul.f32 %v1177, %v1165
    %v1180 = vmul.f32 %v1178, %v1166
    %v1181 = vadd.f32 %v1179, %v1180
    %v1182 = vrot.slane %v1181, 4
    %v1183 = vadd.f32 %v1181, %v1182
    %v1184 = vrot.slane %v1183, 2
    %v1185 = vadd.f32 %v1183, %v1184
    %v1186 = vrot.slane %v1185, 1
    %v1187 = vadd.f32 %v1185, %v1186
    %1188 = vst [vmem:[#allocation4 + $0x3] sm:$0x1] %v1187
    %v1189 = vld [vmem:[#allocation2 + $0x20] sm:$0xff]
    %v1190 = vld [vmem:[#allocation2 + $0x60] sm:$0xff]
    %v1191 = vld [vmem:[#allocation2 + $0xa0] sm:$0xff]
    %v1192 = vld [vmem:[#allocation2 + $0xe0] sm:$0xff]
    %v1193 = vld [vmem:[#allocation3 + $0x20] sm:$0xff]
    %v1194 = vld [vmem:[#allocation3 + $0x60] sm:$0xff]
    %v1195 = vmul.f32 %v1193, %v1177
    %v1196 = vmul.f32 %v1194, %v1178
    %v1197 = vlaneseq
    %v1198 = vshrl.u32 %v1197, 7
    %v1199 = vsub.s32 4, %v1198
    %v1200 = vrot.slane %v988, %v1199
    %v1201 = vmul.f32 %v1200, %v1189
    %v1202 = vmul.f32 %v1200, %v1190
    %v1203 = vadd.f32 %v1195, %v1201
    %v1204 = vadd.f32 %v1196, %v1202
    %v1205 = vmul.f32 %v1203, %v1191
    %v1206 = vmul.f32 %v1204, %v1192
    %v1207 = vadd.f32 %v1205, %v1206
    %v1208 = vrot.slane %v1207, 4
    %v1209 = vadd.f32 %v1207, %v1208
    %v1210 = vrot.slane %v1209, 2
    %v1211 = vadd.f32 %v1209, %v1210
    %v1212 = vrot.slane %v1211, 1
    %v1213 = vadd.f32 %v1211, %v1212
    %1214 = vst [vmem:[#allocation4 + $0x4] sm:$0x1] %v1213
    %v1215 = vld [vmem:[#allocation2 + $0x28] sm:$0xff]
    %v1216 = vld [vmem:[#allocation2 + $0x68] sm:$0xff]
    %v1217 = vld [vmem:[#allocation2 + $0xa8] sm:$0xff]
    %v1218 = vld [vmem:[#allocation2 + $0xe8] sm:$0xff]
    %v1219 = vld [vmem:[#allocation3 + $0x28] sm:$0xff]
    %v1220 = vld [vmem:[#allocation3 + $0x68] sm:$0xff]
    %v1221 = vmul.f32 %v1219, %v1203
    %v1222 = vmul.f32 %v1220, %v1204
    %v1223 = vlaneseq
    %v1224 = vshrl.u32 %v1223, 7
    %v1225 = vsub.s32 5, %v1224
    %v1226 = vrot.slane %v988, %v1225
    %v1227 = vmul.f32 %v1226, %v1215
    %v1228 = vmul.f32 %v1226, %v1216
    %v1229 = vadd.f32 %v1221, %v1227
    %v1230 = vadd.f32 %v1222, %v1228
    %v1231 = vmul.f32 %v1229, %v1217
    %v1232 = vmul.f32 %v1230, %v1218
    %v1233 = vadd.f32 %v1231, %v1232
    %v1234 = vrot.slane %v1233, 4
    %v1235 = vadd.f32 %v1233, %v1234
    %v1236 = vrot.slane %v1235, 2
    %v1237 = vadd.f32 %v1235, %v1236
    %v1238 = vrot.slane %v1237, 1
    %v1239 = vadd.f32 %v1237, %v1238
    %1240 = vst [vmem:[#allocation4 + $0x5] sm:$0x1] %v1239
    %v1241 = vld [vmem:[#allocation2 + $0x30] sm:$0xff]
    %v1242 = vld [vmem:[#allocation2 + $0x70] sm:$0xff]
    %v1243 = vld [vmem:[#allocation2 + $0xb0] sm:$0xff]
    %v1244 = vld [vmem:[#allocation2 + $0xf0] sm:$0xff]
    %v1245 = vld [vmem:[#allocation3 + $0x30] sm:$0xff]
    %v1246 = vld [vmem:[#allocation3 + $0x70] sm:$0xff]
    %v1247 = vmul.f32 %v1245, %v1229
    %v1248 = vmul.f32 %v1246, %v1230
    %v1249 = vlaneseq
    %v1250 = vshrl.u32 %v1249, 7
    %v1251 = vsub.s32 6, %v1250
    %v1252 = vrot.slane %v988, %v1251
    %v1253 = vmul.f32 %v1252, %v1241
    %v1254 = vmul.f32 %v1252, %v1242
    %v1255 = vadd.f32 %v1247, %v1253
    %v1256 = vadd.f32 %v1248, %v1254
    %v1257 = vmul.f32 %v1255, %v1243
    %v1258 = vmul.f32 %v1256, %v1244
    %v1259 = vadd.f32 %v1257, %v1258
    %v1260 = vrot.slane %v1259, 4
    %v1261 = vadd.f32 %v1259, %v1260
    %v1262 = vrot.slane %v1261, 2
    %v1263 = vadd.f32 %v1261, %v1262
    %v1264 = vrot.slane %v1263, 1
    %v1265 = vadd.f32 %v1263, %v1264
    %1266 = vst [vmem:[#allocation4 + $0x6] sm:$0x1] %v1265
    %v1267 = vld [vmem:[#allocation2 + $0x38] sm:$0xff]
    %v1268 = vld [vmem:[#allocation2 + $0x78] sm:$0xff]
    %v1269 = vld [vmem:[#allocation2 + $0xb8] sm:$0xff]
    %v1270 = vld [vmem:[#allocation2 + $0xf8] sm:$0xff]
    %v1271 = vld [vmem:[#allocation3 + $0x38] sm:$0xff]
    %v1272 = vld [vmem:[#allocation3 + $0x78] sm:$0xff]
    %v1273 = vmul.f32 %v1271, %v1255
    %v1274 = vmul.f32 %v1272, %v1256
    %v1275 = vlaneseq
    %v1276 = vshrl.u32 %v1275, 7
    %v1277 = vsub.s32 7, %v1276
    %v1278 = vrot.slane %v988, %v1277
    %v1279 = vmul.f32 %v1278, %v1267
    %v1280 = vmul.f32 %v1278, %v1268
    %v1281 = vadd.f32 %v1273, %v1279
    %v1282 = vadd.f32 %v1274, %v1280
    %v1283 = vmul.f32 %v1281, %v1269
    %v1284 = vmul.f32 %v1282, %v1270
    %v1285 = vadd.f32 %v1283, %v1284
    %v1286 = vrot.slane %v1285, 4
    %v1287 = vadd.f32 %v1285, %v1286
    %v1288 = vrot.slane %v1287, 2
    %v1289 = vadd.f32 %v1287, %v1288
    %v1290 = vrot.slane %v1289, 1
    %v1291 = vadd.f32 %v1289, %v1290
    %1292 = vst [vmem:[#allocation4 + $0x7] sm:$0x1] %v1291
    %v1293 = vld [vmem:[#allocation4] sm:$0xff]
    %v1294 = vlaneseq
    %v1295 = vshrl.u32 %v1294, 7
    %v1296 = vsub.s32 4, %v1295
    %v1297 = vrot.slane %v133, %v1296
    %v1298 = vmul.f32 %v420, %v1297
    %v1299 = vadd.f32 %v1293, %v1298
    %v1300 = vmul.f32 %v358, 0.5
    %v1301 = vtanh.pop %v1300
    %v1302 = vadd.f32 %v1301, 1.0
    %v1303 = vmul.f32 %v1302, 0.5
    %v1304 = vmul.f32 %v358, %v1303
    %v1305 = vmul.f32 %v1299, %v1304
    %1307 = vrot.lane.b32.xlu0 %v1305, 64
    %v1308 = vpop.permute.xlu0 %1307
    %s1309 = scalar_lea.vmem [#allocation12], 64
    %v1310 = vld [vmem:[%s1309] sm:$0xff]
    %v1311 = vld [vmem:[%s1309 + $0x8] sm:$0xff]
    %v1312 = vld [vmem:[%s1309 + $0x10] sm:$0xff]
    %v1313 = vld [vmem:[%s1309 + $0x18] sm:$0xff]
    %v1314 = vld [vmem:[%s1309 + $0x20] sm:$0xff]
    %v1315 = vld [vmem:[%s1309 + $0x28] sm:$0xff]
    %v1316 = vld [vmem:[%s1309 + $0x30] sm:$0xff]
    %v1317 = vld [vmem:[%s1309 + $0x38] sm:$0xff]
    %s1318 = scalar_lea.vmem [#allocation9], 32
    %v1319 = vld [vmem:[%s1318] sm:$0xff]
    %v1320 = vld [vmem:[%s1318 + $0x8] sm:$0xff]
    %v1321 = vld [vmem:[%s1318 + $0x10] sm:$0xff]
    %v1322 = vld [vmem:[%s1318 + $0x18] sm:$0xff]
    %v1323 = vsel %vm352, %v1305, 0
    %v1325 = vsel %vm352, %v1308, 0
    %1327 = vmatprep.subr.mxu0 0.0
    %1328 = vmatpush1.msra.mxu0 %v1310
    %1329 = vmatprep.subr.mxu0 0.0
    %1330 = vmatpush1.msra.mxu0 %v1311
    %1331 = vmatprep.subr.mxu0 0.0
    %1332 = vmatpush1.msra.mxu0 %v1312
    %1333 = vmatprep.subr.mxu0 0.0
    %1334 = vmatpush1.msra.mxu0 %v1313
    %1335 = vmatprep.subr.mxu0 0.0
    %1336 = vmatpush1.msra.mxu0 %v1314
    %1337 = vmatprep.subr.mxu0 0.0
    %1338 = vmatpush1.msra.mxu0 %v1315
    %1339 = vmatprep.subr.mxu0 0.0
    %1340 = vmatpush1.msra.mxu0 %v1316
    %1341 = vmatprep.subr.mxu0 0.0
    %1342 = vmatpush1.msra.mxu0 %v1317
    %1343 = vmatprep.subr.mxu0 0.0
    %1344 = vmatpush1.msra.mxu0 0.0
    %1345 = vmatprep.subr.mxu0 0.0
    %1346 = vmatpush1.msra.mxu0 0.0
    %1347 = vmatprep.subr.mxu0 0.0
    %1348 = vmatpush1.msra.mxu0 0.0
    %1349 = vmatprep.subr.mxu0 0.0
    %1350 = vmatpush1.msra.mxu0 0.0
    %1351 = vmatprep.subr.mxu0 0.0
    %1352 = vmatpush1.msra.mxu0 0.0
    %1353 = vmatprep.subr.mxu0 0.0
    %1354 = vmatpush1.msra.mxu0 0.0
    %1355 = vmatprep.subr.mxu0 0.0
    %1356 = vmatpush1.msra.mxu0 0.0
    %1357 = vmatprep.subr.mxu0 0.0
    %1358 = vmatpush1.msra.mxu0 0.0
    %1359 = vmatprep.subr.mxu0 0.0
    %1360 = vmatpush1.msra.mxu0 0.0
    %1361 = vmatprep.subr.mxu0 0.0
    %1362 = vmatpush1.msra.mxu0 0.0
    %1363 = vmatprep.subr.mxu0 0.0
    %1364 = vmatpush1.msra.mxu0 0.0
    %1365 = vmatprep.subr.mxu0 0.0
    %1366 = vmatpush1.msra.mxu0 0.0
    %1367 = vmatprep.subr.mxu0 0.0
    %1368 = vmatpush1.msra.mxu0 0.0
    %1369 = vmatprep.subr.mxu0 0.0
    %1370 = vmatpush1.msra.mxu0 0.0
    %1371 = vmatprep.subr.mxu0 0.0
    %1372 = vmatpush1.msra.mxu0 0.0
    %1373 = vmatprep.subr.mxu0 0.0
    %1374 = vmatpush1.msra.mxu0 0.0
    %1375 = vmatprep.subr.mxu0 0.0
    %1376 = vmatpush1.msra.mxu0 0.0
    %1377 = vmatprep.subr.mxu0 0.0
    %1378 = vmatpush1.msra.mxu0 0.0
    %1379 = vmatprep.subr.mxu0 0.0
    %1380 = vmatpush1.msra.mxu0 0.0
    %1381 = vmatprep.subr.mxu0 0.0
    %1382 = vmatpush1.msra.mxu0 0.0
    %1383 = vmatprep.subr.mxu0 0.0
    %1384 = vmatpush1.msra.mxu0 0.0
    %1385 = vmatprep.subr.mxu0 0.0
    %1386 = vmatpush1.msra.mxu0 0.0
    %1387 = vmatprep.subr.mxu0 0.0
    %1388 = vmatpush1.msra.mxu0 0.0
    %1389 = vmatprep.subr.mxu0 0.0
    %1390 = vmatpush1.msra.mxu0 0.0
    %1391 = vmatprep.mubr.f32.mxu0 0.0
    %1392 = vmatmul.mubr.f32.gmra.mrb[0].mxu0 %v1323
    %v1393 = vpop.f32.mrb[0].mxu0
    %v1394 = vadd.f32 %v211, %v1393
    %v1395 = vpop.f32.mrb[0].mxu0
    %1396 = vmatprep.mubr.f32.mxu0 0.0
    %1397 = vmatmul.mubr.f32.gmra.mrb[0].mxu0 %v1325
    %v1398 = vpop.f32.mrb[0].mxu0
    %v1399 = vadd.f32 %v216, %v1398
    %v1400 = vpop.f32.mrb[0].mxu0
    %1401 = vdwg.mxu0
    %1402 = vadd.xlane.f32.xlu0 %v1394
    %v1403 = vpop.xlane.xlu0 %1402
    %1404 = vadd.xlane.f32.xlu0 %v1399
    %v1405 = vpop.xlane.xlu0 %1404
    %v1406 = vmul.f32 %v1403, 0.03125
    %v1407 = vmul.f32 %v1405, 0.03125
    %v1408 = vmul.f32 %v1394, %v1394
    %v1409 = vmul.f32 %v1399, %v1399
    %1410 = vadd.xlane.f32.xlu0 %v1408
    %v1411 = vpop.xlane.xlu0 %1410
    %1412 = vadd.xlane.f32.xlu0 %v1409
    %v1413 = vpop.xlane.xlu0 %1412
    %v1414 = vmul.f32 %v1411, 0.03125
    %v1415 = vmul.f32 %v1413, 0.03125
    %v1416 = vmul.f32 %v1406, %v1406
    %v1417 = vmul.f32 %v1407, %v1407
    %v1418 = vsub.f32 %v1414, %v1416
    %v1419 = vsub.f32 %v1415, %v1417
    %v1420 = vsub.f32 %v1394, %v1406
    %v1421 = vsub.f32 %v1399, %v1407
    %v1422 = vadd.f32 %v1418, 1e-05
    %v1423 = vadd.f32 %v1419, 1e-05
    %v1424 = vrsqrt.pop %v1422
    %v1425 = vrsqrt.pop %v1423
    %v1426 = vmul.f32 %v1420, %v1424
    %v1427 = vmul.f32 %v1421, %v1425
    %v1428 = vlaneseq
    %v1429 = vshrl.u32 %v1428, 7
    %v1430 = vsub.s32 0, %v1429
    %v1431 = vrot.slane %v1319, %v1430
    %v1432 = vmul.f32 %v1426, %v1431
    %v1433 = vmul.f32 %v1427, %v1431
    %v1434 = vlaneseq
    %v1435 = vshrl.u32 %v1434, 7
    %v1436 = vsub.s32 1, %v1435
    %v1437 = vrot.slane %v1319, %v1436
    %v1438 = vadd.f32 %v1432, %v1437
    %v1439 = vadd.f32 %v1433, %v1437
    %s1440 = scalar_lea.vmem [#allocation10], 128
    %v1441 = vld [vmem:[%s1440] sm:$0xff]
    %v1442 = vld [vmem:[%s1440 + $0x8] sm:$0xff]
    %v1443 = vld [vmem:[%s1440 + $0x10] sm:$0xff]
    %v1444 = vld [vmem:[%s1440 + $0x18] sm:$0xff]
    %v1445 = vld [vmem:[%s1440 + $0x20] sm:$0xff]
    %v1446 = vld [vmem:[%s1440 + $0x28] sm:$0xff]
    %v1447 = vld [vmem:[%s1440 + $0x30] sm:$0xff]
    %v1448 = vld [vmem:[%s1440 + $0x38] sm:$0xff]
    %v1449 = vld [vmem:[%s1440 + $0x40] sm:$0xff]
    %v1450 = vld [vmem:[%s1440 + $0x48] sm:$0xff]
    %v1451 = vld [vmem:[%s1440 + $0x50] sm:$0xff]
    %v1452 = vld [vmem:[%s1440 + $0x58] sm:$0xff]
    %v1453 = vld [vmem:[%s1440 + $0x60] sm:$0xff]
    %v1454 = vld [vmem:[%s1440 + $0x68] sm:$0xff]
    %v1455 = vld [vmem:[%s1440 + $0x70] sm:$0xff]
    %v1456 = vld [vmem:[%s1440 + $0x78] sm:$0xff]
    %1457 = vmatprep.subr.mxu0 0.0
    %1458 = vmatpush1.msra.mxu0 %v1441
    %1459 = vmatprep.subr.mxu0 0.0
    %1460 = vmatpush1.msra.mxu0 %v1442
    %1461 = vmatprep.subr.mxu0 0.0
    %1462 = vmatpush1.msra.mxu0 %v1443
    %1463 = vmatprep.subr.mxu0 0.0
    %1464 = vmatpush1.msra.mxu0 %v1444
    %1465 = vmatprep.subr.mxu0 0.0
    %1466 = vmatpush1.msra.mxu0 %v1445
    %1467 = vmatprep.subr.mxu0 0.0
    %1468 = vmatpush1.msra.mxu0 %v1446
    %1469 = vmatprep.subr.mxu0 0.0
    %1470 = vmatpush1.msra.mxu0 %v1447
    %1471 = vmatprep.subr.mxu0 0.0
    %1472 = vmatpush1.msra.mxu0 %v1448
    %1473 = vmatprep.subr.mxu0 0.0
    %1474 = vmatpush1.msra.mxu0 %v1449
    %1475 = vmatprep.subr.mxu0 0.0
    %1476 = vmatpush1.msra.mxu0 %v1450
    %1477 = vmatprep.subr.mxu0 0.0
    %1478 = vmatpush1.msra.mxu0 %v1451
    %1479 = vmatprep.subr.mxu0 0.0
    %1480 = vmatpush1.msra.mxu0 %v1452
    %1481 = vmatprep.subr.mxu0 0.0
    %1482 = vmatpush1.msra.mxu0 %v1453
    %1483 = vmatprep.subr.mxu0 0.0
    %1484 = vmatpush1.msra.mxu0 %v1454
    %1485 = vmatprep.subr.mxu0 0.0
    %1486 = vmatpush1.msra.mxu0 %v1455
    %1487 = vmatprep.subr.mxu0 0.0
    %1488 = vmatpush1.msra.mxu0 %v1456
    %1489 = vmatprep.subr.mxu0 0.0
    %1490 = vmatpush1.msra.mxu0 0.0
    %1491 = vmatprep.subr.mxu0 0.0
    %1492 = vmatpush1.msra.mxu0 0.0
    %1493 = vmatprep.subr.mxu0 0.0
    %1494 = vmatpush1.msra.mxu0 0.0
    %1495 = vmatprep.subr.mxu0 0.0
    %1496 = vmatpush1.msra.mxu0 0.0
    %1497 = vmatprep.subr.mxu0 0.0
    %1498 = vmatpush1.msra.mxu0 0.0
    %1499 = vmatprep.subr.mxu0 0.0
    %1500 = vmatpush1.msra.mxu0 0.0
    %1501 = vmatprep.subr.mxu0 0.0
    %1502 = vmatpush1.msra.mxu0 0.0
    %1503 = vmatprep.subr.mxu0 0.0
    %1504 = vmatpush1.msra.mxu0 0.0
    %1505 = vmatprep.subr.mxu0 0.0
    %1506 = vmatpush1.msra.mxu0 0.0
    %1507 = vmatprep.subr.mxu0 0.0
    %1508 = vmatpush1.msra.mxu0 0.0
    %1509 = vmatprep.subr.mxu0 0.0
    %1510 = vmatpush1.msra.mxu0 0.0
    %1511 = vmatprep.subr.mxu0 0.0
    %1512 = vmatpush1.msra.mxu0 0.0
    %1513 = vmatprep.subr.mxu0 0.0
    %1514 = vmatpush1.msra.mxu0 0.0
    %1515 = vmatprep.subr.mxu0 0.0
    %1516 = vmatpush1.msra.mxu0 0.0
    %1517 = vmatprep.subr.mxu0 0.0
    %1518 = vmatpush1.msra.mxu0 0.0
    %1519 = vmatprep.subr.mxu0 0.0
    %1520 = vmatpush1.msra.mxu0 0.0
    %1521 = vmatprep.mubr.f32.mxu0 0.0
    %1522 = vmatmul.mubr.f32.gmra.mrb[0].mxu0 %v1438
    %v1523 = vpop.f32.mrb[0].mxu0
    %v1524 = vadd.f32 0.0, %v1523
    %v1525 = vpop.f32.mrb[0].mxu0
    %1526 = vmatprep.mubr.f32.mxu0 0.0
    %1527 = vmatmul.mubr.f32.gmra.mrb[0].mxu0 %v1439
    %v1528 = vpop.f32.mrb[0].mxu0
    %v1529 = vadd.f32 0.0, %v1528
    %v1530 = vpop.f32.mrb[0].mxu0
    %1531 = vdwg.mxu0
    %1533 = vrot.lane.b32.xlu0 %v1529, 64
    %v1534 = vpop.permute.xlu0 %1533
    %v1536 = vsel %vm352, %v1524, %v1534
    %1538 = vrot.lane.b32.xlu0 %v1524, 64
    %v1539 = vpop.permute.xlu0 %1538
    %v1541 = vsel %vm352, %v1539, %v1529
    %v1543 = vrot.slane %v1536, 5
    %v1545 = vsel %vm362, 0.0, %v1543
    %v1546 = vlaneseq
    %v1547 = vshrl.u32 %v1546, 7
    %v1548 = vsub.s32 0, %v1547
    %v1549 = vrot.slane %v1320, %v1548
    %v1550 = vmul.f32 %v1545, %v1549
    %v1551 = vlaneseq
    %v1552 = vshrl.u32 %v1551, 7
    %v1553 = vsub.s32 2, %v1552
    %v1554 = vrot.slane %v1319, %v1553
    %v1555 = vadd.f32 %v1554, %v1550
    %v1556 = vlaneseq
    %v1557 = vshrl.u32 %v1556, 7
    %v1558 = vsub.s32 1, %v1557
    %v1559 = vrot.slane %v1320, %v1558
    %v1560 = vmul.f32 %v1545, %v1559
    %v1561 = vmul.f32 %v1543, %v1559
    %v1564 = vrot.slane %v1560, 1
    %v1565 = vrot.slane %v1561, 1
    %v1566 = vsel %vm382, %v1564, %v1565
    %v1568 = vadd.f32 %v1555, %v1566
    %v1569 = vlaneseq
    %v1570 = vshrl.u32 %v1569, 7
    %v1571 = vsub.s32 2, %v1570
    %v1572 = vrot.slane %v1320, %v1571
    %v1573 = vmul.f32 %v1545, %v1572
    %v1574 = vmul.f32 %v1543, %v1572
    %v1577 = vrot.slane %v1573, 2
    %v1578 = vrot.slane %v1574, 2
    %v1579 = vsel %vm396, %v1577, %v1578
    %v1581 = vadd.f32 %v1568, %v1579
    %v1582 = vlaneseq
    %v1583 = vshrl.u32 %v1582, 7
    %v1584 = vsub.s32 3, %v1583
    %v1585 = vrot.slane %v1320, %v1584
    %v1586 = vmul.f32 %v1545, %v1585
    %v1587 = vmul.f32 %v1543, %v1585
    %v1590 = vrot.slane %v1586, 3
    %v1591 = vrot.slane %v1587, 3
    %v1592 = vsel %vm410, %v1590, %v1591
    %v1594 = vadd.f32 %v1581, %v1592
    %v1595 = vmul.f32 %v1594, 0.5
    %v1596 = vtanh.pop %v1595
    %v1597 = vadd.f32 %v1596, 1.0
    %v1598 = vmul.f32 %v1597, 0.5
    %v1599 = vmul.f32 %v1594, %v1598
    %1601 = vrot.lane.b32.xlu0 %v1599, 64
    %v1602 = vpop.permute.xlu0 %1601
    %s1603 = scalar_lea.vmem [#allocation12], 128
    %v1604 = vld [vmem:[%s1603] sm:$0xff]
    %v1605 = vld [vmem:[%s1603 + $0x8] sm:$0xff]
    %v1606 = vld [vmem:[%s1603 + $0x10] sm:$0xff]
    %v1607 = vld [vmem:[%s1603 + $0x18] sm:$0xff]
    %v1608 = vld [vmem:[%s1603 + $0x20] sm:$0xff]
    %v1609 = vld [vmem:[%s1603 + $0x28] sm:$0xff]
    %v1610 = vld [vmem:[%s1603 + $0x30] sm:$0xff]
    %v1611 = vld [vmem:[%s1603 + $0x38] sm:$0xff]
    %v1612 = vsel %vm352, %v1599, 0
    %v1614 = vsel %vm352, %v1602, 0
    %1616 = vmatprep.subr.mxu0 0.0
    %1617 = vmatpush1.msra.mxu0 %v1604
    %1618 = vmatprep.subr.mxu0 0.0
    %1619 = vmatpush1.msra.mxu0 %v1605
    %1620 = vmatprep.subr.mxu0 0.0
    %1621 = vmatpush1.msra.mxu0 %v1606
    %1622 = vmatprep.subr.mxu0 0.0
    %1623 = vmatpush1.msra.mxu0 %v1607
    %1624 = vmatprep.subr.mxu0 0.0
    %1625 = vmatpush1.msra.mxu0 %v1608
    %1626 = vmatprep.subr.mxu0 0.0
    %1627 = vmatpush1.msra.mxu0 %v1609
    %1628 = vmatprep.subr.mxu0 0.0
    %1629 = vmatpush1.msra.mxu0 %v1610
    %1630 = vmatprep.subr.mxu0 0.0
    %1631 = vmatpush1.msra.mxu0 %v1611
    %1632 = vmatprep.subr.mxu0 0.0
    %1633 = vmatpush1.msra.mxu0 0.0
    %1634 = vmatprep.subr.mxu0 0.0
    %1635 = vmatpush1.msra.mxu0 0.0
    %1636 = vmatprep.subr.mxu0 0.0
    %1637 = vmatpush1.msra.mxu0 0.0
    %1638 = vmatprep.subr.mxu0 0.0
    %1639 = vmatpush1.msra.mxu0 0.0
    %1640 = vmatprep.subr.mxu0 0.0
    %1641 = vmatpush1.msra.mxu0 0.0
    %1642 = vmatprep.subr.mxu0 0.0
    %1643 = vmatpush1.msra.mxu0 0.0
    %1644 = vmatprep.subr.mxu0 0.0
    %1645 = vmatpush1.msra.mxu0 0.0
    %1646 = vmatprep.subr.mxu0 0.0
    %1647 = vmatpush1.msra.mxu0 0.0
    %1648 = vmatprep.subr.mxu0 0.0
    %1649 = vmatpush1.msra.mxu0 0.0
    %1650 = vmatprep.subr.mxu0 0.0
    %1651 = vmatpush1.msra.mxu0 0.0
    %1652 = vmatprep.subr.mxu0 0.0
    %1653 = vmatpush1.msra.mxu0 0.0
    %1654 = vmatprep.subr.mxu0 0.0
    %1655 = vmatpush1.msra.mxu0 0.0
    %1656 = vmatprep.subr.mxu0 0.0
    %1657 = vmatpush1.msra.mxu0 0.0
    %1658 = vmatprep.subr.mxu0 0.0
    %1659 = vmatpush1.msra.mxu0 0.0
    %1660 = vmatprep.subr.mxu0 0.0
    %1661 = vmatpush1.msra.mxu0 0.0
    %1662 = vmatprep.subr.mxu0 0.0
    %1663 = vmatpush1.msra.mxu0 0.0
    %1664 = vmatprep.subr.mxu0 0.0
    %1665 = vmatpush1.msra.mxu0 0.0
    %1666 = vmatprep.subr.mxu0 0.0
    %1667 = vmatpush1.msra.mxu0 0.0
    %1668 = vmatprep.subr.mxu0 0.0
    %1669 = vmatpush1.msra.mxu0 0.0
    %1670 = vmatprep.subr.mxu0 0.0
    %1671 = vmatpush1.msra.mxu0 0.0
    %1672 = vmatprep.subr.mxu0 0.0
    %1673 = vmatpush1.msra.mxu0 0.0
    %1674 = vmatprep.subr.mxu0 0.0
    %1675 = vmatpush1.msra.mxu0 0.0
    %1676 = vmatprep.subr.mxu0 0.0
    %1677 = vmatpush1.msra.mxu0 0.0
    %1678 = vmatprep.subr.mxu0 0.0
    %1679 = vmatpush1.msra.mxu0 0.0
    %1680 = vmatprep.mubr.f32.mxu0 0.0
    %1681 = vmatmul.mubr.f32.gmra.mrb[0].mxu0 %v1612
    %v1682 = vpop.f32.mrb[0].mxu0
    %v1683 = vadd.f32 0.0, %v1682
    %v1684 = vpop.f32.mrb[0].mxu0
    %1685 = vmatprep.mubr.f32.mxu0 0.0
    %1686 = vmatmul.mubr.f32.gmra.mrb[0].mxu0 %v1614
    %v1687 = vpop.f32.mrb[0].mxu0
    %v1688 = vadd.f32 0.0, %v1687
    %v1689 = vpop.f32.mrb[0].mxu0
    %1690 = vdwg.mxu0
    %1692 = vrot.lane.b32.xlu0 %v1688, 64
    %v1693 = vpop.permute.xlu0 %1692
    %v1695 = vsel %vm352, %v1683, %v1693
    %v1696 = vlaneseq
    %v1697 = vshrl.u32 %v1696, 7
    %v1698 = vsub.s32 3, %v1697
    %v1699 = vrot.slane %v1319, %v1698
    %v1700 = vadd.f32 %v1695, %v1699
    %vm1701 = vcmp.gt.f32.partialorder %v1700, 20.0
    %v1702 = vmin.f32 %v1700, 20.0
    %v1703 = vmul.f32 %v1702, 1.442695
    %v1704 = vpow.pop %v1703
    %v1705 = vadd.f32 %v1704, 1.0
    %v1706 = vlog2.pop %v1705
    %v1707 = vmul.f32 %v1706, 0.6931472
    %v1708 = vmul.f32 -0.5, %v1704
    %v1709 = vadd.f32 %v1708, 1.0
    %v1710 = vmul.f32 %v1709, %v1704
    %v1711 = vand.u32 2147483647, %v1704
    %vm1712 = vcmp.lt.f32.partialorder %v1711, 0.0004427343
    %v1713 = vsel %vm1712, %v1710, %v1707
    %v1714 = vsel %vm1701, %v1700, %v1713
    %v1715 = vld [vmem:[#allocation13] sm:$0xff]
    %v1716 = vld [vmem:[#allocation13 + $0x8] sm:$0xff]
    %v1717 = vld [vmem:[#allocation13 + $0x10] sm:$0xff]
    %v1718 = vld [vmem:[#allocation13 + $0x18] sm:$0xff]
    %v1719 = vld [vmem:[#allocation13 + $0x20] sm:$0xff]
    %v1720 = vld [vmem:[#allocation13 + $0x28] sm:$0xff]
    %v1721 = vld [vmem:[#allocation13 + $0x30] sm:$0xff]
    %v1722 = vld [vmem:[#allocation13 + $0x38] sm:$0xff]
    %v1723 = vld [vmem:[#allocation13 + $0x40] sm:$0xff]
    %v1724 = vld [vmem:[#allocation13 + $0x48] sm:$0xff]
    %v1725 = vld [vmem:[#allocation13 + $0x50] sm:$0xff]
    %v1726 = vld [vmem:[#allocation13 + $0x58] sm:$0xff]
    %v1727 = vld [vmem:[#allocation13 + $0x60] sm:$0xff]
    %v1728 = vld [vmem:[#allocation13 + $0x68] sm:$0xff]
    %v1729 = vld [vmem:[#allocation13 + $0x70] sm:$0xff]
    %v1730 = vld [vmem:[#allocation13 + $0x78] sm:$0xff]
    %1732 = vrot.lane.b32.xlu0 %v1683, 64
    %v1733 = vpop.permute.xlu0 %1732
    %1735 = vxpose.xlu0.b32.start [1/16] %v1733, 128
    %1736 = vxpose.xlu0.b32.cont [2/16] %v1693, 128
    %1737 = vxpose.xlu0.b32.cont [3/16] 0.0, 128
    %1738 = vxpose.xlu0.b32.cont [4/16] 0.0, 128
    %1739 = vxpose.xlu0.b32.cont [5/16] 0.0, 128
    %1740 = vxpose.xlu0.b32.cont [6/16] 0.0, 128
    %1741 = vxpose.xlu0.b32.cont [7/16] 0.0, 128
    %1742 = vxpose.xlu0.b32.cont [8/16] 0.0, 128
    %1743 = vxpose.xlu0.b32.cont [9/16] 0.0, 128
    %1744 = vxpose.xlu0.b32.cont [10/16] 0.0, 128
    %1745 = vxpose.xlu0.b32.cont [11/16] 0.0, 128
    %1746 = vxpose.xlu0.b32.cont [12/16] 0.0, 128
    %1747 = vxpose.xlu0.b32.cont [13/16] 0.0, 128
    %1748 = vxpose.xlu0.b32.cont [14/16] 0.0, 128
    %1749 = vxpose.xlu0.b32.cont [15/16] 0.0, 128
    %1750 = vxpose.xlu0.b32.end [16/16] 0.0, 128
    %v1751 = vpop.trf.xlu0
    %v1752 = vpop.trf.xlu0
    %v1753 = vpop.trf.xlu0
    %v1754 = vpop.trf.xlu0
    %v1755 = vpop.trf.xlu0
    %v1756 = vpop.trf.xlu0
    %v1757 = vpop.trf.xlu0
    %v1758 = vpop.trf.xlu0
    %v1759 = vpop.trf.xlu0
    %v1760 = vpop.trf.xlu0
    %v1761 = vpop.trf.xlu0
    %v1762 = vpop.trf.xlu0
    %v1763 = vpop.trf.xlu0
    %v1764 = vpop.trf.xlu0
    %v1765 = vpop.trf.xlu0
    %v1766 = vpop.trf.xlu0
    %v1768 = vsel %vm587, %v1751, 0
    %v1771 = vsel %vm587, %v1752, 0
    %v1774 = vsel %vm587, %v1753, 0
    %v1777 = vsel %vm587, %v1754, 0
    %1779 = vmatprep.subr.mxu0 %v1716
    %1780 = vmatpush1.msra.mxu0 %v1715
    %1781 = vmatprep.subr.mxu0 %v1724
    %1782 = vmatpush1.msra.mxu0 %v1723
    %1783 = vmatprep.subr.mxu0 0.0
    %1784 = vmatpush1.msra.mxu0 0.0
    %1785 = vmatprep.subr.mxu0 0.0
    %1786 = vmatpush1.msra.mxu0 0.0
    %1787 = vmatprep.subr.mxu0 0.0
    %1788 = vmatpush1.msra.mxu0 0.0
    %1789 = vmatprep.subr.mxu0 0.0
    %1790 = vmatpush1.msra.mxu0 0.0
    %1791 = vmatprep.subr.mxu0 0.0
    %1792 = vmatpush1.msra.mxu0 0.0
    %1793 = vmatprep.subr.mxu0 0.0
    %1794 = vmatpush1.msra.mxu0 0.0
    %1795 = vmatprep.subr.mxu0 0.0
    %1796 = vmatpush1.msra.mxu0 0.0
    %1797 = vmatprep.subr.mxu0 0.0
    %1798 = vmatpush1.msra.mxu0 0.0
    %1799 = vmatprep.subr.mxu0 0.0
    %1800 = vmatpush1.msra.mxu0 0.0
    %1801 = vmatprep.subr.mxu0 0.0
    %1802 = vmatpush1.msra.mxu0 0.0
    %1803 = vmatprep.subr.mxu0 0.0
    %1804 = vmatpush1.msra.mxu0 0.0
    %1805 = vmatprep.subr.mxu0 0.0
    %1806 = vmatpush1.msra.mxu0 0.0
    %1807 = vmatprep.subr.mxu0 0.0
    %1808 = vmatpush1.msra.mxu0 0.0
    %1809 = vmatprep.subr.mxu0 0.0
    %1810 = vmatpush1.msra.mxu0 0.0
    %1811 = vmatprep.subr.mxu0 0.0
    %1812 = vmatpush1.msra.mxu0 0.0
    %1813 = vmatprep.subr.mxu0 0.0
    %1814 = vmatpush1.msra.mxu0 0.0
    %1815 = vmatprep.subr.mxu0 0.0
    %1816 = vmatpush1.msra.mxu0 0.0
    %1817 = vmatprep.subr.mxu0 0.0
    %1818 = vmatpush1.msra.mxu0 0.0
    %1819 = vmatprep.subr.mxu0 0.0
    %1820 = vmatpush1.msra.mxu0 0.0
    %1821 = vmatprep.subr.mxu0 0.0
    %1822 = vmatpush1.msra.mxu0 0.0
    %1823 = vmatprep.subr.mxu0 0.0
    %1824 = vmatpush1.msra.mxu0 0.0
    %1825 = vmatprep.subr.mxu0 0.0
    %1826 = vmatpush1.msra.mxu0 0.0
    %1827 = vmatprep.subr.mxu0 0.0
    %1828 = vmatpush1.msra.mxu0 0.0
    %1829 = vmatprep.subr.mxu0 0.0
    %1830 = vmatpush1.msra.mxu0 0.0
    %1831 = vmatprep.subr.mxu0 0.0
    %1832 = vmatpush1.msra.mxu0 0.0
    %1833 = vmatprep.subr.mxu0 0.0
    %1834 = vmatpush1.msra.mxu0 0.0
    %1835 = vmatprep.subr.mxu0 0.0
    %1836 = vmatpush1.msra.mxu0 0.0
    %1837 = vmatprep.subr.mxu0 0.0
    %1838 = vmatpush1.msra.mxu0 0.0
    %1839 = vmatprep.subr.mxu0 0.0
    %1840 = vmatpush1.msra.mxu0 0.0
    %1841 = vmatprep.subr.mxu0 0.0
    %1842 = vmatpush1.msra.mxu0 0.0
    %1843 = vmatprep.mubr.f32.mxu0 0.0
    %1844 = vmatmul.mubr.f32.gmra.mrb[0].mxu0 %v1768
    %v1845 = vpop.f32.mrb[0].mxu0
    %v1846 = vadd.f32 0.0, %v1845
    %v1847 = vpop.f32.mrb[0].mxu0
    %v1848 = vadd.f32 0.0, %v1847
    %1849 = vmatprep.mubr.f32.mxu0 0.0
    %1850 = vmatmul.mubr.f32.gmra.mrb[0].mxu0 %v1771
    %v1851 = vpop.f32.mrb[0].mxu0
    %v1852 = vadd.f32 0.0, %v1851
    %v1853 = vpop.f32.mrb[0].mxu0
    %v1854 = vadd.f32 0.0, %v1853
    %1855 = vmatprep.mubr.f32.mxu0 0.0
    %1856 = vmatmul.mubr.f32.gmra.mrb[0].mxu0 %v1774
    %v1857 = vpop.f32.mrb[0].mxu0
    %v1858 = vadd.f32 0.0, %v1857
    %v1859 = vpop.f32.mrb[0].mxu0
    %v1860 = vadd.f32 0.0, %v1859
    %1861 = vmatprep.mubr.f32.mxu0 0.0
    %1862 = vmatmul.mubr.f32.gmra.mrb[0].mxu0 %v1777
    %v1863 = vpop.f32.mrb[0].mxu0
    %v1864 = vadd.f32 0.0, %v1863
    %v1865 = vpop.f32.mrb[0].mxu0
    %v1866 = vadd.f32 0.0, %v1865
    %1867 = vdwg.mxu0
    %1868 = vmatprep.subr.mxu0 %v1718
    %1869 = vmatpush1.msra.mxu0 %v1717
    %1870 = vmatprep.subr.mxu0 %v1726
    %1871 = vmatpush1.msra.mxu0 %v1725
    %1872 = vmatprep.subr.mxu0 0.0
    %1873 = vmatpush1.msra.mxu0 0.0
    %1874 = vmatprep.subr.mxu0 0.0
    %1875 = vmatpush1.msra.mxu0 0.0
    %1876 = vmatprep.subr.mxu0 0.0
    %1877 = vmatpush1.msra.mxu0 0.0
    %1878 = vmatprep.subr.mxu0 0.0
    %1879 = vmatpush1.msra.mxu0 0.0
    %1880 = vmatprep.subr.mxu0 0.0
    %1881 = vmatpush1.msra.mxu0 0.0
    %1882 = vmatprep.subr.mxu0 0.0
    %1883 = vmatpush1.msra.mxu0 0.0
    %1884 = vmatprep.subr.mxu0 0.0
    %1885 = vmatpush1.msra.mxu0 0.0
    %1886 = vmatprep.subr.mxu0 0.0
    %1887 = vmatpush1.msra.mxu0 0.0
    %1888 = vmatprep.subr.mxu0 0.0
    %1889 = vmatpush1.msra.mxu0 0.0
    %1890 = vmatprep.subr.mxu0 0.0
    %1891 = vmatpush1.msra.mxu0 0.0
    %1892 = vmatprep.subr.mxu0 0.0
    %1893 = vmatpush1.msra.mxu0 0.0
    %1894 = vmatprep.subr.mxu0 0.0
    %1895 = vmatpush1.msra.mxu0 0.0
    %1896 = vmatprep.subr.mxu0 0.0
    %1897 = vmatpush1.msra.mxu0 0.0
    %1898 = vmatprep.subr.mxu0 0.0
    %1899 = vmatpush1.msra.mxu0 0.0
    %1900 = vmatprep.subr.mxu0 0.0
    %1901 = vmatpush1.msra.mxu0 0.0
    %1902 = vmatprep.subr.mxu0 0.0
    %1903 = vmatpush1.msra.mxu0 0.0
    %1904 = vmatprep.subr.mxu0 0.0
    %1905 = vmatpush1.msra.mxu0 0.0
    %1906 = vmatprep.subr.mxu0 0.0
    %1907 = vmatpush1.msra.mxu0 0.0
    %1908 = vmatprep.subr.mxu0 0.0
    %1909 = vmatpush1.msra.mxu0 0.0
    %1910 = vmatprep.subr.mxu0 0.0
    %1911 = vmatpush1.msra.mxu0 0.0
    %1912 = vmatprep.subr.mxu0 0.0
    %1913 = vmatpush1.msra.mxu0 0.0
    %1914 = vmatprep.subr.mxu0 0.0
    %1915 = vmatpush1.msra.mxu0 0.0
    %1916 = vmatprep.subr.mxu0 0.0
    %1917 = vmatpush1.msra.mxu0 0.0
    %1918 = vmatprep.subr.mxu0 0.0
    %1919 = vmatpush1.msra.mxu0 0.0
    %1920 = vmatprep.subr.mxu0 0.0
    %1921 = vmatpush1.msra.mxu0 0.0
    %1922 = vmatprep.subr.mxu0 0.0
    %1923 = vmatpush1.msra.mxu0 0.0
    %1924 = vmatprep.subr.mxu0 0.0
    %1925 = vmatpush1.msra.mxu0 0.0
    %1926 = vmatprep.subr.mxu0 0.0
    %1927 = vmatpush1.msra.mxu0 0.0
    %1928 = vmatprep.subr.mxu0 0.0
    %1929 = vmatpush1.msra.mxu0 0.0
    %1930 = vmatprep.subr.mxu0 0.0
    %1931 = vmatpush1.msra.mxu0 0.0
    %1932 = vmatprep.mubr.f32.mxu0 0.0
    %1933 = vmatmul.mubr.f32.gmra.mrb[0].mxu0 %v1768
    %v1934 = vpop.f32.mrb[0].mxu0
    %v1935 = vadd.f32 0.0, %v1934
    %v1936 = vpop.f32.mrb[0].mxu0
    %v1937 = vadd.f32 0.0, %v1936
    %1938 = vmatprep.mubr.f32.mxu0 0.0
    %1939 = vmatmul.mubr.f32.gmra.mrb[0].mxu0 %v1771
    %v1940 = vpop.f32.mrb[0].mxu0
    %v1941 = vadd.f32 0.0, %v1940
    %v1942 = vpop.f32.mrb[0].mxu0
    %v1943 = vadd.f32 0.0, %v1942
    %1944 = vmatprep.mubr.f32.mxu0 0.0
    %1945 = vmatmul.mubr.f32.gmra.mrb[0].mxu0 %v1774
    %v1946 = vpop.f32.mrb[0].mxu0
    %v1947 = vadd.f32 0.0, %v1946
    %v1948 = vpop.f32.mrb[0].mxu0
    %v1949 = vadd.f32 0.0, %v1948
    %1950 = vmatprep.mubr.f32.mxu0 0.0
    %1951 = vmatmul.mubr.f32.gmra.mrb[0].mxu0 %v1777
    %v1952 = vpop.f32.mrb[0].mxu0
    %v1953 = vadd.f32 0.0, %v1952
    %v1954 = vpop.f32.mrb[0].mxu0
    %v1955 = vadd.f32 0.0, %v1954
    %1956 = vdwg.mxu0
    %1957 = vmatprep.subr.mxu0 %v1720
    %1958 = vmatpush1.msra.mxu0 %v1719
    %1959 = vmatprep.subr.mxu0 %v1728
    %1960 = vmatpush1.msra.mxu0 %v1727
    %1961 = vmatprep.subr.mxu0 0.0
    %1962 = vmatpush1.msra.mxu0 0.0
    %1963 = vmatprep.subr.mxu0 0.0
    %1964 = vmatpush1.msra.mxu0 0.0
    %1965 = vmatprep.subr.mxu0 0.0
    %1966 = vmatpush1.msra.mxu0 0.0
    %1967 = vmatprep.subr.mxu0 0.0
    %1968 = vmatpush1.msra.mxu0 0.0
    %1969 = vmatprep.subr.mxu0 0.0
    %1970 = vmatpush1.msra.mxu0 0.0
    %1971 = vmatprep.subr.mxu0 0.0
    %1972 = vmatpush1.msra.mxu0 0.0
    %1973 = vmatprep.subr.mxu0 0.0
    %1974 = vmatpush1.msra.mxu0 0.0
    %1975 = vmatprep.subr.mxu0 0.0
    %1976 = vmatpush1.msra.mxu0 0.0
    %1977 = vmatprep.subr.mxu0 0.0
    %1978 = vmatpush1.msra.mxu0 0.0
    %1979 = vmatprep.subr.mxu0 0.0
    %1980 = vmatpush1.msra.mxu0 0.0
    %1981 = vmatprep.subr.mxu0 0.0
    %1982 = vmatpush1.msra.mxu0 0.0
    %1983 = vmatprep.subr.mxu0 0.0
    %1984 = vmatpush1.msra.mxu0 0.0
    %1985 = vmatprep.subr.mxu0 0.0
    %1986 = vmatpush1.msra.mxu0 0.0
    %1987 = vmatprep.subr.mxu0 0.0
    %1988 = vmatpush1.msra.mxu0 0.0
    %1989 = vmatprep.subr.mxu0 0.0
    %1990 = vmatpush1.msra.mxu0 0.0
    %1991 = vmatprep.subr.mxu0 0.0
    %1992 = vmatpush1.msra.mxu0 0.0
    %1993 = vmatprep.subr.mxu0 0.0
    %1994 = vmatpush1.msra.mxu0 0.0
    %1995 = vmatprep.subr.mxu0 0.0
    %1996 = vmatpush1.msra.mxu0 0.0
    %1997 = vmatprep.subr.mxu0 0.0
    %1998 = vmatpush1.msra.mxu0 0.0
    %1999 = vmatprep.subr.mxu0 0.0
    %2000 = vmatpush1.msra.mxu0 0.0
    %2001 = vmatprep.subr.mxu0 0.0
    %2002 = vmatpush1.msra.mxu0 0.0
    %2003 = vmatprep.subr.mxu0 0.0
    %2004 = vmatpush1.msra.mxu0 0.0
    %2005 = vmatprep.subr.mxu0 0.0
    %2006 = vmatpush1.msra.mxu0 0.0
    %2007 = vmatprep.subr.mxu0 0.0
    %2008 = vmatpush1.msra.mxu0 0.0
    %2009 = vmatprep.subr.mxu0 0.0
    %2010 = vmatpush1.msra.mxu0 0.0
    %2011 = vmatprep.subr.mxu0 0.0
    %2012 = vmatpush1.msra.mxu0 0.0
    %2013 = vmatprep.subr.mxu0 0.0
    %2014 = vmatpush1.msra.mxu0 0.0
    %2015 = vmatprep.subr.mxu0 0.0
    %2016 = vmatpush1.msra.mxu0 0.0
    %2017 = vmatprep.subr.mxu0 0.0
    %2018 = vmatpush1.msra.mxu0 0.0
    %2019 = vmatprep.subr.mxu0 0.0
    %2020 = vmatpush1.msra.mxu0 0.0
    %2021 = vmatprep.mubr.f32.mxu0 0.0
    %2022 = vmatmul.mubr.f32.gmra.mrb[0].mxu0 %v1768
    %v2023 = vpop.f32.mrb[0].mxu0
    %v2024 = vadd.f32 0.0, %v2023
    %v2025 = vpop.f32.mrb[0].mxu0
    %v2026 = vadd.f32 0.0, %v2025
    %2027 = vmatprep.mubr.f32.mxu0 0.0
    %2028 = vmatmul.mubr.f32.gmra.mrb[0].mxu0 %v1771
    %v2029 = vpop.f32.mrb[0].mxu0
    %v2030 = vadd.f32 0.0, %v2029
    %v2031 = vpop.f32.mrb[0].mxu0
    %v2032 = vadd.f32 0.0, %v2031
    %2033 = vmatprep.mubr.f32.mxu0 0.0
    %2034 = vmatmul.mubr.f32.gmra.mrb[0].mxu0 %v1774
    %v2035 = vpop.f32.mrb[0].mxu0
    %v2036 = vadd.f32 0.0, %v2035
    %v2037 = vpop.f32.mrb[0].mxu0
    %v2038 = vadd.f32 0.0, %v2037
    %2039 = vmatprep.mubr.f32.mxu0 0.0
    %2040 = vmatmul.mubr.f32.gmra.mrb[0].mxu0 %v1777
    %v2041 = vpop.f32.mrb[0].mxu0
    %v2042 = vadd.f32 0.0, %v2041
    %v2043 = vpop.f32.mrb[0].mxu0
    %v2044 = vadd.f32 0.0, %v2043
    %2045 = vdwg.mxu0
    %2046 = vmatprep.subr.mxu0 %v1722
    %2047 = vmatpush1.msra.mxu0 %v1721
    %2048 = vmatprep.subr.mxu0 %v1730
    %2049 = vmatpush1.msra.mxu0 %v1729
    %2050 = vmatprep.subr.mxu0 0.0
    %2051 = vmatpush1.msra.mxu0 0.0
    %2052 = vmatprep.subr.mxu0 0.0
    %2053 = vmatpush1.msra.mxu0 0.0
    %2054 = vmatprep.subr.mxu0 0.0
    %2055 = vmatpush1.msra.mxu0 0.0
    %2056 = vmatprep.subr.mxu0 0.0
    %2057 = vmatpush1.msra.mxu0 0.0
    %2058 = vmatprep.subr.mxu0 0.0
    %2059 = vmatpush1.msra.mxu0 0.0
    %2060 = vmatprep.subr.mxu0 0.0
    %2061 = vmatpush1.msra.mxu0 0.0
    %2062 = vmatprep.subr.mxu0 0.0
    %2063 = vmatpush1.msra.mxu0 0.0
    %2064 = vmatprep.subr.mxu0 0.0
    %2065 = vmatpush1.msra.mxu0 0.0
    %2066 = vmatprep.subr.mxu0 0.0
    %2067 = vmatpush1.msra.mxu0 0.0
    %2068 = vmatprep.subr.mxu0 0.0
    %2069 = vmatpush1.msra.mxu0 0.0
    %2070 = vmatprep.subr.mxu0 0.0
    %2071 = vmatpush1.msra.mxu0 0.0
    %2072 = vmatprep.subr.mxu0 0.0
    %2073 = vmatpush1.msra.mxu0 0.0
    %2074 = vmatprep.subr.mxu0 0.0
    %2075 = vmatpush1.msra.mxu0 0.0
    %2076 = vmatprep.subr.mxu0 0.0
    %2077 = vmatpush1.msra.mxu0 0.0
    %2078 = vmatprep.subr.mxu0 0.0
    %2079 = vmatpush1.msra.mxu0 0.0
    %2080 = vmatprep.subr.mxu0 0.0
    %2081 = vmatpush1.msra.mxu0 0.0
    %2082 = vmatprep.subr.mxu0 0.0
    %2083 = vmatpush1.msra.mxu0 0.0
    %2084 = vmatprep.subr.mxu0 0.0
    %2085 = vmatpush1.msra.mxu0 0.0
    %2086 = vmatprep.subr.mxu0 0.0
    %2087 = vmatpush1.msra.mxu0 0.0
    %2088 = vmatprep.subr.mxu0 0.0
    %2089 = vmatpush1.msra.mxu0 0.0
    %2090 = vmatprep.subr.mxu0 0.0
    %2091 = vmatpush1.msra.mxu0 0.0
    %2092 = vmatprep.subr.mxu0 0.0
    %2093 = vmatpush1.msra.mxu0 0.0
    %2094 = vmatprep.subr.mxu0 0.0
    %2095 = vmatpush1.msra.mxu0 0.0
    %2096 = vmatprep.subr.mxu0 0.0
    %2097 = vmatpush1.msra.mxu0 0.0
    %2098 = vmatprep.subr.mxu0 0.0
    %2099 = vmatpush1.msra.mxu0 0.0
    %2100 = vmatprep.subr.mxu0 0.0
    %2101 = vmatpush1.msra.mxu0 0.0
    %2102 = vmatprep.subr.mxu0 0.0
    %2103 = vmatpush1.msra.mxu0 0.0
    %2104 = vmatprep.subr.mxu0 0.0
    %2105 = vmatpush1.msra.mxu0 0.0
    %2106 = vmatprep.subr.mxu0 0.0
    %2107 = vmatpush1.msra.mxu0 0.0
    %2108 = vmatprep.subr.mxu0 0.0
    %2109 = vmatpush1.msra.mxu0 0.0
    %2110 = vmatprep.mubr.f32.mxu0 0.0
    %2111 = vmatmul.mubr.f32.gmra.mrb[0].mxu0 %v1768
    %v2112 = vpop.f32.mrb[0].mxu0
    %v2113 = vadd.f32 0.0, %v2112
    %v2114 = vpop.f32.mrb[0].mxu0
    %v2115 = vadd.f32 0.0, %v2114
    %2116 = vmatprep.mubr.f32.mxu0 0.0
    %2117 = vmatmul.mubr.f32.gmra.mrb[0].mxu0 %v1771
    %v2118 = vpop.f32.mrb[0].mxu0
    %v2119 = vadd.f32 0.0, %v2118
    %v2120 = vpop.f32.mrb[0].mxu0
    %v2121 = vadd.f32 0.0, %v2120
    %2122 = vmatprep.mubr.f32.mxu0 0.0
    %2123 = vmatmul.mubr.f32.gmra.mrb[0].mxu0 %v1774
    %v2124 = vpop.f32.mrb[0].mxu0
    %v2125 = vadd.f32 0.0, %v2124
    %v2126 = vpop.f32.mrb[0].mxu0
    %v2127 = vadd.f32 0.0, %v2126
    %2128 = vmatprep.mubr.f32.mxu0 0.0
    %2129 = vmatmul.mubr.f32.gmra.mrb[0].mxu0 %v1777
    %v2130 = vpop.f32.mrb[0].mxu0
    %v2131 = vadd.f32 0.0, %v2130
    %v2132 = vpop.f32.mrb[0].mxu0
    %v2133 = vadd.f32 0.0, %v2132
    %2134 = vdwg.mxu0
    %2135 = vst [vmem:[#allocation2] sm:$0xff] %v1846
    %2136 = vst [vmem:[#allocation2 + $0x8] sm:$0xff] %v1848
    %2137 = vst [vmem:[#allocation2 + $0x10] sm:$0xff] %v1935
    %2138 = vst [vmem:[#allocation2 + $0x18] sm:$0xff] %v1937
    %2139 = vst [vmem:[#allocation2 + $0x20] sm:$0xff] %v2024
    %2140 = vst [vmem:[#allocation2 + $0x28] sm:$0xff] %v2026
    %2141 = vst [vmem:[#allocation2 + $0x30] sm:$0xff] %v2113
    %2142 = vst [vmem:[#allocation2 + $0x38] sm:$0xff] %v2115
    %2143 = vst [vmem:[#allocation2 + $0x40] sm:$0xff] %v1852
    %2144 = vst [vmem:[#allocation2 + $0x48] sm:$0xff] %v1854
    %2145 = vst [vmem:[#allocation2 + $0x50] sm:$0xff] %v1941
    %2146 = vst [vmem:[#allocation2 + $0x58] sm:$0xff] %v1943
    %2147 = vst [vmem:[#allocation2 + $0x60] sm:$0xff] %v2030
    %2148 = vst [vmem:[#allocation2 + $0x68] sm:$0xff] %v2032
    %2149 = vst [vmem:[#allocation2 + $0x70] sm:$0xff] %v2119
    %2150 = vst [vmem:[#allocation2 + $0x78] sm:$0xff] %v2121
    %2151 = vst [vmem:[#allocation2 + $0x80] sm:$0xff] %v1858
    %2152 = vst [vmem:[#allocation2 + $0x88] sm:$0xff] %v1860
    %2153 = vst [vmem:[#allocation2 + $0x90] sm:$0xff] %v1947
    %2154 = vst [vmem:[#allocation2 + $0x98] sm:$0xff] %v1949
    %2155 = vst [vmem:[#allocation2 + $0xa0] sm:$0xff] %v2036
    %2156 = vst [vmem:[#allocation2 + $0xa8] sm:$0xff] %v2038
    %2157 = vst [vmem:[#allocation2 + $0xb0] sm:$0xff] %v2125
    %2158 = vst [vmem:[#allocation2 + $0xb8] sm:$0xff] %v2127
    %2159 = vst [vmem:[#allocation2 + $0xc0] sm:$0xff] %v1864
    %2160 = vst [vmem:[#allocation2 + $0xc8] sm:$0xff] %v1866
    %2161 = vst [vmem:[#allocation2 + $0xd0] sm:$0xff] %v1953
    %2162 = vst [vmem:[#allocation2 + $0xd8] sm:$0xff] %v1955
    %2163 = vst [vmem:[#allocation2 + $0xe0] sm:$0xff] %v2042
    %2164 = vst [vmem:[#allocation2 + $0xe8] sm:$0xff] %v2044
    %2165 = vst [vmem:[#allocation2 + $0xf0] sm:$0xff] %v2131
    %2166 = vst [vmem:[#allocation2 + $0xf8] sm:$0xff] %v2133
    %v2167 = vmul.f32 %v1714, %v1599
    %v2168 = vlaneseq
    %v2169 = vshrl.u32 %v2168, 7
    %v2170 = vsub.s32 0, %v2169
    %v2171 = vrot.slane %v1714, %v2170
    %v2172 = vmul.f32 %v2171, %v1321
    %v2173 = vmul.f32 %v2171, %v1322
    %v2174 = vmul.f32 %v2172, 1.442695
    %v2175 = vpow.pop %v2174
    %v2176 = vmul.f32 %v2173, 1.442695
    %v2177 = vpow.pop %v2176
    %2178 = vst [vmem:[#allocation3] sm:$0xff] %v2175
    %2179 = vst [vmem:[#allocation3 + $0x40] sm:$0xff] %v2177
    %v2180 = vlaneseq
    %v2181 = vshrl.u32 %v2180, 7
    %v2182 = vsub.s32 1, %v2181
    %v2183 = vrot.slane %v1714, %v2182
    %v2184 = vmul.f32 %v2183, %v1321
    %v2185 = vmul.f32 %v2183, %v1322
    %v2186 = vmul.f32 %v2184, 1.442695
    %v2187 = vpow.pop %v2186
    %v2188 = vmul.f32 %v2185, 1.442695
    %v2189 = vpow.pop %v2188
    %2190 = vst [vmem:[#allocation3 + $0x8] sm:$0xff] %v2187
    %2191 = vst [vmem:[#allocation3 + $0x48] sm:$0xff] %v2189
    %v2192 = vlaneseq
    %v2193 = vshrl.u32 %v2192, 7
    %v2194 = vsub.s32 2, %v2193
    %v2195 = vrot.slane %v1714, %v2194
    %v2196 = vmul.f32 %v2195, %v1321
    %v2197 = vmul.f32 %v2195, %v1322
    %v2198 = vmul.f32 %v2196, 1.442695
    %v2199 = vpow.pop %v2198
    %v2200 = vmul.f32 %v2197, 1.442695
    %v2201 = vpow.pop %v2200
    %2202 = vst [vmem:[#allocation3 + $0x10] sm:$0xff] %v2199
    %2203 = vst [vmem:[#allocation3 + $0x50] sm:$0xff] %v2201
    %v2204 = vlaneseq
    %v2205 = vshrl.u32 %v2204, 7
    %v2206 = vsub.s32 3, %v2205
    %v2207 = vrot.slane %v1714, %v2206
    %v2208 = vmul.f32 %v2207, %v1321
    %v2209 = vmul.f32 %v2207, %v1322
    %v2210 = vmul.f32 %v2208, 1.442695
    %v2211 = vpow.pop %v2210
    %v2212 = vmul.f32 %v2209, 1.442695
    %v2213 = vpow.pop %v2212
    %2214 = vst [vmem:[#allocation3 + $0x18] sm:$0xff] %v2211
    %2215 = vst [vmem:[#allocation3 + $0x58] sm:$0xff] %v2213
    %v2216 = vlaneseq
    %v2217 = vshrl.u32 %v2216, 7
    %v2218 = vsub.s32 4, %v2217
    %v2219 = vrot.slane %v1714, %v2218
    %v2220 = vmul.f32 %v2219, %v1321
    %v2221 = vmul.f32 %v2219, %v1322
    %v2222 = vmul.f32 %v2220, 1.442695
    %v2223 = vpow.pop %v2222
    %v2224 = vmul.f32 %v2221, 1.442695
    %v2225 = vpow.pop %v2224
    %2226 = vst [vmem:[#allocation3 + $0x20] sm:$0xff] %v2223
    %2227 = vst [vmem:[#allocation3 + $0x60] sm:$0xff] %v2225
    %v2228 = vlaneseq
    %v2229 = vshrl.u32 %v2228, 7
    %v2230 = vsub.s32 5, %v2229
    %v2231 = vrot.slane %v1714, %v2230
    %v2232 = vmul.f32 %v2231, %v1321
    %v2233 = vmul.f32 %v2231, %v1322
    %v2234 = vmul.f32 %v2232, 1.442695
    %v2235 = vpow.pop %v2234
    %v2236 = vmul.f32 %v2233, 1.442695
    %v2237 = vpow.pop %v2236
    %2238 = vst [vmem:[#allocation3 + $0x28] sm:$0xff] %v2235
    %2239 = vst [vmem:[#allocation3 + $0x68] sm:$0xff] %v2237
    %v2240 = vlaneseq
    %v2241 = vshrl.u32 %v2240, 7
    %v2242 = vsub.s32 6, %v2241
    %v2243 = vrot.slane %v1714, %v2242
    %v2244 = vmul.f32 %v2243, %v1321
    %v2245 = vmul.f32 %v2243, %v1322
    %v2246 = vmul.f32 %v2244, 1.442695
    %v2247 = vpow.pop %v2246
    %v2248 = vmul.f32 %v2245, 1.442695
    %v2249 = vpow.pop %v2248
    %2250 = vst [vmem:[#allocation3 + $0x30] sm:$0xff] %v2247
    %2251 = vst [vmem:[#allocation3 + $0x70] sm:$0xff] %v2249
    %v2252 = vlaneseq
    %v2253 = vshrl.u32 %v2252, 7
    %v2254 = vsub.s32 7, %v2253
    %v2255 = vrot.slane %v1714, %v2254
    %v2256 = vmul.f32 %v2255, %v1321
    %v2257 = vmul.f32 %v2255, %v1322
    %v2258 = vmul.f32 %v2256, 1.442695
    %v2259 = vpow.pop %v2258
    %v2260 = vmul.f32 %v2257, 1.442695
    %v2261 = vpow.pop %v2260
    %2262 = vst [vmem:[#allocation3 + $0x38] sm:$0xff] %v2259
    %2263 = vst [vmem:[#allocation3 + $0x78] sm:$0xff] %v2261
    %v2264 = vld [vmem:[#allocation2] sm:$0xff]
    %v2265 = vld [vmem:[#allocation2 + $0x40] sm:$0xff]
    %v2266 = vld [vmem:[#allocation2 + $0x80] sm:$0xff]
    %v2267 = vld [vmem:[#allocation2 + $0xc0] sm:$0xff]
    %v2268 = vld [vmem:[#allocation3] sm:$0xff]
    %v2269 = vld [vmem:[#allocation3 + $0x40] sm:$0xff]
    %v2270 = vmul.f32 %v2268, 0.0
    %v2271 = vmul.f32 %v2269, 0.0
    %v2272 = vlaneseq
    %v2273 = vshrl.u32 %v2272, 7
    %v2274 = vsub.s32 0, %v2273
    %v2275 = vrot.slane %v2167, %v2274
    %v2276 = vmul.f32 %v2275, %v2264
    %v2277 = vmul.f32 %v2275, %v2265
    %v2278 = vadd.f32 %v2270, %v2276
    %v2279 = vadd.f32 %v2271, %v2277
    %v2280 = vmul.f32 %v2278, %v2266
    %v2281 = vmul.f32 %v2279, %v2267
    %v2282 = vadd.f32 %v2280, %v2281
    %v2283 = vrot.slane %v2282, 4
    %v2284 = vadd.f32 %v2282, %v2283
    %v2285 = vrot.slane %v2284, 2
    %v2286 = vadd.f32 %v2284, %v2285
    %v2287 = vrot.slane %v2286, 1
    %v2288 = vadd.f32 %v2286, %v2287
    %2289 = vst [vmem:[#allocation4] sm:$0x1] %v2288
    %v2290 = vld [vmem:[#allocation2 + $0x8] sm:$0xff]
    %v2291 = vld [vmem:[#allocation2 + $0x48] sm:$0xff]
    %v2292 = vld [vmem:[#allocation2 + $0x88] sm:$0xff]
    %v2293 = vld [vmem:[#allocation2 + $0xc8] sm:$0xff]
    %v2294 = vld [vmem:[#allocation3 + $0x8] sm:$0xff]
    %v2295 = vld [vmem:[#allocation3 + $0x48] sm:$0xff]
    %v2296 = vmul.f32 %v2294, %v2278
    %v2297 = vmul.f32 %v2295, %v2279
    %v2298 = vlaneseq
    %v2299 = vshrl.u32 %v2298, 7
    %v2300 = vsub.s32 1, %v2299
    %v2301 = vrot.slane %v2167, %v2300
    %v2302 = vmul.f32 %v2301, %v2290
    %v2303 = vmul.f32 %v2301, %v2291
    %v2304 = vadd.f32 %v2296, %v2302
    %v2305 = vadd.f32 %v2297, %v2303
    %v2306 = vmul.f32 %v2304, %v2292
    %v2307 = vmul.f32 %v2305, %v2293
    %v2308 = vadd.f32 %v2306, %v2307
    %v2309 = vrot.slane %v2308, 4
    %v2310 = vadd.f32 %v2308, %v2309
    %v2311 = vrot.slane %v2310, 2
    %v2312 = vadd.f32 %v2310, %v2311
    %v2313 = vrot.slane %v2312, 1
    %v2314 = vadd.f32 %v2312, %v2313
    %2315 = vst [vmem:[#allocation4 + $0x1] sm:$0x1] %v2314
    %v2316 = vld [vmem:[#allocation2 + $0x10] sm:$0xff]
    %v2317 = vld [vmem:[#allocation2 + $0x50] sm:$0xff]
    %v2318 = vld [vmem:[#allocation2 + $0x90] sm:$0xff]
    %v2319 = vld [vmem:[#allocation2 + $0xd0] sm:$0xff]
    %v2320 = vld [vmem:[#allocation3 + $0x10] sm:$0xff]
    %v2321 = vld [vmem:[#allocation3 + $0x50] sm:$0xff]
    %v2322 = vmul.f32 %v2320, %v2304
    %v2323 = vmul.f32 %v2321, %v2305
    %v2324 = vlaneseq
    %v2325 = vshrl.u32 %v2324, 7
    %v2326 = vsub.s32 2, %v2325
    %v2327 = vrot.slane %v2167, %v2326
    %v2328 = vmul.f32 %v2327, %v2316
    %v2329 = vmul.f32 %v2327, %v2317
    %v2330 = vadd.f32 %v2322, %v2328
    %v2331 = vadd.f32 %v2323, %v2329
    %v2332 = vmul.f32 %v2330, %v2318
    %v2333 = vmul.f32 %v2331, %v2319
    %v2334 = vadd.f32 %v2332, %v2333
    %v2335 = vrot.slane %v2334, 4
    %v2336 = vadd.f32 %v2334, %v2335
    %v2337 = vrot.slane %v2336, 2
    %v2338 = vadd.f32 %v2336, %v2337
    %v2339 = vrot.slane %v2338, 1
    %v2340 = vadd.f32 %v2338, %v2339
    %2341 = vst [vmem:[#allocation4 + $0x2] sm:$0x1] %v2340
    %v2342 = vld [vmem:[#allocation2 + $0x18] sm:$0xff]
    %v2343 = vld [vmem:[#allocation2 + $0x58] sm:$0xff]
    %v2344 = vld [vmem:[#allocation2 + $0x98] sm:$0xff]
    %v2345 = vld [vmem:[#allocation2 + $0xd8] sm:$0xff]
    %v2346 = vld [vmem:[#allocation3 + $0x18] sm:$0xff]
    %v2347 = vld [vmem:[#allocation3 + $0x58] sm:$0xff]
    %v2348 = vmul.f32 %v2346, %v2330
    %v2349 = vmul.f32 %v2347, %v2331
    %v2350 = vlaneseq
    %v2351 = vshrl.u32 %v2350, 7
    %v2352 = vsub.s32 3, %v2351
    %v2353 = vrot.slane %v2167, %v2352
    %v2354 = vmul.f32 %v2353, %v2342
    %v2355 = vmul.f32 %v2353, %v2343
    %v2356 = vadd.f32 %v2348, %v2354
    %v2357 = vadd.f32 %v2349, %v2355
    %v2358 = vmul.f32 %v2356, %v2344
    %v2359 = vmul.f32 %v2357, %v2345
    %v2360 = vadd.f32 %v2358, %v2359
    %v2361 = vrot.slane %v2360, 4
    %v2362 = vadd.f32 %v2360, %v2361
    %v2363 = vrot.slane %v2362, 2
    %v2364 = vadd.f32 %v2362, %v2363
    %v2365 = vrot.slane %v2364, 1
    %v2366 = vadd.f32 %v2364, %v2365
    %2367 = vst [vmem:[#allocation4 + $0x3] sm:$0x1] %v2366
    %v2368 = vld [vmem:[#allocation2 + $0x20] sm:$0xff]
    %v2369 = vld [vmem:[#allocation2 + $0x60] sm:$0xff]
    %v2370 = vld [vmem:[#allocation2 + $0xa0] sm:$0xff]
    %v2371 = vld [vmem:[#allocation2 + $0xe0] sm:$0xff]
    %v2372 = vld [vmem:[#allocation3 + $0x20] sm:$0xff]
    %v2373 = vld [vmem:[#allocation3 + $0x60] sm:$0xff]
    %v2374 = vmul.f32 %v2372, %v2356
    %v2375 = vmul.f32 %v2373, %v2357
    %v2376 = vlaneseq
    %v2377 = vshrl.u32 %v2376, 7
    %v2378 = vsub.s32 4, %v2377
    %v2379 = vrot.slane %v2167, %v2378
    %v2380 = vmul.f32 %v2379, %v2368
    %v2381 = vmul.f32 %v2379, %v2369
    %v2382 = vadd.f32 %v2374, %v2380
    %v2383 = vadd.f32 %v2375, %v2381
    %v2384 = vmul.f32 %v2382, %v2370
    %v2385 = vmul.f32 %v2383, %v2371
    %v2386 = vadd.f32 %v2384, %v2385
    %v2387 = vrot.slane %v2386, 4
    %v2388 = vadd.f32 %v2386, %v2387
    %v2389 = vrot.slane %v2388, 2
    %v2390 = vadd.f32 %v2388, %v2389
    %v2391 = vrot.slane %v2390, 1
    %v2392 = vadd.f32 %v2390, %v2391
    %2393 = vst [vmem:[#allocation4 + $0x4] sm:$0x1] %v2392
    %v2394 = vld [vmem:[#allocation2 + $0x28] sm:$0xff]
    %v2395 = vld [vmem:[#allocation2 + $0x68] sm:$0xff]
    %v2396 = vld [vmem:[#allocation2 + $0xa8] sm:$0xff]
    %v2397 = vld [vmem:[#allocation2 + $0xe8] sm:$0xff]
    %v2398 = vld [vmem:[#allocation3 + $0x28] sm:$0xff]
    %v2399 = vld [vmem:[#allocation3 + $0x68] sm:$0xff]
    %v2400 = vmul.f32 %v2398, %v2382
    %v2401 = vmul.f32 %v2399, %v2383
    %v2402 = vlaneseq
    %v2403 = vshrl.u32 %v2402, 7
    %v2404 = vsub.s32 5, %v2403
    %v2405 = vrot.slane %v2167, %v2404
    %v2406 = vmul.f32 %v2405, %v2394
    %v2407 = vmul.f32 %v2405, %v2395
    %v2408 = vadd.f32 %v2400, %v2406
    %v2409 = vadd.f32 %v2401, %v2407
    %v2410 = vmul.f32 %v2408, %v2396
    %v2411 = vmul.f32 %v2409, %v2397
    %v2412 = vadd.f32 %v2410, %v2411
    %v2413 = vrot.slane %v2412, 4
    %v2414 = vadd.f32 %v2412, %v2413
    %v2415 = vrot.slane %v2414, 2
    %v2416 = vadd.f32 %v2414, %v2415
    %v2417 = vrot.slane %v2416, 1
    %v2418 = vadd.f32 %v2416, %v2417
    %2419 = vst [vmem:[#allocation4 + $0x5] sm:$0x1] %v2418
    %v2420 = vld [vmem:[#allocation2 + $0x30] sm:$0xff]
    %v2421 = vld [vmem:[#allocation2 + $0x70] sm:$0xff]
    %v2422 = vld [vmem:[#allocation2 + $0xb0] sm:$0xff]
    %v2423 = vld [vmem:[#allocation2 + $0xf0] sm:$0xff]
    %v2424 = vld [vmem:[#allocation3 + $0x30] sm:$0xff]
    %v2425 = vld [vmem:[#allocation3 + $0x70] sm:$0xff]
    %v2426 = vmul.f32 %v2424, %v2408
    %v2427 = vmul.f32 %v2425, %v2409
    %v2428 = vlaneseq
    %v2429 = vshrl.u32 %v2428, 7
    %v2430 = vsub.s32 6, %v2429
    %v2431 = vrot.slane %v2167, %v2430
    %v2432 = vmul.f32 %v2431, %v2420
    %v2433 = vmul.f32 %v2431, %v2421
    %v2434 = vadd.f32 %v2426, %v2432
    %v2435 = vadd.f32 %v2427, %v2433
    %v2436 = vmul.f32 %v2434, %v2422
    %v2437 = vmul.f32 %v2435, %v2423
    %v2438 = vadd.f32 %v2436, %v2437
    %v2439 = vrot.slane %v2438, 4
    %v2440 = vadd.f32 %v2438, %v2439
    %v2441 = vrot.slane %v2440, 2
    %v2442 = vadd.f32 %v2440, %v2441
    %v2443 = vrot.slane %v2442, 1
    %v2444 = vadd.f32 %v2442, %v2443
    %2445 = vst [vmem:[#allocation4 + $0x6] sm:$0x1] %v2444
    %v2446 = vld [vmem:[#allocation2 + $0x38] sm:$0xff]
    %v2447 = vld [vmem:[#allocation2 + $0x78] sm:$0xff]
    %v2448 = vld [vmem:[#allocation2 + $0xb8] sm:$0xff]
    %v2449 = vld [vmem:[#allocation2 + $0xf8] sm:$0xff]
    %v2450 = vld [vmem:[#allocation3 + $0x38] sm:$0xff]
    %v2451 = vld [vmem:[#allocation3 + $0x78] sm:$0xff]
    %v2452 = vmul.f32 %v2450, %v2434
    %v2453 = vmul.f32 %v2451, %v2435
    %v2454 = vlaneseq
    %v2455 = vshrl.u32 %v2454, 7
    %v2456 = vsub.s32 7, %v2455
    %v2457 = vrot.slane %v2167, %v2456
    %v2458 = vmul.f32 %v2457, %v2446
    %v2459 = vmul.f32 %v2457, %v2447
    %v2460 = vadd.f32 %v2452, %v2458
    %v2461 = vadd.f32 %v2453, %v2459
    %v2462 = vmul.f32 %v2460, %v2448
    %v2463 = vmul.f32 %v2461, %v2449
    %v2464 = vadd.f32 %v2462, %v2463
    %v2465 = vrot.slane %v2464, 4
    %v2466 = vadd.f32 %v2464, %v2465
    %v2467 = vrot.slane %v2466, 2
    %v2468 = vadd.f32 %v2466, %v2467
    %v2469 = vrot.slane %v2468, 1
    %v2470 = vadd.f32 %v2468, %v2469
    %2471 = vst [vmem:[#allocation4 + $0x7] sm:$0x1] %v2470
    %v2472 = vld [vmem:[#allocation4] sm:$0xff]
    %v2473 = vlaneseq
    %v2474 = vshrl.u32 %v2473, 7
    %v2475 = vsub.s32 4, %v2474
    %v2476 = vrot.slane %v1319, %v2475
    %v2477 = vmul.f32 %v1599, %v2476
    %v2478 = vadd.f32 %v2472, %v2477
    %v2479 = vmul.f32 %v1541, 0.5
    %v2480 = vtanh.pop %v2479
    %v2481 = vadd.f32 %v2480, 1.0
    %v2482 = vmul.f32 %v2481, 0.5
    %v2483 = vmul.f32 %v1541, %v2482
    %v2484 = vmul.f32 %v2478, %v2483
    %2486 = vrot.lane.b32.xlu0 %v2484, 64
    %v2487 = vpop.permute.xlu0 %2486
    %s2488 = scalar_lea.vmem [#allocation12], 192
    %v2489 = vld [vmem:[%s2488] sm:$0xff]
    %v2490 = vld [vmem:[%s2488 + $0x8] sm:$0xff]
    %v2491 = vld [vmem:[%s2488 + $0x10] sm:$0xff]
    %v2492 = vld [vmem:[%s2488 + $0x18] sm:$0xff]
    %v2493 = vld [vmem:[%s2488 + $0x20] sm:$0xff]
    %v2494 = vld [vmem:[%s2488 + $0x28] sm:$0xff]
    %v2495 = vld [vmem:[%s2488 + $0x30] sm:$0xff]
    %v2496 = vld [vmem:[%s2488 + $0x38] sm:$0xff]
    %v2497 = vsel %vm352, %v2484, 0
    %v2499 = vsel %vm352, %v2487, 0
    %2501 = vmatprep.subr.mxu0 0.0
    %2502 = vmatpush1.msra.mxu0 %v2489
    %2503 = vmatprep.subr.mxu0 0.0
    %2504 = vmatpush1.msra.mxu0 %v2490
    %2505 = vmatprep.subr.mxu0 0.0
    %2506 = vmatpush1.msra.mxu0 %v2491
    %2507 = vmatprep.subr.mxu0 0.0
    %2508 = vmatpush1.msra.mxu0 %v2492
    %2509 = vmatprep.subr.mxu0 0.0
    %2510 = vmatpush1.msra.mxu0 %v2493
    %2511 = vmatprep.subr.mxu0 0.0
    %2512 = vmatpush1.msra.mxu0 %v2494
    %2513 = vmatprep.subr.mxu0 0.0
    %2514 = vmatpush1.msra.mxu0 %v2495
    %2515 = vmatprep.subr.mxu0 0.0
    %2516 = vmatpush1.msra.mxu0 %v2496
    %2517 = vmatprep.subr.mxu0 0.0
    %2518 = vmatpush1.msra.mxu0 0.0
    %2519 = vmatprep.subr.mxu0 0.0
    %2520 = vmatpush1.msra.mxu0 0.0
    %2521 = vmatprep.subr.mxu0 0.0
    %2522 = vmatpush1.msra.mxu0 0.0
    %2523 = vmatprep.subr.mxu0 0.0
    %2524 = vmatpush1.msra.mxu0 0.0
    %2525 = vmatprep.subr.mxu0 0.0
    %2526 = vmatpush1.msra.mxu0 0.0
    %2527 = vmatprep.subr.mxu0 0.0
    %2528 = vmatpush1.msra.mxu0 0.0
    %2529 = vmatprep.subr.mxu0 0.0
    %2530 = vmatpush1.msra.mxu0 0.0
    %2531 = vmatprep.subr.mxu0 0.0
    %2532 = vmatpush1.msra.mxu0 0.0
    %2533 = vmatprep.subr.mxu0 0.0
    %2534 = vmatpush1.msra.mxu0 0.0
    %2535 = vmatprep.subr.mxu0 0.0
    %2536 = vmatpush1.msra.mxu0 0.0
    %2537 = vmatprep.subr.mxu0 0.0
    %2538 = vmatpush1.msra.mxu0 0.0
    %2539 = vmatprep.subr.mxu0 0.0
    %2540 = vmatpush1.msra.mxu0 0.0
    %2541 = vmatprep.subr.mxu0 0.0
    %2542 = vmatpush1.msra.mxu0 0.0
    %2543 = vmatprep.subr.mxu0 0.0
    %2544 = vmatpush1.msra.mxu0 0.0
    %2545 = vmatprep.subr.mxu0 0.0
    %2546 = vmatpush1.msra.mxu0 0.0
    %2547 = vmatprep.subr.mxu0 0.0
    %2548 = vmatpush1.msra.mxu0 0.0
    %2549 = vmatprep.subr.mxu0 0.0
    %2550 = vmatpush1.msra.mxu0 0.0
    %2551 = vmatprep.subr.mxu0 0.0
    %2552 = vmatpush1.msra.mxu0 0.0
    %2553 = vmatprep.subr.mxu0 0.0
    %2554 = vmatpush1.msra.mxu0 0.0
    %2555 = vmatprep.subr.mxu0 0.0
    %2556 = vmatpush1.msra.mxu0 0.0
    %2557 = vmatprep.subr.mxu0 0.0
    %2558 = vmatpush1.msra.mxu0 0.0
    %2559 = vmatprep.subr.mxu0 0.0
    %2560 = vmatpush1.msra.mxu0 0.0
    %2561 = vmatprep.subr.mxu0 0.0
    %2562 = vmatpush1.msra.mxu0 0.0
    %2563 = vmatprep.subr.mxu0 0.0
    %2564 = vmatpush1.msra.mxu0 0.0
    %2565 = vmatprep.mubr.f32.mxu0 0.0
    %2566 = vmatmul.mubr.f32.gmra.mrb[0].mxu0 %v2497
    %v2567 = vpop.f32.mrb[0].mxu0
    %v2568 = vadd.f32 %v1394, %v2567
    %v2569 = vpop.f32.mrb[0].mxu0
    %2570 = vmatprep.mubr.f32.mxu0 0.0
    %2571 = vmatmul.mubr.f32.gmra.mrb[0].mxu0 %v2499
    %v2572 = vpop.f32.mrb[0].mxu0
    %v2573 = vadd.f32 %v1399, %v2572
    %v2574 = vpop.f32.mrb[0].mxu0
    %2575 = vdwg.mxu0
    %v2576 = vld [vmem:[%s3] sm:$0xff]
    %2577 = vadd.xlane.f32.xlu0 %v2568
    %v2578 = vpop.xlane.xlu0 %2577
    %2579 = vadd.xlane.f32.xlu0 %v2573
    %v2580 = vpop.xlane.xlu0 %2579
    %v2581 = vmul.f32 %v2578, 0.03125
    %v2582 = vmul.f32 %v2580, 0.03125
    %v2583 = vmul.f32 %v2568, %v2568
    %v2584 = vmul.f32 %v2573, %v2573
    %2585 = vadd.xlane.f32.xlu0 %v2583
    %v2586 = vpop.xlane.xlu0 %2585
    %2587 = vadd.xlane.f32.xlu0 %v2584
    %v2588 = vpop.xlane.xlu0 %2587
    %v2589 = vmul.f32 %v2586, 0.03125
    %v2590 = vmul.f32 %v2588, 0.03125
    %v2591 = vmul.f32 %v2581, %v2581
    %v2592 = vmul.f32 %v2582, %v2582
    %v2593 = vsub.f32 %v2589, %v2591
    %v2594 = vsub.f32 %v2590, %v2592
    %v2595 = vsub.f32 %v2568, %v2581
    %v2596 = vsub.f32 %v2573, %v2582
    %v2597 = vadd.f32 %v2593, 1e-05
    %v2598 = vadd.f32 %v2594, 1e-05
    %v2599 = vrsqrt.pop %v2597
    %v2600 = vrsqrt.pop %v2598
    %v2601 = vmul.f32 %v2595, %v2599
    %v2602 = vmul.f32 %v2596, %v2600
    %v2603 = vlaneseq
    %v2604 = vshrl.u32 %v2603, 7
    %v2605 = vsub.s32 0, %v2604
    %v2606 = vrot.slane %v2576, %v2605
    %v2607 = vmul.f32 %v2601, %v2606
    %v2608 = vmul.f32 %v2602, %v2606
    %v2609 = vlaneseq
    %v2610 = vshrl.u32 %v2609, 7
    %v2611 = vsub.s32 1, %v2610
    %v2612 = vrot.slane %v2576, %v2611
    %v2613 = vadd.f32 %v2607, %v2612
    %v2614 = vadd.f32 %v2608, %v2612
    %v2615 = vld [vmem:[#allocation7] sm:$0xff]
    %v2616 = vld [vmem:[#allocation7 + $0x8] sm:$0xff]
    %v2617 = vld [vmem:[#allocation7 + $0x10] sm:$0xff]
    %v2618 = vld [vmem:[#allocation7 + $0x18] sm:$0xff]
    %v2619 = vld [vmem:[#allocation7 + $0x20] sm:$0xff]
    %v2620 = vld [vmem:[#allocation7 + $0x28] sm:$0xff]
    %v2621 = vld [vmem:[#allocation7 + $0x30] sm:$0xff]
    %v2622 = vld [vmem:[#allocation7 + $0x38] sm:$0xff]
    %v2623 = vld [vmem:[#allocation7 + $0x40] sm:$0xff]
    %v2624 = vld [vmem:[#allocation7 + $0x48] sm:$0xff]
    %v2625 = vld [vmem:[#allocation7 + $0x50] sm:$0xff]
    %v2626 = vld [vmem:[#allocation7 + $0x58] sm:$0xff]
    %v2627 = vld [vmem:[#allocation7 + $0x60] sm:$0xff]
    %v2628 = vld [vmem:[#allocation7 + $0x68] sm:$0xff]
    %v2629 = vld [vmem:[#allocation7 + $0x70] sm:$0xff]
    %v2630 = vld [vmem:[#allocation7 + $0x78] sm:$0xff]
    %2631 = vmatprep.subr.mxu0 0.0
    %2632 = vmatpush1.msra.mxu0 %v2615
    %2633 = vmatprep.subr.mxu0 0.0
    %2634 = vmatpush1.msra.mxu0 %v2616
    %2635 = vmatprep.subr.mxu0 0.0
    %2636 = vmatpush1.msra.mxu0 %v2617
    %2637 = vmatprep.subr.mxu0 0.0
    %2638 = vmatpush1.msra.mxu0 %v2618
    %2639 = vmatprep.subr.mxu0 0.0
    %2640 = vmatpush1.msra.mxu0 %v2619
    %2641 = vmatprep.subr.mxu0 0.0
    %2642 = vmatpush1.msra.mxu0 %v2620
    %2643 = vmatprep.subr.mxu0 0.0
    %2644 = vmatpush1.msra.mxu0 %v2621
    %2645 = vmatprep.subr.mxu0 0.0
    %2646 = vmatpush1.msra.mxu0 %v2622
    %2647 = vmatprep.subr.mxu0 0.0
    %2648 = vmatpush1.msra.mxu0 %v2623
    %2649 = vmatprep.subr.mxu0 0.0
    %2650 = vmatpush1.msra.mxu0 %v2624
    %2651 = vmatprep.subr.mxu0 0.0
    %2652 = vmatpush1.msra.mxu0 %v2625
    %2653 = vmatprep.subr.mxu0 0.0
    %2654 = vmatpush1.msra.mxu0 %v2626
    %2655 = vmatprep.subr.mxu0 0.0
    %2656 = vmatpush1.msra.mxu0 %v2627
    %2657 = vmatprep.subr.mxu0 0.0
    %2658 = vmatpush1.msra.mxu0 %v2628
    %2659 = vmatprep.subr.mxu0 0.0
    %2660 = vmatpush1.msra.mxu0 %v2629
    %2661 = vmatprep.subr.mxu0 0.0
    %2662 = vmatpush1.msra.mxu0 %v2630
    %2663 = vmatprep.subr.mxu0 0.0
    %2664 = vmatpush1.msra.mxu0 0.0
    %2665 = vmatprep.subr.mxu0 0.0
    %2666 = vmatpush1.msra.mxu0 0.0
    %2667 = vmatprep.subr.mxu0 0.0
    %2668 = vmatpush1.msra.mxu0 0.0
    %2669 = vmatprep.subr.mxu0 0.0
    %2670 = vmatpush1.msra.mxu0 0.0
    %2671 = vmatprep.subr.mxu0 0.0
    %2672 = vmatpush1.msra.mxu0 0.0
    %2673 = vmatprep.subr.mxu0 0.0
    %2674 = vmatpush1.msra.mxu0 0.0
    %2675 = vmatprep.subr.mxu0 0.0
    %2676 = vmatpush1.msra.mxu0 0.0
    %2677 = vmatprep.subr.mxu0 0.0
    %2678 = vmatpush1.msra.mxu0 0.0
    %2679 = vmatprep.subr.mxu0 0.0
    %2680 = vmatpush1.msra.mxu0 0.0
    %2681 = vmatprep.subr.mxu0 0.0
    %2682 = vmatpush1.msra.mxu0 0.0
    %2683 = vmatprep.subr.mxu0 0.0
    %2684 = vmatpush1.msra.mxu0 0.0
    %2685 = vmatprep.subr.mxu0 0.0
    %2686 = vmatpush1.msra.mxu0 0.0
    %2687 = vmatprep.subr.mxu0 0.0
    %2688 = vmatpush1.msra.mxu0 0.0
    %2689 = vmatprep.subr.mxu0 0.0
    %2690 = vmatpush1.msra.mxu0 0.0
    %2691 = vmatprep.subr.mxu0 0.0
    %2692 = vmatpush1.msra.mxu0 0.0
    %2693 = vmatprep.subr.mxu0 0.0
    %2694 = vmatpush1.msra.mxu0 0.0
    %2695 = vmatprep.mubr.f32.mxu0 0.0
    %2696 = vmatmul.mubr.f32.gmra.mrb[0].mxu0 %v2613
    %v2697 = vpop.f32.mrb[0].mxu0
    %v2698 = vadd.f32 0.0, %v2697
    %v2699 = vpop.f32.mrb[0].mxu0
    %2700 = vmatprep.mubr.f32.mxu0 0.0
    %2701 = vmatmul.mubr.f32.gmra.mrb[0].mxu0 %v2614
    %v2702 = vpop.f32.mrb[0].mxu0
    %v2703 = vadd.f32 0.0, %v2702
    %v2704 = vpop.f32.mrb[0].mxu0
    %2705 = vdwg.mxu0
    %2706 = vst [vmem:[%s8] sm:$0xff] %v2698
    %2707 = vst [vmem:[%s8 + $0x8] sm:$0xff] %v2703
    // Predicated region
    $region58: #{forward.1} parent=1 // pred_check
      _
    $region59: #{forward.1} parent=1 // pred_check_branch
      %2709 = sbr.rel (0) target = $region61
    $region60: #{forward.1} parent=1 // pred_region
      _
    $region61: #{forward.1} parent=1 // pred_fallthru
      _
    // Predicated region
    $region62: #{forward.1} parent=1 // pred_check
      _
    $region63: #{forward.1} parent=1 // pred_check_branch
      %2711 = sbr.rel (0) target = $region65
    $region64: #{forward.1} parent=1 // pred_region
      _
    $region65: #{forward.1} parent=1 // pred_fallthru
      _
    %2712 = vsyncpa [#allocation6], 1
    %2713 = vsyncpa [#allocation8], 1
    %2714 = vsyncpa [#allocation11], 1
    %2715 = vsyncpa [#allocation14], 1

</llo_original>
